<compile_context>
chip_gen: v7x
topology: tpu7x:2x2x1
jax: 0.10.0
libtpu: 0.0.40
codegen_flags: <defaults>
</compile_context>

<pallas_src>
import math
import functools

import jax
import jax.numpy as jnp
from jax import lax
from jax.experimental import pallas as pl
from jax.experimental.pallas import tpu as pltpu

LN_EPS = 1e-5                      # torch.nn.LayerNorm default
NEG_INF = -1e30                    # additive key-mask for padded tokens
_VMEM_LIMIT = 64 * 1024 * 1024
_SQRT_2_OVER_PI = math.sqrt(2.0 / math.pi)


# ----------------------------------------------------------------------------
# small math helpers used inside kernels (only ops with Mosaic lowerings)
# ----------------------------------------------------------------------------
def _layernorm(x, gamma, beta):
    mu = jnp.mean(x, axis=-1, keepdims=True)
    xc = x - mu
    var = jnp.mean(xc * xc, axis=-1, keepdims=True)
    inv = lax.rsqrt(var + LN_EPS)
    return xc * inv * gamma + beta


def _gelu(x):
    # tanh-approximate GELU: lowers to the EUP (separate VLIW slot), cutting VALU
    # pressure in the MLP.  Small numeric delta vs torch.nn.GELU() exact-erf mode.
    return 0.5 * x * (1.0 + jnp.tanh(_SQRT_2_OVER_PI * (x + 0.044715 * x * x * x)))


def _round_up(v, m):
    return -(-v // m) * m


def _pick_row_block(rows):
    # largest sublane-aligned tile that divides the row count
    for cand in (256, 128, 64, 32, 24, 16, 8):
        if rows % cand == 0:
            return cand
    return rows


def _rep(shape):
    # weight / bias resident in VMEM across the whole grid (constant index map)
    return pl.BlockSpec(shape, lambda *_: (0,) * len(shape))


# ----------------------------------------------------------------------------
# Pallas kernels
# ----------------------------------------------------------------------------
def patch_embed_kernel(xp_ref, w_ref, b_ref, o_ref):
    # xp_ref: (rows_tile, pdim) bf16,  w_ref: (pdim, D) bf16,  b_ref: (1, D) f32
    o_ref[...] = jnp.dot(xp_ref[...], w_ref[...],
                         preferred_element_type=jnp.float32) + b_ref[...]


def attn_block_kernel(x_ref, g1_ref, b1_ref, wqkv_ref, wo_ref, bo_ref, o_ref,
                      *, heads, n_real):
    # One pre-norm attention residual block for one batch element:
    #   out = x + to_out(attention(LN1(x)))
    x = x_ref[0]                                        # (Np, D) f32
    Np, D = x.shape
    dh = D // heads

    # ---- pre-norm + fused QKV projection (bf16 operands, f32 accumulation) ----
    h = _layernorm(x, g1_ref[...], b1_ref[...]).astype(jnp.bfloat16)
    qkv = jnp.dot(h, wqkv_ref[...], preferred_element_type=jnp.float32)   # (Np, 3D)
    q = qkv[:, :D].astype(jnp.bfloat16)        # dim**-0.5 scale pre-folded into Wq
    k = qkv[:, D:2 * D].astype(jnp.bfloat16)
    v = qkv[:, 2 * D:].astype(jnp.bfloat16)

    # key mask: padded tokens (col >= n_real) must never receive attention weight
    col = lax.broadcasted_iota(jnp.int32, (1, Np), 1)
    key_bias = jnp.where(col < n_real, 0.0, NEG_INF).astype(jnp.float32)  # (1, Np)

    head_outs = []
    for hi in range(heads):                             # unrolled over heads
        lo = hi * dh
        qh = q[:, lo:lo + dh]
        kh = k[:, lo:lo + dh]
        vh = v[:, lo:lo + dh]
        s = lax.dot_general(qh, kh, (((1,), (1,)), ((), ())),
                            preferred_element_type=jnp.float32)           # (Np, Np)
        s = s + key_bias
        s = s - jnp.max(s, axis=-1, keepdims=True)
        e = jnp.exp(s)
        p = e * pl.reciprocal(jnp.sum(e, axis=-1, keepdims=True), approx=True)
        head_outs.append(jnp.dot(p.astype(jnp.bfloat16), vh,
                                 preferred_element_type=jnp.float32))     # (Np, dh)

    # concat heads along the lane axis -> one full-depth matmul with Wo
    attn_cat = jnp.concatenate(head_outs, axis=-1).astype(jnp.bfloat16)   # (Np, D)
    proj = jnp.dot(attn_cat, wo_ref[...], preferred_element_type=jnp.float32)
    o_ref[0] = x + proj + bo_ref[...]


def mlp_block_kernel(x_ref, g_ref, bln_ref, w1_ref, bm1_ref, w2_ref, bm2_ref, o_ref):
    # Row-wise pre-norm MLP residual:  out = x + W2 @ gelu(W1 @ LN2(x) + b1) + b2
    x = x_ref[...]                                      # (row_tile, D) f32
    h = _layernorm(x, g_ref[...], bln_ref[...]).astype(jnp.bfloat16)
    h = jnp.dot(h, w1_ref[...], preferred_element_type=jnp.float32) + bm1_ref[...]
    h = _gelu(h).astype(jnp.bfloat16)
    h = jnp.dot(h, w2_ref[...], preferred_element_type=jnp.float32) + bm2_ref[...]
    o_ref[...] = x + h


def head_kernel(x_ref, g_ref, b_ref, w_ref, bo_ref, o_ref):
    # (B, D) -> LayerNorm -> Linear(D, num_classes)
    h = _layernorm(x_ref[...], g_ref[...], b_ref[...]).astype(jnp.bfloat16)
    o_ref[...] = jnp.dot(h, w_ref[...], preferred_element_type=jnp.float32) + bo_ref[...]


# ----------------------------------------------------------------------------
# wrappers
# ----------------------------------------------------------------------------
def patch_embed(xp_flat, w, b, *, row_block):
    R, pdim = xp_flat.shape
    D = w.shape[1]
    return pl.pallas_call(
        patch_embed_kernel,
        out_shape=jax.ShapeDtypeStruct((R, D), jnp.float32),
        grid=(R // row_block,),
        in_specs=[pl.BlockSpec((row_block, pdim), lambda i: (i, 0)),
                  _rep((pdim, D)),
                  _rep((1, D))],
        out_specs=pl.BlockSpec((row_block, D), lambda i: (i, 0)),
        compiler_params=pltpu.CompilerParams(
            dimension_semantics=("parallel",),
            vmem_limit_bytes=_VMEM_LIMIT),
    )(xp_flat, w, b)


def attn_block(x, p, *, heads, n_real):
    B, Np, D = x.shape
    kernel = functools.partial(attn_block_kernel, heads=heads, n_real=n_real)
    return pl.pallas_call(
        kernel,
        out_shape=jax.ShapeDtypeStruct((B, Np, D), jnp.float32),
        grid=(B,),
        in_specs=[
            pl.BlockSpec((1, Np, D), lambda b: (b, 0, 0)),
            _rep((1, D)), _rep((1, D)),            # LN1 gamma / beta
            _rep((D, 3 * D)),                      # fused Wqkv (scale folded into Wq)
            _rep((D, D)), _rep((1, D)),            # Wo, bo
        ],
        out_specs=pl.BlockSpec((1, Np, D), lambda b: (b, 0, 0)),
        compiler_params=pltpu.CompilerParams(
            dimension_semantics=("parallel",),
            vmem_limit_bytes=_VMEM_LIMIT),
    )(x, p["g1"], p["b1"], p["wqkv"], p["wo"], p["bo"])


def mlp_block(x, p):
    B, Np, D = x.shape
    M = p["w1"].shape[1]
    rows = B * Np
    rb = _pick_row_block(rows)
    xf = x.reshape(rows, D)
    out = pl.pallas_call(
        mlp_block_kernel,
        out_shape=jax.ShapeDtypeStruct((rows, D), jnp.float32),
        grid=(rows // rb,),
        in_specs=[
            pl.BlockSpec((rb, D), lambda i: (i, 0)),
            _rep((1, D)), _rep((1, D)),            # LN2 gamma / beta
            _rep((D, M)), _rep((1, M)),            # W1, b1
            _rep((M, D)), _rep((1, D)),            # W2, b2
        ],
        out_specs=pl.BlockSpec((rb, D), lambda i: (i, 0)),
        compiler_params=pltpu.CompilerParams(
            dimension_semantics=("parallel",),
            vmem_limit_bytes=_VMEM_LIMIT),
    )(xf, p["g2"], p["b2"], p["w1"], p["bm1"], p["w2"], p["bm2"])
    return out.reshape(B, Np, D)


def mlp_head(x_cls, g, b, w, bo):
    B, D = x_cls.shape
    C = w.shape[1]
    return pl.pallas_call(
        head_kernel,
        out_shape=jax.ShapeDtypeStruct((B, C), jnp.float32),
        grid=(1,),
        in_specs=[_rep((B, D)), _rep((1, D)), _rep((1, D)),
                  _rep((D, C)), _rep((1, C))],
        out_specs=_rep((B, C)),
        compiler_params=pltpu.CompilerParams(
            dimension_semantics=("arbitrary",),
            vmem_limit_bytes=_VMEM_LIMIT),
    )(x_cls, g, b, w, bo)


def vit_forward(x, params, *, patch_size, heads):
    B, C, H, W = x.shape
    p = patch_size
    n_patches = (H // p) * (W // p)
    pdim = p * p * C

    # patchify: matches torch view/permute/view exactly (pure data movement glue)
    xp = x.reshape(B, C, H // p, p, W // p, p)
    xp = jnp.transpose(xp, (0, 2, 4, 1, 3, 5)).reshape(B * n_patches, pdim)

    # flattened, row-tiled patch-embedding matmul (rows padded to a multiple of 8)
    rows = B * n_patches
    rows_pad = _round_up(rows, 8)
    if rows_pad != rows:
        xp = jnp.pad(xp, ((0, rows_pad - rows), (0, 0)))
    tok = patch_embed(xp.astype(jnp.bfloat16), params["patch_w"], params["patch_b"],
                      row_block=_pick_row_block(rows_pad))
    tok = tok[:rows].reshape(B, n_patches, -1)
    D = tok.shape[-1]

    # cls token + positional embedding, then pad the token axis to a multiple of 8.
    cls = jnp.broadcast_to(params["cls_token"], (B, 1, D))
    x_tok = jnp.concatenate([cls, tok], axis=1) + params["pos_embedding"]  # (B, N, D)
    n_real = n_patches + 1
    n_pad = _round_up(n_real, 8)
    x_tok = jnp.pad(x_tok, ((0, 0), (0, n_pad - n_real), (0, 0)))          # zero pad

    # TODO(synk): for v5e, prefetch layer i+1 weights with a cross-call DMA future
    # (P10) to hide the weight-streaming wall at small batch.
    for layer in params["layers"]:
        x_tok = attn_block(x_tok, layer, heads=heads, n_real=n_real)
        x_tok = mlp_block(x_tok, layer)

    x_cls = x_tok[:, 0]                                 # cls token row (real)
    return mlp_head(x_cls, params["head_g"], params["head_b"],
                    params["head_w"], params["head_bo"])


# ----------------------------------------------------------------------------
# deterministic synthetic parameter init (shapes follow the module __init__)
# matmul weights are stored bf16 (MXU operands), biases / LN params f32.
# ----------------------------------------------------------------------------
def init_params(key, *, img_size, patch_size, num_classes, dim, depth, heads, mlp_dim):
    del heads
    num_patches = (img_size // patch_size) ** 2
    pdim = patch_size * patch_size * 3
    scale = float(dim) ** (-0.5)   # NOTE: full-dim scale, replicating the PyTorch code

    def nrm(k, shape, s=0.02, dtype=jnp.float32):
        return (jax.random.normal(k, shape, jnp.float32) * s).astype(dtype)

    keys = jax.random.split(key, 6 + depth)
    params = {
        "patch_w": nrm(keys[0], (pdim, dim), dtype=jnp.bfloat16),
        "patch_b": nrm(keys[1], (1, dim)),
        "pos_embedding": nrm(keys[2], (1, num_patches + 1, dim), 1.0),
        "cls_token": nrm(keys[3], (1, 1, dim), 1.0),
        "head_g": jnp.ones((1, dim), jnp.float32),
        "head_b": jnp.zeros((1, dim), jnp.float32),
        "head_w": nrm(keys[4], (dim, num_classes), dtype=jnp.bfloat16),
        "head_bo": nrm(keys[5], (1, num_classes)),
        "layers": [],
    }
    for i in range(depth):
        lk = jax.random.split(keys[6 + i], 8)
        wq = jax.random.normal(lk[0], (dim, dim), jnp.float32) * 0.02
        wk = jax.random.normal(lk[1], (dim, dim), jnp.float32) * 0.02
        wv = jax.random.normal(lk[2], (dim, dim), jnp.float32) * 0.02
        # Fused QKV weight; the attention scale is folded into the Wq block
        # (mathematically identical to multiplying the score matrix by `scale`).
        wqkv = jnp.concatenate([wq * scale, wk, wv], axis=1).astype(jnp.bfloat16)
        params["layers"].append({
            "g1": jnp.ones((1, dim), jnp.float32), "b1": jnp.zeros((1, dim), jnp.float32),
            "wqkv": wqkv,
            "wo": nrm(lk[3], (dim, dim), dtype=jnp.bfloat16), "bo": nrm(lk[4], (1, dim)),
            "g2": jnp.ones((1, dim), jnp.float32), "b2": jnp.zeros((1, dim), jnp.float32),
            "w1": nrm(lk[5], (dim, mlp_dim), dtype=jnp.bfloat16), "bm1": nrm(lk[6], (1, mlp_dim)),
            "w2": nrm(lk[7], (mlp_dim, dim), dtype=jnp.bfloat16), "bm2": jnp.zeros((1, dim), jnp.float32),
        })
    return params


if __name__ == "__main__":
    # small but lane/sublane-friendly config: D and mlp_dim multiples of 128,
    # tokens (16 patches + cls = 17) padded to 24 inside the model.
    cfg = dict(img_size=16, patch_size=4, num_classes=16,
               dim=128, depth=2, heads=4, mlp_dim=256)

    key = jax.random.PRNGKey(0)
    k_x, k_p = jax.random.split(key)
    x = jax.random.normal(k_x, (2, 3, cfg["img_size"], cfg["img_size"]), jnp.float32)
    params = init_params(k_p, **cfg)

    fwd = jax.jit(functools.partial(vit_forward,
                                    patch_size=cfg["patch_size"], heads=cfg["heads"]))
    out = fwd(x, params)
    out = jax.block_until_ready(out)

    assert out.shape == (2, cfg["num_classes"]), out.shape
    assert bool(jnp.all(jnp.isfinite(out)))
    print("KERNEL_OK")
</pallas_src>

<mosaic_0001>
module attributes {stable_mosaic.version = 11 : i64} {
  func.func @attn_block_kernel(%arg0: i32, %arg1: memref<1x24x128xf32, #tpu.memory_space<vmem>>, %arg2: memref<1x128xf32, #tpu.memory_space<vmem>>, %arg3: memref<1x128xf32, #tpu.memory_space<vmem>>, %arg4: memref<128x384xbf16, #tpu.memory_space<vmem>>, %arg5: memref<128x128xbf16, #tpu.memory_space<vmem>>, %arg6: memref<1x128xf32, #tpu.memory_space<vmem>>, %arg7: memref<1x24x128xf32, #tpu.memory_space<vmem>>) attributes {dimension_semantics = [#tpu.dimension_semantics<parallel>], iteration_bounds = array<i64: 2>, scalar_prefetch = 0 : i64, scratch_operands = 0 : i64, tpu.core_type = #tpu.core_type<tc>, window_params = [{transform_indices = @transform_0, window_bounds = array<i64: 1, 24, 128>}, {pipeline_mode = #tpu.pipeline_mode<synchronous>, transform_indices = @transform_1, window_bounds = array<i64: 1, 128>}, {pipeline_mode = #tpu.pipeline_mode<synchronous>, transform_indices = @transform_2, window_bounds = array<i64: 1, 128>}, {pipeline_mode = #tpu.pipeline_mode<synchronous>, transform_indices = @transform_3, window_bounds = array<i64: 128, 384>}, {pipeline_mode = #tpu.pipeline_mode<synchronous>, transform_indices = @transform_4, window_bounds = array<i64: 128, 128>}, {pipeline_mode = #tpu.pipeline_mode<synchronous>, transform_indices = @transform_5, window_bounds = array<i64: 1, 128>}, {transform_indices = @transform_6, window_bounds = array<i64: 1, 24, 128>}]} {
    %c0 = arith.constant 0 : index
    %c0_0 = arith.constant 0 : index
    %c0_1 = arith.constant 0 : index
    %0 = vector.load %arg1[%c0, %c0_0, %c0_1] : memref<1x24x128xf32, #tpu.memory_space<vmem>>, vector<1x24x128xf32>
    %1 = vector.shape_cast %0 : vector<1x24x128xf32> to vector<24x128xf32>
    %c0_2 = arith.constant 0 : index
    %c0_3 = arith.constant 0 : index
    %2 = vector.load %arg2[%c0_2, %c0_3] : memref<1x128xf32, #tpu.memory_space<vmem>>, vector<1x128xf32>
    %c0_4 = arith.constant 0 : index
    %c0_5 = arith.constant 0 : index
    %3 = vector.load %arg3[%c0_4, %c0_5] : memref<1x128xf32, #tpu.memory_space<vmem>>, vector<1x128xf32>
    %cst = arith.constant dense<0.000000e+00> : vector<24xf32>
    %4 = vector.multi_reduction <add>, %1, %cst [1] : vector<24x128xf32> to vector<24xf32>
    %5 = vector.shape_cast %4 : vector<24xf32> to vector<24x1xf32>
    %cst_6 = arith.constant 1.280000e+02 : f32
    %6 = vector.broadcast %cst_6 : f32 to vector<24x1xf32>
    %7 = arith.divf %5, %6 : vector<24x1xf32>
    %8 = vector.broadcast %7 : vector<24x1xf32> to vector<24x128xf32>
    %9 = arith.subf %1, %8 : vector<24x128xf32>
    %10 = arith.mulf %9, %9 : vector<24x128xf32>
    %cst_7 = arith.constant dense<0.000000e+00> : vector<24xf32>
    %11 = vector.multi_reduction <add>, %10, %cst_7 [1] : vector<24x128xf32> to vector<24xf32>
    %12 = vector.shape_cast %11 : vector<24xf32> to vector<24x1xf32>
    %cst_8 = arith.constant 1.280000e+02 : f32
    %13 = vector.broadcast %cst_8 : f32 to vector<24x1xf32>
    %14 = arith.divf %12, %13 : vector<24x1xf32>
    %cst_9 = arith.constant 9.99999974E-6 : f32
    %15 = vector.broadcast %cst_9 : f32 to vector<24x1xf32>
    %16 = arith.addf %14, %15 : vector<24x1xf32>
    %17 = math.rsqrt %16 : vector<24x1xf32>
    %18 = vector.broadcast %17 : vector<24x1xf32> to vector<24x128xf32>
    %19 = arith.mulf %9, %18 : vector<24x128xf32>
    %20 = vector.broadcast %2 : vector<1x128xf32> to vector<24x128xf32>
    %21 = arith.mulf %19, %20 : vector<24x128xf32>
    %22 = vector.broadcast %3 : vector<1x128xf32> to vector<24x128xf32>
    %23 = arith.addf %21, %22 : vector<24x128xf32>
    %24 = arith.truncf %23 : vector<24x128xf32> to vector<24x128xbf16>
    %c0_10 = arith.constant 0 : index
    %c0_11 = arith.constant 0 : index
    %25 = vector.load %arg4[%c0_10, %c0_11] : memref<128x384xbf16, #tpu.memory_space<vmem>>, vector<128x384xbf16>
    %cst_12 = arith.constant dense<0.000000e+00> : vector<24x384xf32>
    %26 = tpu.matmul %24, %25, %cst_12 {dimension_numbers = #tpu.dot_dimension_numbers<[1], [0], [0], [1], [0, 0, 1, 1], [], []>} : vector<24x128xbf16>, vector<128x384xbf16>, vector<24x384xf32> -> vector<24x384xf32>
    %27 = vector.extract_strided_slice %26 {offsets = [0, 0], sizes = [24, 128], strides = [1, 1]} : vector<24x384xf32> to vector<24x128xf32>
    %28 = arith.truncf %27 : vector<24x128xf32> to vector<24x128xbf16>
    %29 = vector.extract_strided_slice %26 {offsets = [0, 128], sizes = [24, 128], strides = [1, 1]} : vector<24x384xf32> to vector<24x128xf32>
    %30 = arith.truncf %29 : vector<24x128xf32> to vector<24x128xbf16>
    %31 = vector.extract_strided_slice %26 {offsets = [0, 256], sizes = [24, 128], strides = [1, 1]} : vector<24x384xf32> to vector<24x128xf32>
    %32 = arith.truncf %31 : vector<24x128xf32> to vector<24x128xbf16>
    %33 = tpu.iota {dimensions = array<i32: 1>} : vector<1x24xi32>
    %c17_i32 = arith.constant 17 : i32
    %34 = vector.broadcast %c17_i32 : i32 to vector<1x24xi32>
    %35 = arith.cmpi slt, %33, %34 : vector<1x24xi32>
    %cst_13 = arith.constant 0.000000e+00 : f32
    %cst_14 = arith.constant -1.000000e+30 : f32
    %36 = vector.broadcast %cst_13 : f32 to vector<1x24xf32>
    %37 = vector.broadcast %cst_14 : f32 to vector<1x24xf32>
    %38 = arith.select %35, %36, %37 : vector<1x24xi1>, vector<1x24xf32>
    %39 = vector.extract_strided_slice %28 {offsets = [0, 0], sizes = [24, 32], strides = [1, 1]} : vector<24x128xbf16> to vector<24x32xbf16>
    %40 = vector.extract_strided_slice %30 {offsets = [0, 0], sizes = [24, 32], strides = [1, 1]} : vector<24x128xbf16> to vector<24x32xbf16>
    %41 = vector.extract_strided_slice %32 {offsets = [0, 0], sizes = [24, 32], strides = [1, 1]} : vector<24x128xbf16> to vector<24x32xbf16>
    %cst_15 = arith.constant dense<0.000000e+00> : vector<24x24xf32>
    %42 = tpu.matmul %39, %40, %cst_15 {dimension_numbers = #tpu.dot_dimension_numbers<[1], [1], [0], [0], [0, 0, 1, 0], [], []>} : vector<24x32xbf16>, vector<24x32xbf16>, vector<24x24xf32> -> vector<24x24xf32>
    %43 = vector.broadcast %38 : vector<1x24xf32> to vector<24x24xf32>
    %44 = arith.addf %42, %43 : vector<24x24xf32>
    %cst_16 = arith.constant dense<0xFF800000> : vector<24xf32>
    %45 = vector.multi_reduction <maximumf>, %44, %cst_16 [1] : vector<24x24xf32> to vector<24xf32>
    %46 = vector.shape_cast %45 : vector<24xf32> to vector<24x1xf32>
    %47 = vector.broadcast %46 : vector<24x1xf32> to vector<24x24xf32>
    %48 = arith.subf %44, %47 : vector<24x24xf32>
    %49 = math.exp %48 : vector<24x24xf32>
    %cst_17 = arith.constant dense<0.000000e+00> : vector<24xf32>
    %50 = vector.multi_reduction <add>, %49, %cst_17 [1] : vector<24x24xf32> to vector<24xf32>
    %51 = vector.shape_cast %50 : vector<24xf32> to vector<24x1xf32>
    %52 = tpu.reciprocal %51 {approx = true} : vector<24x1xf32> -> vector<24x1xf32>
    %53 = vector.broadcast %52 : vector<24x1xf32> to vector<24x24xf32>
    %54 = arith.mulf %49, %53 : vector<24x24xf32>
    %55 = arith.truncf %54 : vector<24x24xf32> to vector<24x24xbf16>
    %cst_18 = arith.constant dense<0.000000e+00> : vector<24x32xf32>
    %56 = tpu.matmul %55, %41, %cst_18 {dimension_numbers = #tpu.dot_dimension_numbers<[1], [0], [0], [1], [0, 0, 1, 1], [], []>} : vector<24x24xbf16>, vector<24x32xbf16>, vector<24x32xf32> -> vector<24x32xf32>
    %57 = vector.extract_strided_slice %28 {offsets = [0, 32], sizes = [24, 32], strides = [1, 1]} : vector<24x128xbf16> to vector<24x32xbf16>
    %58 = vector.extract_strided_slice %30 {offsets = [0, 32], sizes = [24, 32], strides = [1, 1]} : vector<24x128xbf16> to vector<24x32xbf16>
    %59 = vector.extract_strided_slice %32 {offsets = [0, 32], sizes = [24, 32], strides = [1, 1]} : vector<24x128xbf16> to vector<24x32xbf16>
    %cst_19 = arith.constant dense<0.000000e+00> : vector<24x24xf32>
    %60 = tpu.matmul %57, %58, %cst_19 {dimension_numbers = #tpu.dot_dimension_numbers<[1], [1], [0], [0], [0, 0, 1, 0], [], []>} : vector<24x32xbf16>, vector<24x32xbf16>, vector<24x24xf32> -> vector<24x24xf32>
    %61 = vector.broadcast %38 : vector<1x24xf32> to vector<24x24xf32>
    %62 = arith.addf %60, %61 : vector<24x24xf32>
    %cst_20 = arith.constant dense<0xFF800000> : vector<24xf32>
    %63 = vector.multi_reduction <maximumf>, %62, %cst_20 [1] : vector<24x24xf32> to vector<24xf32>
    %64 = vector.shape_cast %63 : vector<24xf32> to vector<24x1xf32>
    %65 = vector.broadcast %64 : vector<24x1xf32> to vector<24x24xf32>
    %66 = arith.subf %62, %65 : vector<24x24xf32>
    %67 = math.exp %66 : vector<24x24xf32>
    %cst_21 = arith.constant dense<0.000000e+00> : vector<24xf32>
    %68 = vector.multi_reduction <add>, %67, %cst_21 [1] : vector<24x24xf32> to vector<24xf32>
    %69 = vector.shape_cast %68 : vector<24xf32> to vector<24x1xf32>
    %70 = tpu.reciprocal %69 {approx = true} : vector<24x1xf32> -> vector<24x1xf32>
    %71 = vector.broadcast %70 : vector<24x1xf32> to vector<24x24xf32>
    %72 = arith.mulf %67, %71 : vector<24x24xf32>
    %73 = arith.truncf %72 : vector<24x24xf32> to vector<24x24xbf16>
    %cst_22 = arith.constant dense<0.000000e+00> : vector<24x32xf32>
    %74 = tpu.matmul %73, %59, %cst_22 {dimension_numbers = #tpu.dot_dimension_numbers<[1], [0], [0], [1], [0, 0, 1, 1], [], []>} : vector<24x24xbf16>, vector<24x32xbf16>, vector<24x32xf32> -> vector<24x32xf32>
    %75 = vector.extract_strided_slice %28 {offsets = [0, 64], sizes = [24, 32], strides = [1, 1]} : vector<24x128xbf16> to vector<24x32xbf16>
    %76 = vector.extract_strided_slice %30 {offsets = [0, 64], sizes = [24, 32], strides = [1, 1]} : vector<24x128xbf16> to vector<24x32xbf16>
    %77 = vector.extract_strided_slice %32 {offsets = [0, 64], sizes = [24, 32], strides = [1, 1]} : vector<24x128xbf16> to vector<24x32xbf16>
    %cst_23 = arith.constant dense<0.000000e+00> : vector<24x24xf32>
    %78 = tpu.matmul %75, %76, %cst_23 {dimension_numbers = #tpu.dot_dimension_numbers<[1], [1], [0], [0], [0, 0, 1, 0], [], []>} : vector<24x32xbf16>, vector<24x32xbf16>, vector<24x24xf32> -> vector<24x24xf32>
    %79 = vector.broadcast %38 : vector<1x24xf32> to vector<24x24xf32>
    %80 = arith.addf %78, %79 : vector<24x24xf32>
    %cst_24 = arith.constant dense<0xFF800000> : vector<24xf32>
    %81 = vector.multi_reduction <maximumf>, %80, %cst_24 [1] : vector<24x24xf32> to vector<24xf32>
    %82 = vector.shape_cast %81 : vector<24xf32> to vector<24x1xf32>
    %83 = vector.broadcast %82 : vector<24x1xf32> to vector<24x24xf32>
    %84 = arith.subf %80, %83 : vector<24x24xf32>
    %85 = math.exp %84 : vector<24x24xf32>
    %cst_25 = arith.constant dense<0.000000e+00> : vector<24xf32>
    %86 = vector.multi_reduction <add>, %85, %cst_25 [1] : vector<24x24xf32> to vector<24xf32>
    %87 = vector.shape_cast %86 : vector<24xf32> to vector<24x1xf32>
    %88 = tpu.reciprocal %87 {approx = true} : vector<24x1xf32> -> vector<24x1xf32>
    %89 = vector.broadcast %88 : vector<24x1xf32> to vector<24x24xf32>
    %90 = arith.mulf %85, %89 : vector<24x24xf32>
    %91 = arith.truncf %90 : vector<24x24xf32> to vector<24x24xbf16>
    %cst_26 = arith.constant dense<0.000000e+00> : vector<24x32xf32>
    %92 = tpu.matmul %91, %77, %cst_26 {dimension_numbers = #tpu.dot_dimension_numbers<[1], [0], [0], [1], [0, 0, 1, 1], [], []>} : vector<24x24xbf16>, vector<24x32xbf16>, vector<24x32xf32> -> vector<24x32xf32>
    %93 = vector.extract_strided_slice %28 {offsets = [0, 96], sizes = [24, 32], strides = [1, 1]} : vector<24x128xbf16> to vector<24x32xbf16>
    %94 = vector.extract_strided_slice %30 {offsets = [0, 96], sizes = [24, 32], strides = [1, 1]} : vector<24x128xbf16> to vector<24x32xbf16>
    %95 = vector.extract_strided_slice %32 {offsets = [0, 96], sizes = [24, 32], strides = [1, 1]} : vector<24x128xbf16> to vector<24x32xbf16>
    %cst_27 = arith.constant dense<0.000000e+00> : vector<24x24xf32>
    %96 = tpu.matmul %93, %94, %cst_27 {dimension_numbers = #tpu.dot_dimension_numbers<[1], [1], [0], [0], [0, 0, 1, 0], [], []>} : vector<24x32xbf16>, vector<24x32xbf16>, vector<24x24xf32> -> vector<24x24xf32>
    %97 = vector.broadcast %38 : vector<1x24xf32> to vector<24x24xf32>
    %98 = arith.addf %96, %97 : vector<24x24xf32>
    %cst_28 = arith.constant dense<0xFF800000> : vector<24xf32>
    %99 = vector.multi_reduction <maximumf>, %98, %cst_28 [1] : vector<24x24xf32> to vector<24xf32>
    %100 = vector.shape_cast %99 : vector<24xf32> to vector<24x1xf32>
    %101 = vector.broadcast %100 : vector<24x1xf32> to vector<24x24xf32>
    %102 = arith.subf %98, %101 : vector<24x24xf32>
    %103 = math.exp %102 : vector<24x24xf32>
    %cst_29 = arith.constant dense<0.000000e+00> : vector<24xf32>
    %104 = vector.multi_reduction <add>, %103, %cst_29 [1] : vector<24x24xf32> to vector<24xf32>
    %105 = vector.shape_cast %104 : vector<24xf32> to vector<24x1xf32>
    %106 = tpu.reciprocal %105 {approx = true} : vector<24x1xf32> -> vector<24x1xf32>
    %107 = vector.broadcast %106 : vector<24x1xf32> to vector<24x24xf32>
    %108 = arith.mulf %103, %107 : vector<24x24xf32>
    %109 = arith.truncf %108 : vector<24x24xf32> to vector<24x24xbf16>
    %cst_30 = arith.constant dense<0.000000e+00> : vector<24x32xf32>
    %110 = tpu.matmul %109, %95, %cst_30 {dimension_numbers = #tpu.dot_dimension_numbers<[1], [0], [0], [1], [0, 0, 1, 1], [], []>} : vector<24x24xbf16>, vector<24x32xbf16>, vector<24x32xf32> -> vector<24x32xf32>
    %111 = tpu.concatenate %56, %74, %92, %110 in 1 : vector<24x32xf32>, vector<24x32xf32>, vector<24x32xf32>, vector<24x32xf32> -> vector<24x128xf32>
    %112 = arith.truncf %111 : vector<24x128xf32> to vector<24x128xbf16>
    %c0_31 = arith.constant 0 : index
    %c0_32 = arith.constant 0 : index
    %113 = vector.load %arg5[%c0_31, %c0_32] : memref<128x128xbf16, #tpu.memory_space<vmem>>, vector<128x128xbf16>
    %cst_33 = arith.constant dense<0.000000e+00> : vector<24x128xf32>
    %114 = tpu.matmul %112, %113, %cst_33 {dimension_numbers = #tpu.dot_dimension_numbers<[1], [0], [0], [1], [0, 0, 1, 1], [], []>} : vector<24x128xbf16>, vector<128x128xbf16>, vector<24x128xf32> -> vector<24x128xf32>
    %115 = arith.addf %1, %114 : vector<24x128xf32>
    %c0_34 = arith.constant 0 : index
    %c0_35 = arith.constant 0 : index
    %116 = vector.load %arg6[%c0_34, %c0_35] : memref<1x128xf32, #tpu.memory_space<vmem>>, vector<1x128xf32>
    %117 = vector.broadcast %116 : vector<1x128xf32> to vector<24x128xf32>
    %118 = arith.addf %115, %117 : vector<24x128xf32>
    %c0_36 = arith.constant 0 : index
    %c0_37 = arith.constant 0 : index
    %c0_38 = arith.constant 0 : index
    %119 = vector.load %arg7[%c0_36, %c0_37, %c0_38] : memref<1x24x128xf32, #tpu.memory_space<vmem>>, vector<1x24x128xf32>
    %120 = vector.shape_cast %119 : vector<1x24x128xf32> to vector<24x128xf32>
    %121 = vector.shape_cast %118 : vector<24x128xf32> to vector<1x24x128xf32>
    tpu.vector_store %arg7[%c0_36, %c0_37, %c0_38], %121 {strides = array<i32>} : memref<1x24x128xf32, #tpu.memory_space<vmem>>, vector<1x24x128xf32>,
    return
  }
  func.func @transform_0(%arg0: i32) -> (i32, i32, i32) {
    %c0_i32 = arith.constant 0 : i32
    %c0_i32_0 = arith.constant 0 : i32
    %c0_i32_1 = arith.constant 0 : i32
    return %arg0, %c0_i32, %c0_i32_0 : i32, i32, i32
  }
  func.func @transform_1(%arg0: i32) -> (i32, i32) {
    %c0_i32 = arith.constant 0 : i32
    %c0_i32_0 = arith.constant 0 : i32
    %c0_i32_1 = arith.constant 0 : i32
    return %c0_i32, %c0_i32_0 : i32, i32
  }
  func.func @transform_2(%arg0: i32) -> (i32, i32) {
    %c0_i32 = arith.constant 0 : i32
    %c0_i32_0 = arith.constant 0 : i32
    %c0_i32_1 = arith.constant 0 : i32
    return %c0_i32, %c0_i32_0 : i32, i32
  }
  func.func @transform_3(%arg0: i32) -> (i32, i32) {
    %c0_i32 = arith.constant 0 : i32
    %c0_i32_0 = arith.constant 0 : i32
    %c0_i32_1 = arith.constant 0 : i32
    return %c0_i32, %c0_i32_0 : i32, i32
  }
  func.func @transform_4(%arg0: i32) -> (i32, i32) {
    %c0_i32 = arith.constant 0 : i32
    %c0_i32_0 = arith.constant 0 : i32
    %c0_i32_1 = arith.constant 0 : i32
    return %c0_i32, %c0_i32_0 : i32, i32
  }
  func.func @transform_5(%arg0: i32) -> (i32, i32) {
    %c0_i32 = arith.constant 0 : i32
    %c0_i32_0 = arith.constant 0 : i32
    %c0_i32_1 = arith.constant 0 : i32
    return %c0_i32, %c0_i32_0 : i32, i32
  }
  func.func @transform_6(%arg0: i32) -> (i32, i32, i32) {
    %c0_i32 = arith.constant 0 : i32
    %c0_i32_0 = arith.constant 0 : i32
    %c0_i32_1 = arith.constant 0 : i32
    return %arg0, %c0_i32, %c0_i32_0 : i32, i32, i32
  }
}

module attributes {stable_mosaic.version = 11 : i64} {
  func.func @patch_embed_kernel(%arg0: i32, %arg1: memref<32x48xbf16, #tpu.memory_space<vmem>>, %arg2: memref<48x128xbf16, #tpu.memory_space<vmem>>, %arg3: memref<1x128xf32, #tpu.memory_space<vmem>>, %arg4: memref<32x128xf32, #tpu.memory_space<vmem>>) attributes {dimension_semantics = [#tpu.dimension_semantics<parallel>], iteration_bounds = array<i64: 1>, scalar_prefetch = 0 : i64, scratch_operands = 0 : i64, tpu.core_type = #tpu.core_type<tc>, window_params = [{transform_indices = @transform_0, window_bounds = array<i64: 32, 48>}, {pipeline_mode = #tpu.pipeline_mode<synchronous>, transform_indices = @transform_1, window_bounds = array<i64: 48, 128>}, {pipeline_mode = #tpu.pipeline_mode<synchronous>, transform_indices = @transform_2, window_bounds = array<i64: 1, 128>}, {transform_indices = @transform_3, window_bounds = array<i64: 32, 128>}]} {
    %c0 = arith.constant 0 : index
    %c0_0 = arith.constant 0 : index
    %0 = vector.load %arg1[%c0, %c0_0] : memref<32x48xbf16, #tpu.memory_space<vmem>>, vector<32x48xbf16>
    %c0_1 = arith.constant 0 : index
    %c0_2 = arith.constant 0 : index
    %1 = vector.load %arg2[%c0_1, %c0_2] : memref<48x128xbf16, #tpu.memory_space<vmem>>, vector<48x128xbf16>
    %cst = arith.constant dense<0.000000e+00> : vector<32x128xf32>
    %2 = tpu.matmul %0, %1, %cst {dimension_numbers = #tpu.dot_dimension_numbers<[1], [0], [0], [1], [0, 0, 1, 1], [], []>} : vector<32x48xbf16>, vector<48x128xbf16>, vector<32x128xf32> -> vector<32x128xf32>
    %c0_3 = arith.constant 0 : index
    %c0_4 = arith.constant 0 : index
    %3 = vector.load %arg3[%c0_3, %c0_4] : memref<1x128xf32, #tpu.memory_space<vmem>>, vector<1x128xf32>
    %4 = vector.broadcast %3 : vector<1x128xf32> to vector<32x128xf32>
    %5 = arith.addf %2, %4 : vector<32x128xf32>
    %c0_5 = arith.constant 0 : index
    %c0_6 = arith.constant 0 : index
    %6 = vector.load %arg4[%c0_5, %c0_6] : memref<32x128xf32, #tpu.memory_space<vmem>>, vector<32x128xf32>
    tpu.vector_store %arg4[%c0_5, %c0_6], %5 {strides = array<i32>} : memref<32x128xf32, #tpu.memory_space<vmem>>, vector<32x128xf32>,
    return
  }
  func.func @transform_0(%arg0: i32) -> (i32, i32) {
    %c0_i32 = arith.constant 0 : i32
    %c0_i32_0 = arith.constant 0 : i32
    return %arg0, %c0_i32 : i32, i32
  }
  func.func @transform_1(%arg0: i32) -> (i32, i32) {
    %c0_i32 = arith.constant 0 : i32
    %c0_i32_0 = arith.constant 0 : i32
    %c0_i32_1 = arith.constant 0 : i32
    return %c0_i32, %c0_i32_0 : i32, i32
  }
  func.func @transform_2(%arg0: i32) -> (i32, i32) {
    %c0_i32 = arith.constant 0 : i32
    %c0_i32_0 = arith.constant 0 : i32
    %c0_i32_1 = arith.constant 0 : i32
    return %c0_i32, %c0_i32_0 : i32, i32
  }
  func.func @transform_3(%arg0: i32) -> (i32, i32) {
    %c0_i32 = arith.constant 0 : i32
    %c0_i32_0 = arith.constant 0 : i32
    return %arg0, %c0_i32 : i32, i32
  }
}

module attributes {stable_mosaic.version = 11 : i64} {
  func.func @mlp_block_kernel(%arg0: i32, %arg1: memref<24x128xf32, #tpu.memory_space<vmem>>, %arg2: memref<1x128xf32, #tpu.memory_space<vmem>>, %arg3: memref<1x128xf32, #tpu.memory_space<vmem>>, %arg4: memref<128x256xbf16, #tpu.memory_space<vmem>>, %arg5: memref<1x256xf32, #tpu.memory_space<vmem>>, %arg6: memref<256x128xbf16, #tpu.memory_space<vmem>>, %arg7: memref<1x128xf32, #tpu.memory_space<vmem>>, %arg8: memref<24x128xf32, #tpu.memory_space<vmem>>) attributes {dimension_semantics = [#tpu.dimension_semantics<parallel>], iteration_bounds = array<i64: 2>, scalar_prefetch = 0 : i64, scratch_operands = 0 : i64, tpu.core_type = #tpu.core_type<tc>, window_params = [{transform_indices = @transform_0, window_bounds = array<i64: 24, 128>}, {pipeline_mode = #tpu.pipeline_mode<synchronous>, transform_indices = @transform_1, window_bounds = array<i64: 1, 128>}, {pipeline_mode = #tpu.pipeline_mode<synchronous>, transform_indices = @transform_2, window_bounds = array<i64: 1, 128>}, {pipeline_mode = #tpu.pipeline_mode<synchronous>, transform_indices = @transform_3, window_bounds = array<i64: 128, 256>}, {pipeline_mode = #tpu.pipeline_mode<synchronous>, transform_indices = @transform_4, window_bounds = array<i64: 1, 256>}, {pipeline_mode = #tpu.pipeline_mode<synchronous>, transform_indices = @transform_5, window_bounds = array<i64: 256, 128>}, {pipeline_mode = #tpu.pipeline_mode<synchronous>, transform_indices = @transform_6, window_bounds = array<i64: 1, 128>}, {transform_indices = @transform_7, window_bounds = array<i64: 24, 128>}]} {
    %c0 = arith.constant 0 : index
    %c0_0 = arith.constant 0 : index
    %0 = vector.load %arg1[%c0, %c0_0] : memref<24x128xf32, #tpu.memory_space<vmem>>, vector<24x128xf32>
    %c0_1 = arith.constant 0 : index
    %c0_2 = arith.constant 0 : index
    %1 = vector.load %arg2[%c0_1, %c0_2] : memref<1x128xf32, #tpu.memory_space<vmem>>, vector<1x128xf32>
    %c0_3 = arith.constant 0 : index
    %c0_4 = arith.constant 0 : index
    %2 = vector.load %arg3[%c0_3, %c0_4] : memref<1x128xf32, #tpu.memory_space<vmem>>, vector<1x128xf32>
    %cst = arith.constant dense<0.000000e+00> : vector<24xf32>
    %3 = vector.multi_reduction <add>, %0, %cst [1] : vector<24x128xf32> to vector<24xf32>
    %4 = vector.shape_cast %3 : vector<24xf32> to vector<24x1xf32>
    %cst_5 = arith.constant 1.280000e+02 : f32
    %5 = vector.broadcast %cst_5 : f32 to vector<24x1xf32>
    %6 = arith.divf %4, %5 : vector<24x1xf32>
    %7 = vector.broadcast %6 : vector<24x1xf32> to vector<24x128xf32>
    %8 = arith.subf %0, %7 : vector<24x128xf32>
    %9 = arith.mulf %8, %8 : vector<24x128xf32>
    %cst_6 = arith.constant dense<0.000000e+00> : vector<24xf32>
    %10 = vector.multi_reduction <add>, %9, %cst_6 [1] : vector<24x128xf32> to vector<24xf32>
    %11 = vector.shape_cast %10 : vector<24xf32> to vector<24x1xf32>
    %cst_7 = arith.constant 1.280000e+02 : f32
    %12 = vector.broadcast %cst_7 : f32 to vector<24x1xf32>
    %13 = arith.divf %11, %12 : vector<24x1xf32>
    %cst_8 = arith.constant 9.99999974E-6 : f32
    %14 = vector.broadcast %cst_8 : f32 to vector<24x1xf32>
    %15 = arith.addf %13, %14 : vector<24x1xf32>
    %16 = math.rsqrt %15 : vector<24x1xf32>
    %17 = vector.broadcast %16 : vector<24x1xf32> to vector<24x128xf32>
    %18 = arith.mulf %8, %17 : vector<24x128xf32>
    %19 = vector.broadcast %1 : vector<1x128xf32> to vector<24x128xf32>
    %20 = arith.mulf %18, %19 : vector<24x128xf32>
    %21 = vector.broadcast %2 : vector<1x128xf32> to vector<24x128xf32>
    %22 = arith.addf %20, %21 : vector<24x128xf32>
    %23 = arith.truncf %22 : vector<24x128xf32> to vector<24x128xbf16>
    %c0_9 = arith.constant 0 : index
    %c0_10 = arith.constant 0 : index
    %24 = vector.load %arg4[%c0_9, %c0_10] : memref<128x256xbf16, #tpu.memory_space<vmem>>, vector<128x256xbf16>
    %cst_11 = arith.constant dense<0.000000e+00> : vector<24x256xf32>
    %25 = tpu.matmul %23, %24, %cst_11 {dimension_numbers = #tpu.dot_dimension_numbers<[1], [0], [0], [1], [0, 0, 1, 1], [], []>} : vector<24x128xbf16>, vector<128x256xbf16>, vector<24x256xf32> -> vector<24x256xf32>
    %c0_12 = arith.constant 0 : index
    %c0_13 = arith.constant 0 : index
    %26 = vector.load %arg5[%c0_12, %c0_13] : memref<1x256xf32, #tpu.memory_space<vmem>>, vector<1x256xf32>
    %27 = vector.broadcast %26 : vector<1x256xf32> to vector<24x256xf32>
    %28 = arith.addf %25, %27 : vector<24x256xf32>
    %cst_14 = arith.constant 5.000000e-01 : f32
    %29 = vector.broadcast %cst_14 : f32 to vector<24x256xf32>
    %30 = arith.mulf %29, %28 : vector<24x256xf32>
    %cst_15 = arith.constant 4.471500e-02 : f32
    %31 = vector.broadcast %cst_15 : f32 to vector<24x256xf32>
    %32 = arith.mulf %31, %28 : vector<24x256xf32>
    %33 = arith.mulf %32, %28 : vector<24x256xf32>
    %34 = arith.mulf %33, %28 : vector<24x256xf32>
    %35 = arith.addf %28, %34 : vector<24x256xf32>
    %cst_16 = arith.constant 0.797884583 : f32
    %36 = vector.broadcast %cst_16 : f32 to vector<24x256xf32>
    %37 = arith.mulf %36, %35 : vector<24x256xf32>
    %38 = math.tanh %37 : vector<24x256xf32>
    %cst_17 = arith.constant 1.000000e+00 : f32
    %39 = vector.broadcast %cst_17 : f32 to vector<24x256xf32>
    %40 = arith.addf %39, %38 : vector<24x256xf32>
    %41 = arith.mulf %30, %40 : vector<24x256xf32>
    %42 = arith.truncf %41 : vector<24x256xf32> to vector<24x256xbf16>
    %c0_18 = arith.constant 0 : index
    %c0_19 = arith.constant 0 : index
    %43 = vector.load %arg6[%c0_18, %c0_19] : memref<256x128xbf16, #tpu.memory_space<vmem>>, vector<256x128xbf16>
    %cst_20 = arith.constant dense<0.000000e+00> : vector<24x128xf32>
    %44 = tpu.matmul %42, %43, %cst_20 {dimension_numbers = #tpu.dot_dimension_numbers<[1], [0], [0], [1], [0, 0, 1, 1], [], []>} : vector<24x256xbf16>, vector<256x128xbf16>, vector<24x128xf32> -> vector<24x128xf32>
    %c0_21 = arith.constant 0 : index
    %c0_22 = arith.constant 0 : index
    %45 = vector.load %arg7[%c0_21, %c0_22] : memref<1x128xf32, #tpu.memory_space<vmem>>, vector<1x128xf32>
    %46 = vector.broadcast %45 : vector<1x128xf32> to vector<24x128xf32>
    %47 = arith.addf %44, %46 : vector<24x128xf32>
    %48 = arith.addf %0, %47 : vector<24x128xf32>
    %c0_23 = arith.constant 0 : index
    %c0_24 = arith.constant 0 : index
    %49 = vector.load %arg8[%c0_23, %c0_24] : memref<24x128xf32, #tpu.memory_space<vmem>>, vector<24x128xf32>
    tpu.vector_store %arg8[%c0_23, %c0_24], %48 {strides = array<i32>} : memref<24x128xf32, #tpu.memory_space<vmem>>, vector<24x128xf32>,
    return
  }
  func.func @transform_0(%arg0: i32) -> (i32, i32) {
    %c0_i32 = arith.constant 0 : i32
    %c0_i32_0 = arith.constant 0 : i32
    return %arg0, %c0_i32 : i32, i32
  }
  func.func @transform_1(%arg0: i32) -> (i32, i32) {
    %c0_i32 = arith.constant 0 : i32
    %c0_i32_0 = arith.constant 0 : i32
    %c0_i32_1 = arith.constant 0 : i32
    return %c0_i32, %c0_i32_0 : i32, i32
  }
  func.func @transform_2(%arg0: i32) -> (i32, i32) {
    %c0_i32 = arith.constant 0 : i32
    %c0_i32_0 = arith.constant 0 : i32
    %c0_i32_1 = arith.constant 0 : i32
    return %c0_i32, %c0_i32_0 : i32, i32
  }
  func.func @transform_3(%arg0: i32) -> (i32, i32) {
    %c0_i32 = arith.constant 0 : i32
    %c0_i32_0 = arith.constant 0 : i32
    %c0_i32_1 = arith.constant 0 : i32
    return %c0_i32, %c0_i32_0 : i32, i32
  }
  func.func @transform_4(%arg0: i32) -> (i32, i32) {
    %c0_i32 = arith.constant 0 : i32
    %c0_i32_0 = arith.constant 0 : i32
    %c0_i32_1 = arith.constant 0 : i32
    return %c0_i32, %c0_i32_0 : i32, i32
  }
  func.func @transform_5(%arg0: i32) -> (i32, i32) {
    %c0_i32 = arith.constant 0 : i32
    %c0_i32_0 = arith.constant 0 : i32
    %c0_i32_1 = arith.constant 0 : i32
    return %c0_i32, %c0_i32_0 : i32, i32
  }
  func.func @transform_6(%arg0: i32) -> (i32, i32) {
    %c0_i32 = arith.constant 0 : i32
    %c0_i32_0 = arith.constant 0 : i32
    %c0_i32_1 = arith.constant 0 : i32
    return %c0_i32, %c0_i32_0 : i32, i32
  }
  func.func @transform_7(%arg0: i32) -> (i32, i32) {
    %c0_i32 = arith.constant 0 : i32
    %c0_i32_0 = arith.constant 0 : i32
    return %arg0, %c0_i32 : i32, i32
  }
}

module attributes {stable_mosaic.version = 11 : i64} {
  func.func @head_kernel(%arg0: i32, %arg1: memref<2x128xf32, #tpu.memory_space<vmem>>, %arg2: memref<1x128xf32, #tpu.memory_space<vmem>>, %arg3: memref<1x128xf32, #tpu.memory_space<vmem>>, %arg4: memref<128x16xbf16, #tpu.memory_space<vmem>>, %arg5: memref<1x16xf32, #tpu.memory_space<vmem>>, %arg6: memref<2x16xf32, #tpu.memory_space<vmem>>) attributes {dimension_semantics = [#tpu.dimension_semantics<arbitrary>], iteration_bounds = array<i64: 1>, scalar_prefetch = 0 : i64, scratch_operands = 0 : i64, tpu.core_type = #tpu.core_type<tc>, window_params = [{pipeline_mode = #tpu.pipeline_mode<synchronous>, transform_indices = @transform_0, window_bounds = array<i64: 2, 128>}, {pipeline_mode = #tpu.pipeline_mode<synchronous>, transform_indices = @transform_1, window_bounds = array<i64: 1, 128>}, {pipeline_mode = #tpu.pipeline_mode<synchronous>, transform_indices = @transform_2, window_bounds = array<i64: 1, 128>}, {pipeline_mode = #tpu.pipeline_mode<synchronous>, transform_indices = @transform_3, window_bounds = array<i64: 128, 16>}, {pipeline_mode = #tpu.pipeline_mode<synchronous>, transform_indices = @transform_4, window_bounds = array<i64: 1, 16>}, {pipeline_mode = #tpu.pipeline_mode<synchronous>, transform_indices = @transform_5, window_bounds = array<i64: 2, 16>}]} {
    %c0 = arith.constant 0 : index
    %c0_0 = arith.constant 0 : index
    %0 = vector.load %arg1[%c0, %c0_0] : memref<2x128xf32, #tpu.memory_space<vmem>>, vector<2x128xf32>
    %c0_1 = arith.constant 0 : index
    %c0_2 = arith.constant 0 : index
    %1 = vector.load %arg2[%c0_1, %c0_2] : memref<1x128xf32, #tpu.memory_space<vmem>>, vector<1x128xf32>
    %c0_3 = arith.constant 0 : index
    %c0_4 = arith.constant 0 : index
    %2 = vector.load %arg3[%c0_3, %c0_4] : memref<1x128xf32, #tpu.memory_space<vmem>>, vector<1x128xf32>
    %cst = arith.constant dense<0.000000e+00> : vector<2xf32>
    %3 = vector.multi_reduction <add>, %0, %cst [1] : vector<2x128xf32> to vector<2xf32>
    %4 = vector.shape_cast %3 : vector<2xf32> to vector<2x1xf32>
    %cst_5 = arith.constant 1.280000e+02 : f32
    %5 = vector.broadcast %cst_5 : f32 to vector<2x1xf32>
    %6 = arith.divf %4, %5 : vector<2x1xf32>
    %7 = vector.broadcast %6 : vector<2x1xf32> to vector<2x128xf32>
    %8 = arith.subf %0, %7 : vector<2x128xf32>
    %9 = arith.mulf %8, %8 : vector<2x128xf32>
    %cst_6 = arith.constant dense<0.000000e+00> : vector<2xf32>
    %10 = vector.multi_reduction <add>, %9, %cst_6 [1] : vector<2x128xf32> to vector<2xf32>
    %11 = vector.shape_cast %10 : vector<2xf32> to vector<2x1xf32>
    %cst_7 = arith.constant 1.280000e+02 : f32
    %12 = vector.broadcast %cst_7 : f32 to vector<2x1xf32>
    %13 = arith.divf %11, %12 : vector<2x1xf32>
    %cst_8 = arith.constant 9.99999974E-6 : f32
    %14 = vector.broadcast %cst_8 : f32 to vector<2x1xf32>
    %15 = arith.addf %13, %14 : vector<2x1xf32>
    %16 = math.rsqrt %15 : vector<2x1xf32>
    %17 = vector.broadcast %16 : vector<2x1xf32> to vector<2x128xf32>
    %18 = arith.mulf %8, %17 : vector<2x128xf32>
    %19 = vector.broadcast %1 : vector<1x128xf32> to vector<2x128xf32>
    %20 = arith.mulf %18, %19 : vector<2x128xf32>
    %21 = vector.broadcast %2 : vector<1x128xf32> to vector<2x128xf32>
    %22 = arith.addf %20, %21 : vector<2x128xf32>
    %23 = arith.truncf %22 : vector<2x128xf32> to vector<2x128xbf16>
    %c0_9 = arith.constant 0 : index
    %c0_10 = arith.constant 0 : index
    %24 = vector.load %arg4[%c0_9, %c0_10] : memref<128x16xbf16, #tpu.memory_space<vmem>>, vector<128x16xbf16>
    %cst_11 = arith.constant dense<0.000000e+00> : vector<2x16xf32>
    %25 = tpu.matmul %23, %24, %cst_11 {dimension_numbers = #tpu.dot_dimension_numbers<[1], [0], [0], [1], [0, 0, 1, 1], [], []>} : vector<2x128xbf16>, vector<128x16xbf16>, vector<2x16xf32> -> vector<2x16xf32>
    %c0_12 = arith.constant 0 : index
    %c0_13 = arith.constant 0 : index
    %26 = vector.load %arg5[%c0_12, %c0_13] : memref<1x16xf32, #tpu.memory_space<vmem>>, vector<1x16xf32>
    %27 = vector.broadcast %26 : vector<1x16xf32> to vector<2x16xf32>
    %28 = arith.addf %25, %27 : vector<2x16xf32>
    %c0_14 = arith.constant 0 : index
    %c0_15 = arith.constant 0 : index
    %29 = vector.load %arg6[%c0_14, %c0_15] : memref<2x16xf32, #tpu.memory_space<vmem>>, vector<2x16xf32>
    tpu.vector_store %arg6[%c0_14, %c0_15], %28 {strides = array<i32>} : memref<2x16xf32, #tpu.memory_space<vmem>>, vector<2x16xf32>,
    return
  }
  func.func @transform_0(%arg0: i32) -> (i32, i32) {
    %c0_i32 = arith.constant 0 : i32
    %c0_i32_0 = arith.constant 0 : i32
    %c0_i32_1 = arith.constant 0 : i32
    return %c0_i32, %c0_i32_0 : i32, i32
  }
  func.func @transform_1(%arg0: i32) -> (i32, i32) {
    %c0_i32 = arith.constant 0 : i32
    %c0_i32_0 = arith.constant 0 : i32
    %c0_i32_1 = arith.constant 0 : i32
    return %c0_i32, %c0_i32_0 : i32, i32
  }
  func.func @transform_2(%arg0: i32) -> (i32, i32) {
    %c0_i32 = arith.constant 0 : i32
    %c0_i32_0 = arith.constant 0 : i32
    %c0_i32_1 = arith.constant 0 : i32
    return %c0_i32, %c0_i32_0 : i32, i32
  }
  func.func @transform_3(%arg0: i32) -> (i32, i32) {
    %c0_i32 = arith.constant 0 : i32
    %c0_i32_0 = arith.constant 0 : i32
    %c0_i32_1 = arith.constant 0 : i32
    return %c0_i32, %c0_i32_0 : i32, i32
  }
  func.func @transform_4(%arg0: i32) -> (i32, i32) {
    %c0_i32 = arith.constant 0 : i32
    %c0_i32_0 = arith.constant 0 : i32
    %c0_i32_1 = arith.constant 0 : i32
    return %c0_i32, %c0_i32_0 : i32, i32
  }
  func.func @transform_5(%arg0: i32) -> (i32, i32) {
    %c0_i32 = arith.constant 0 : i32
    %c0_i32_0 = arith.constant 0 : i32
    %c0_i32_1 = arith.constant 0 : i32
    return %c0_i32, %c0_i32_0 : i32, i32
  }
}

</mosaic_0001>

<llo_original>
// kernel: vit_forward.6
$region0: #{vit_forward.6}
  #allocation0 [shape = 'u32[]', space=smem, size = 0x4, offset = 0x4, fixed_abs, tag = 'smem constant byte address 0x4 - core index']
  #allocation1 [shape = 'u32[144,128]{1,0:T(1,128)}', space=vmem, size = 0x12000, scoped, tag = 'internal scratch']
  %s0 = inlined_call_operand.hbm [shape: bf16[32,48], index: 0, kind: input, shape index: {}]
  %s1 = inlined_call_operand.hbm [shape: bf16[48,128], index: 1, kind: input, shape index: {}]
  %s2 = inlined_call_operand.hbm [shape: f32[1,128], index: 2, kind: input, shape index: {}]
  %s3 = inlined_call_operand.hbm [shape: f32[32,128], index: 3, kind: output, shape index: {}]
  %s4 = sld [smem:[#allocation0]]
  $region34: #{vit_forward.6} parent=0
    _
  %s6 = ssub.s32 1, %s4
  %s7 = scalar_select 0, %s6, %s4
  $region1: #{vit_forward.6} parent=0
    #allocation2 [shape = 'u8[8192]{0}', space=vmem, size = 0x2000, scoped, tag = 'input window, operand 0, single buffered']
    #allocation3 [shape = 's32[1]{0}', space=sflag, size = 0x4, scoped, tag = 'scoped memory for vit_forward.6']
    #allocation4 [shape = 's32[1]{0}', space=sflag, size = 0x4, scoped, tag = 'scoped memory for vit_forward.6']
    #allocation5 [shape = 'u8[12288]{0}', space=vmem, size = 0x3000, scoped, tag = 'input window, operand 1, single buffered']
    #allocation6 [shape = 's32[1]{0}', space=sflag, size = 0x4, scoped, tag = 'scoped memory for vit_forward.6']
    #allocation7 [shape = 'u8[512]{0}', space=vmem, size = 0x400, scoped, tag = 'input window, operand 2, single buffered']
    #allocation8 [shape = 'u8[16384]{0}', space=vmem, size = 0x4000, scoped, tag = 'output window, operand 0, single buffered']
    %8 = vsyncpa [#allocation3], 0
    %9 = vsyncpa [#allocation6], 0
    %10 = vsyncpa [#allocation4], 0
    // Predicated region
    $region2: #{vit_forward.6} parent=1 // pred_check
      _
    $region3: #{vit_forward.6} parent=1 // pred_check_branch
      %12 = sbr.rel (0) target = $region5
    $region4: #{vit_forward.6} parent=1 // pred_region
      %s14 = ssub.s32 256, 256
      %15 = vsyncadd [#allocation3], %s14
      %s16 = sshll.u32 [#allocation2], 4
      %s17 = int_to_ptr.vmem [resolvable:$true] %s16
      %22 = dma.hbm_to_vmem [thread:$0]  %s0, 256, %s17, [#allocation3], 64, 64, 4
    $region5: #{vit_forward.6} parent=1 // pred_fallthru
      _
    // Predicated region
    $region6: #{vit_forward.6} parent=1 // pred_check
      _
    $region7: #{vit_forward.6} parent=1 // pred_check_branch
      %24 = sbr.rel (0) target = $region9
    $region8: #{vit_forward.6} parent=1 // pred_region
      %s26 = ssub.s32 384, 384
      %27 = vsyncadd [#allocation6], %s26
      %s28 = sshll.u32 [#allocation5], 4
      %s29 = int_to_ptr.vmem [resolvable:$true] %s28
      %34 = dma.hbm_to_vmem [thread:$0]  %s1, 384, %s29, [#allocation6], 64, 64, 4
    $region9: #{vit_forward.6} parent=1 // pred_fallthru
      _
    // Predicated region
    $region10: #{vit_forward.6} parent=1 // pred_check
      _
    $region11: #{vit_forward.6} parent=1 // pred_check_branch
      %36 = sbr.rel (0) target = $region13
    $region12: #{vit_forward.6} parent=1 // pred_region
      %s38 = ssub.s32 16, 16
      %39 = vsyncadd [#allocation6], %s38
      %s41 = sshll.u32 [#allocation7], 4
      %s42 = int_to_ptr.vmem [resolvable:$true] %s41
      %44 = dma.hbm_to_vmem [thread:$0]  %s2, 16, %s42, [#allocation6]
    $region13: #{vit_forward.6} parent=1 // pred_fallthru
      _
    // Predicated region
    $region14: #{vit_forward.6} parent=1 // pred_check
      _
    $region15: #{vit_forward.6} parent=1 // pred_check_branch
      %46 = sbr.rel (0) target = $region17
    $region16: #{vit_forward.6} parent=1 // pred_region
      %47 = dma.done [#allocation3], 256
    $region17: #{vit_forward.6} parent=1 // pred_fallthru
      _
    // Predicated region
    $region18: #{vit_forward.6} parent=1 // pred_check
      _
    $region19: #{vit_forward.6} parent=1 // pred_check_branch
      %49 = sbr.rel (0) target = $region21
    $region20: #{vit_forward.6} parent=1 // pred_region
      %50 = dma.done [#allocation6], 384
    $region21: #{vit_forward.6} parent=1 // pred_fallthru
      _
    // Predicated region
    $region22: #{vit_forward.6} parent=1 // pred_check
      _
    $region23: #{vit_forward.6} parent=1 // pred_check_branch
      %52 = sbr.rel (0) target = $region25
    $region24: #{vit_forward.6} parent=1 // pred_region
      %53 = dma.done [#allocation6], 16
    $region25: #{vit_forward.6} parent=1 // pred_fallthru
      _
    %v55 = vld [vmem:[#allocation2] sm:$0xf]
    %v56 = vld [vmem:[#allocation2 + $0x4] sm:$0xf]
    %v57 = vld [vmem:[#allocation2 + $0x8] sm:$0xf]
    %v58 = vld [vmem:[#allocation2 + $0xc] sm:$0xf]
    %v59 = vld [vmem:[#allocation5] sm:$0xf]
    %v60 = vld [vmem:[#allocation5 + $0x4] sm:$0xf]
    %v61 = vld [vmem:[#allocation5 + $0x8] sm:$0xf]
    %v62 = vld [vmem:[#allocation5 + $0xc] sm:$0xf]
    %v63 = vld [vmem:[#allocation5 + $0x10] sm:$0xf]
    %v64 = vld [vmem:[#allocation5 + $0x14] sm:$0xf]
    %v65 = vld [vmem:[#allocation7] sm:$0x1]
    %v67 = vlaneseq
    %v68 = vshrl.u32 %v67, 7
    %v69 = vsub.s32 0, %v68
    %v70 = vrot.slane %v65, %v69
    %v76 = vunpack.c.l.b16 %v55
    %v77 = vunpack.c.l.b16 %v56
    %v78 = vunpack.c.l.b16 %v57
    %v79 = vunpack.c.l.b16 %v58
    %v80 = vpack.c.b16 %v77, %v76
    %v81 = vpack.c.b16 %v79, %v78
    %v88 = vunpack.c.l.b16 %v59
    %v89 = vunpack.c.l.b16 %v60
    %v90 = vunpack.c.l.b16 %v61
    %v91 = vunpack.c.l.b16 %v62
    %v92 = vunpack.c.l.b16 %v63
    %v93 = vunpack.c.l.b16 %v64
    %v94 = vpack.c.b16 %v89, %v88
    %v95 = vpack.c.b16 %v91, %v90
    %v96 = vpack.c.b16 %v93, %v92
    %vm100 = vcmask 392192
    %v102 = vsel %vm100, %v80, 0
    %v105 = vsel %vm100, %v81, 0
    %107 = vmatprep.subr.bf16.mxu0 0
    %108 = vmatpush1.bf16.msra.mxu0 %v94
    %109 = vmatprep.subr.bf16.mxu0 0
    %110 = vmatpush1.bf16.msra.mxu0 %v95
    %111 = vmatprep.subr.bf16.mxu0 0
    %112 = vmatpush1.bf16.msra.mxu0 %v96
    %113 = vmatprep.subr.bf16.mxu0 0
    %114 = vmatpush1.bf16.msra.mxu0 0
    %115 = vmatprep.subr.bf16.mxu0 0
    %116 = vmatpush1.bf16.msra.mxu0 0
    %117 = vmatprep.subr.bf16.mxu0 0
    %118 = vmatpush1.bf16.msra.mxu0 0
    %119 = vmatprep.subr.bf16.mxu0 0
    %120 = vmatpush1.bf16.msra.mxu0 0
    %121 = vmatprep.subr.bf16.mxu0 0
    %122 = vmatpush1.bf16.msra.mxu0 0
    %123 = vmatprep.subr.bf16.mxu0 0
    %124 = vmatpush1.bf16.msra.mxu0 0
    %125 = vmatprep.subr.bf16.mxu0 0
    %126 = vmatpush1.bf16.msra.mxu0 0
    %127 = vmatprep.subr.bf16.mxu0 0
    %128 = vmatpush1.bf16.msra.mxu0 0
    %129 = vmatprep.subr.bf16.mxu0 0
    %130 = vmatpush1.bf16.msra.mxu0 0
    %131 = vmatprep.subr.bf16.mxu0 0
    %132 = vmatpush1.bf16.msra.mxu0 0
    %133 = vmatprep.subr.bf16.mxu0 0
    %134 = vmatpush1.bf16.msra.mxu0 0
    %135 = vmatprep.subr.bf16.mxu0 0
    %136 = vmatpush1.bf16.msra.mxu0 0
    %137 = vmatprep.subr.bf16.mxu0 0
    %138 = vmatpush1.bf16.msra.mxu0 0
    %139 = vmatprep.mubr.bf16.mxu0 0
    %140 = vmatmul.mubr.bf16.gmra.mrb[0].mxu0 %v102
    %v141 = vpop.f32.mrb[0].mxu0
    %v142 = vadd.f32 %v70, %v141
    %v143 = vpop.f32.mrb[0].mxu0
    %v144 = vpop.f32.mrb[0].mxu0
    %v145 = vadd.f32 %v70, %v144
    %v146 = vpop.f32.mrb[0].mxu0
    %147 = vmatprep.mubr.bf16.mxu0 0
    %148 = vmatmul.mubr.bf16.gmra.mrb[0].mxu0 %v105
    %v149 = vpop.f32.mrb[0].mxu0
    %v150 = vadd.f32 %v70, %v149
    %v151 = vpop.f32.mrb[0].mxu0
    %v152 = vpop.f32.mrb[0].mxu0
    %v153 = vadd.f32 %v70, %v152
    %v154 = vpop.f32.mrb[0].mxu0
    %155 = vdwg.mxu0
    %156 = vst [vmem:[#allocation8] sm:$0xff] %v142
    %157 = vst [vmem:[#allocation8 + $0x8] sm:$0xff] %v145
    %158 = vst [vmem:[#allocation8 + $0x10] sm:$0xff] %v150
    %159 = vst [vmem:[#allocation8 + $0x18] sm:$0xff] %v153
    // Predicated region
    $region26: #{vit_forward.6} parent=1 // pred_check
      _
    $region27: #{vit_forward.6} parent=1 // pred_check_branch
      %161 = sbr.rel (0) target = $region29
    $region28: #{vit_forward.6} parent=1 // pred_region
      %s163 = ssub.s32 512, 512
      %164 = vsyncadd [#allocation4], %s163
      %s165 = sshll.u32 [#allocation8], 4
      %s166 = int_to_ptr.vmem [resolvable:$true] %s165
      %171 = dma.vmem_to_hbm [thread:$0]  %s166, 512, %s3, [#allocation4], 128, 128, 8
    $region29: #{vit_forward.6} parent=1 // pred_fallthru
      _
    // Predicated region
    $region30: #{vit_forward.6} parent=1 // pred_check
      _
    $region31: #{vit_forward.6} parent=1 // pred_check_branch
      %173 = sbr.rel (0) target = $region33
    $region32: #{vit_forward.6} parent=1 // pred_region
      %174 = dma.done [#allocation4], 512
    $region33: #{vit_forward.6} parent=1 // pred_fallthru
      _
    %175 = vsyncpa [#allocation3], 1
    %176 = vsyncpa [#allocation6], 1
    %177 = vsyncpa [#allocation4], 1

// kernel: vit_forward.11
$region0: #{vit_forward.11}
  #allocation0 [shape = 'u32[]', space=smem, size = 0x4, offset = 0x4, fixed_abs, tag = 'smem constant byte address 0x4 - core index']
  #allocation1 [shape = 'u32[144,128]{1,0:T(1,128)}', space=vmem, size = 0x12000, scoped, tag = 'internal scratch']
  %s0 = inlined_call_operand.hbm [shape: f32[2,128], index: 0, kind: input, shape index: {}]
  %s1 = inlined_call_operand.hbm [shape: f32[1,128], index: 1, kind: input, shape index: {}]
  %s2 = inlined_call_operand.hbm [shape: f32[1,128], index: 2, kind: input, shape index: {}]
  %s3 = inlined_call_operand.hbm [shape: bf16[128,16], index: 3, kind: input, shape index: {}]
  %s4 = inlined_call_operand.hbm [shape: f32[1,16], index: 4, kind: input, shape index: {}]
  %s5 = inlined_call_operand.hbm [shape: f32[2,16], index: 5, kind: output, shape index: {}]
  %s6 = sld [smem:[#allocation0]]
  $region50: #{vit_forward.11} parent=0
    _
  %s8 = ssub.s32 1, %s6
  %s9 = scalar_select 0, %s8, %s6
  $region1: #{vit_forward.11} parent=0
    #allocation2 [shape = 'u8[1024]{0}', space=vmem, size = 0x400, scoped, tag = 'input window, operand 0, single buffered']
    #allocation3 [shape = 's32[1]{0}', space=sflag, size = 0x4, scoped, tag = 'scoped memory for vit_forward.11']
    #allocation4 [shape = 's32[1]{0}', space=sflag, size = 0x4, scoped, tag = 'scoped memory for vit_forward.11']
    #allocation5 [shape = 'u8[512]{0}', space=vmem, size = 0x400, scoped, tag = 'input window, operand 1, single buffered']
    #allocation6 [shape = 's32[1]{0}', space=sflag, size = 0x4, scoped, tag = 'scoped memory for vit_forward.11']
    #allocation7 [shape = 'u8[512]{0}', space=vmem, size = 0x400, scoped, tag = 'input window, operand 2, single buffered']
    #allocation8 [shape = 'u8[32768]{0}', space=vmem, size = 0x8000, scoped, tag = 'input window, operand 3, single buffered']
    #allocation9 [shape = 's32[1]{0}', space=sflag, size = 0x4, scoped, tag = 'scoped memory for vit_forward.11']
    #allocation10 [shape = 'u8[512]{0}', space=vmem, size = 0x400, scoped, tag = 'input window, operand 4, single buffered']
    #allocation11 [shape = 'u8[1024]{0}', space=vmem, size = 0x400, scoped, tag = 'output window, operand 0, single buffered']
    %10 = vsyncpa [#allocation3], 0
    %11 = vsyncpa [#allocation6], 0
    %12 = vsyncpa [#allocation9], 0
    %13 = vsyncpa [#allocation4], 0
    // Predicated region
    $region2: #{vit_forward.11} parent=1 // pred_check
      _
    $region3: #{vit_forward.11} parent=1 // pred_check_branch
      %15 = sbr.rel (0) target = $region5
    $region4: #{vit_forward.11} parent=1 // pred_region
      %s17 = ssub.s32 32, 32
      %18 = vsyncadd [#allocation3], %s17
      %s20 = sshll.u32 [#allocation2], 4
      %s21 = int_to_ptr.vmem [resolvable:$true] %s20
      %23 = dma.hbm_to_vmem [thread:$0]  %s0, 32, %s21, [#allocation3]
    $region5: #{vit_forward.11} parent=1 // pred_fallthru
      _
    // Predicated region
    $region6: #{vit_forward.11} parent=1 // pred_check
      _
    $region7: #{vit_forward.11} parent=1 // pred_check_branch
      %25 = sbr.rel (0) target = $region9
    $region8: #{vit_forward.11} parent=1 // pred_region
      %s27 = ssub.s32 16, 16
      %28 = vsyncadd [#allocation6], %s27
      %s30 = sshll.u32 [#allocation5], 4
      %s31 = int_to_ptr.vmem [resolvable:$true] %s30
      %33 = dma.hbm_to_vmem [thread:$0]  %s1, 16, %s31, [#allocation6]
    $region9: #{vit_forward.11} parent=1 // pred_fallthru
      _
    // Predicated region
    $region10: #{vit_forward.11} parent=1 // pred_check
      _
    $region11: #{vit_forward.11} parent=1 // pred_check_branch
      %35 = sbr.rel (0) target = $region13
    $region12: #{vit_forward.11} parent=1 // pred_region
      %s37 = ssub.s32 16, 16
      %38 = vsyncadd [#allocation6], %s37
      %s40 = sshll.u32 [#allocation7], 4
      %s41 = int_to_ptr.vmem [resolvable:$true] %s40
      %43 = dma.hbm_to_vmem [thread:$0]  %s2, 16, %s41, [#allocation6]
    $region13: #{vit_forward.11} parent=1 // pred_fallthru
      _
    // Predicated region
    $region14: #{vit_forward.11} parent=1 // pred_check
      _
    $region15: #{vit_forward.11} parent=1 // pred_check_branch
      %45 = sbr.rel (0) target = $region17
    $region16: #{vit_forward.11} parent=1 // pred_region
      %s47 = ssub.s32 1024, 1024
      %48 = vsyncadd [#allocation9], %s47
      %s49 = sshll.u32 [#allocation8], 4
      %s50 = int_to_ptr.vmem [resolvable:$true] %s49
      %55 = dma.hbm_to_vmem [thread:$0]  %s3, 1024, %s50, [#allocation9], 64, 64, 4
    $region17: #{vit_forward.11} parent=1 // pred_fallthru
      _
    // Predicated region
    $region18: #{vit_forward.11} parent=1 // pred_check
      _
    $region19: #{vit_forward.11} parent=1 // pred_check_branch
      %57 = sbr.rel (0) target = $region21
    $region20: #{vit_forward.11} parent=1 // pred_region
      %s59 = ssub.s32 16, 16
      %60 = vsyncadd [#allocation9], %s59
      %s62 = sshll.u32 [#allocation10], 4
      %s63 = int_to_ptr.vmem [resolvable:$true] %s62
      %65 = dma.hbm_to_vmem [thread:$0]  %s4, 16, %s63, [#allocation9]
    $region21: #{vit_forward.11} parent=1 // pred_fallthru
      _
    // Predicated region
    $region22: #{vit_forward.11} parent=1 // pred_check
      _
    $region23: #{vit_forward.11} parent=1 // pred_check_branch
      %67 = sbr.rel (0) target = $region25
    $region24: #{vit_forward.11} parent=1 // pred_region
      %68 = dma.done [#allocation3], 32
    $region25: #{vit_forward.11} parent=1 // pred_fallthru
      _
    // Predicated region
    $region26: #{vit_forward.11} parent=1 // pred_check
      _
    $region27: #{vit_forward.11} parent=1 // pred_check_branch
      %70 = sbr.rel (0) target = $region29
    $region28: #{vit_forward.11} parent=1 // pred_region
      %71 = dma.done [#allocation6], 16
    $region29: #{vit_forward.11} parent=1 // pred_fallthru
      _
    // Predicated region
    $region30: #{vit_forward.11} parent=1 // pred_check
      _
    $region31: #{vit_forward.11} parent=1 // pred_check_branch
      %73 = sbr.rel (0) target = $region33
    $region32: #{vit_forward.11} parent=1 // pred_region
      %74 = dma.done [#allocation6], 16
    $region33: #{vit_forward.11} parent=1 // pred_fallthru
      _
    // Predicated region
    $region34: #{vit_forward.11} parent=1 // pred_check
      _
    $region35: #{vit_forward.11} parent=1 // pred_check_branch
      %76 = sbr.rel (0) target = $region37
    $region36: #{vit_forward.11} parent=1 // pred_region
      %77 = dma.done [#allocation9], 1024
    $region37: #{vit_forward.11} parent=1 // pred_fallthru
      _
    // Predicated region
    $region38: #{vit_forward.11} parent=1 // pred_check
      _
    $region39: #{vit_forward.11} parent=1 // pred_check_branch
      %79 = sbr.rel (0) target = $region41
    $region40: #{vit_forward.11} parent=1 // pred_region
      %80 = dma.done [#allocation9], 16
    $region41: #{vit_forward.11} parent=1 // pred_fallthru
      _
    %v82 = vld [vmem:[#allocation2] sm:$0x3]
    %v83 = vld [vmem:[#allocation5] sm:$0x1]
    %v84 = vld [vmem:[#allocation7] sm:$0x1]
    %vm85 = vcmask 1041408
    %v86 = vsel %vm85, %v82, 0.0
    %87 = vadd.xlane.f32.xlu0 %v86
    %v88 = vpop.xlane.xlu0 %87
    %v89 = vrcp.pop 128.0
    %v90 = vmul.f32 %v88, %v89
    %v91 = vsub.f32 %v82, %v90
    %v92 = vmul.f32 %v91, %v91
    %v93 = vsel %vm85, %v92, 0.0
    %94 = vadd.xlane.f32.xlu0 %v93
    %v95 = vpop.xlane.xlu0 %94
    %v96 = vmul.f32 %v95, %v89
    %v97 = vadd.f32 %v96, 1e-05
    %v98 = vrsqrt.pop %v97
    %v99 = vmul.f32 %v91, %v98
    %v101 = vlaneseq
    %v102 = vshrl.u32 %v101, 7
    %v103 = vsub.s32 0, %v102
    %v104 = vrot.slane %v83, %v103
    %v106 = vmul.f32 %v99, %v104
    %v108 = vlaneseq
    %v109 = vshrl.u32 %v108, 7
    %v110 = vsub.s32 0, %v109
    %v111 = vrot.slane %v84, %v110
    %v113 = vadd.f32 %v106, %v111
    %v114 = vpack.c.bf16 %v113, %v113
    %v115 = vld [vmem:[#allocation8] sm:$0xf]
    %v116 = vld [vmem:[#allocation8 + $0x4] sm:$0xf]
    %v117 = vld [vmem:[#allocation8 + $0x8] sm:$0xf]
    %v118 = vld [vmem:[#allocation8 + $0xc] sm:$0xf]
    %v119 = vld [vmem:[#allocation8 + $0x10] sm:$0xf]
    %v120 = vld [vmem:[#allocation8 + $0x14] sm:$0xf]
    %v121 = vld [vmem:[#allocation8 + $0x18] sm:$0xf]
    %v122 = vld [vmem:[#allocation8 + $0x1c] sm:$0xf]
    %v123 = vld [vmem:[#allocation8 + $0x20] sm:$0xf]
    %v124 = vld [vmem:[#allocation8 + $0x24] sm:$0xf]
    %v125 = vld [vmem:[#allocation8 + $0x28] sm:$0xf]
    %v126 = vld [vmem:[#allocation8 + $0x2c] sm:$0xf]
    %v127 = vld [vmem:[#allocation8 + $0x30] sm:$0xf]
    %v128 = vld [vmem:[#allocation8 + $0x34] sm:$0xf]
    %v129 = vld [vmem:[#allocation8 + $0x38] sm:$0xf]
    %v130 = vld [vmem:[#allocation8 + $0x3c] sm:$0xf]
    %v131 = vld [vmem:[#allocation10] sm:$0x1]
    %v133 = vlaneseq
    %v134 = vshrl.u32 %v133, 7
    %v135 = vsub.s32 0, %v134
    %v136 = vrot.slane %v131, %v135
    %v154 = vunpack.c.l.b16 %v115
    %v155 = vunpack.c.l.b16 %v116
    %v156 = vunpack.c.l.b16 %v117
    %v157 = vunpack.c.l.b16 %v118
    %v158 = vunpack.c.l.b16 %v119
    %v159 = vunpack.c.l.b16 %v120
    %v160 = vunpack.c.l.b16 %v121
    %v161 = vunpack.c.l.b16 %v122
    %v162 = vunpack.c.l.b16 %v123
    %v163 = vunpack.c.l.b16 %v124
    %v164 = vunpack.c.l.b16 %v125
    %v165 = vunpack.c.l.b16 %v126
    %v166 = vunpack.c.l.b16 %v127
    %v167 = vunpack.c.l.b16 %v128
    %v168 = vunpack.c.l.b16 %v129
    %v169 = vunpack.c.l.b16 %v130
    %v170 = vpack.c.b16 %v155, %v154
    %v171 = vpack.c.b16 %v157, %v156
    %v172 = vpack.c.b16 %v159, %v158
    %v173 = vpack.c.b16 %v161, %v160
    %v174 = vpack.c.b16 %v163, %v162
    %v175 = vpack.c.b16 %v165, %v164
    %v176 = vpack.c.b16 %v167, %v166
    %v177 = vpack.c.b16 %v169, %v168
    %186 = vmatprep.subr.bf16.mxu0 0
    %187 = vmatpush1.bf16.msra.mxu0 %v170
    %188 = vmatprep.subr.bf16.mxu0 0
    %189 = vmatpush1.bf16.msra.mxu0 %v171
    %190 = vmatprep.subr.bf16.mxu0 0
    %191 = vmatpush1.bf16.msra.mxu0 %v172
    %192 = vmatprep.subr.bf16.mxu0 0
    %193 = vmatpush1.bf16.msra.mxu0 %v173
    %194 = vmatprep.subr.bf16.mxu0 0
    %195 = vmatpush1.bf16.msra.mxu0 %v174
    %196 = vmatprep.subr.bf16.mxu0 0
    %197 = vmatpush1.bf16.msra.mxu0 %v175
    %198 = vmatprep.subr.bf16.mxu0 0
    %199 = vmatpush1.bf16.msra.mxu0 %v176
    %200 = vmatprep.subr.bf16.mxu0 0
    %201 = vmatpush1.bf16.msra.mxu0 %v177
    %202 = vmatprep.subr.bf16.mxu0 0
    %203 = vmatpush1.bf16.msra.mxu0 0
    %204 = vmatprep.subr.bf16.mxu0 0
    %205 = vmatpush1.bf16.msra.mxu0 0
    %206 = vmatprep.subr.bf16.mxu0 0
    %207 = vmatpush1.bf16.msra.mxu0 0
    %208 = vmatprep.subr.bf16.mxu0 0
    %209 = vmatpush1.bf16.msra.mxu0 0
    %210 = vmatprep.subr.bf16.mxu0 0
    %211 = vmatpush1.bf16.msra.mxu0 0
    %212 = vmatprep.subr.bf16.mxu0 0
    %213 = vmatpush1.bf16.msra.mxu0 0
    %214 = vmatprep.subr.bf16.mxu0 0
    %215 = vmatpush1.bf16.msra.mxu0 0
    %216 = vmatprep.subr.bf16.mxu0 0
    %217 = vmatpush1.bf16.msra.mxu0 0
    %218 = vmatprep.mubr.bf16.mxu0 0
    %219 = vmatmul.mubr.bf16.gmra.mrb[0].mxu0 %v114
    %v220 = vpop.f32.mrb[0].mxu0
    %v221 = vadd.f32 %v136, %v220
    %v222 = vpop.f32.mrb[0].mxu0
    %v223 = vpop.f32.mrb[0].mxu0
    %v224 = vpop.f32.mrb[0].mxu0
    %225 = vdwg.mxu0
    %vm226 = vcmask 123904
    %227 = vst.msk [vmem:[#allocation11] sm:$0x3] %vm226, %v221
    // Predicated region
    $region42: #{vit_forward.11} parent=1 // pred_check
      _
    $region43: #{vit_forward.11} parent=1 // pred_check_branch
      %229 = sbr.rel (0) target = $region45
    $region44: #{vit_forward.11} parent=1 // pred_region
      %s231 = ssub.s32 32, 32
      %232 = vsyncadd [#allocation4], %s231
      %s234 = sshll.u32 [#allocation11], 4
      %s235 = int_to_ptr.vmem [resolvable:$true] %s234
      %237 = dma.vmem_to_hbm [thread:$0]  %s235, 32, %s5, [#allocation4]
    $region45: #{vit_forward.11} parent=1 // pred_fallthru
      _
    // Predicated region
    $region46: #{vit_forward.11} parent=1 // pred_check
      _
    $region47: #{vit_forward.11} parent=1 // pred_check_branch
      %239 = sbr.rel (0) target = $region49
    $region48: #{vit_forward.11} parent=1 // pred_region
      %240 = dma.done [#allocation4], 32
    $region49: #{vit_forward.11} parent=1 // pred_fallthru
      _
    %241 = vsyncpa [#allocation3], 1
    %242 = vsyncpa [#allocation6], 1
    %243 = vsyncpa [#allocation9], 1
    %244 = vsyncpa [#allocation4], 1

// kernel: vit_forward.8
$region0: #{vit_forward.8}
  #allocation0 [shape = 'u32[]', space=smem, size = 0x4, offset = 0x4, fixed_abs, tag = 'smem constant byte address 0x4 - core index']
  #allocation1 [shape = 'u32[144,128]{1,0:T(1,128)}', space=vmem, size = 0x12000, scoped, tag = 'internal scratch']
  %s0 = inlined_call_operand.hbm [shape: f32[48,128], index: 0, kind: input, shape index: {}]
  %s1 = inlined_call_operand.hbm [shape: f32[1,128], index: 1, kind: input, shape index: {}]
  %s2 = inlined_call_operand.hbm [shape: f32[1,128], index: 2, kind: input, shape index: {}]
  %s3 = inlined_call_operand.hbm [shape: bf16[128,256], index: 3, kind: input, shape index: {}]
  %s4 = inlined_call_operand.hbm [shape: f32[1,256], index: 4, kind: input, shape index: {}]
  %s5 = inlined_call_operand.hbm [shape: bf16[256,128], index: 5, kind: input, shape index: {}]
  %s6 = inlined_call_operand.hbm [shape: f32[1,128], index: 6, kind: input, shape index: {}]
  %s7 = inlined_call_operand.hbm [shape: f32[48,128], index: 7, kind: output, shape index: {}]
  %s8 = sld [smem:[#allocation0]]
  $region89: #{vit_forward.8} parent=0
    _
  %s10 = ssub.s32 1, %s8
  %s11 = scalar_select 0, %s10, %s8
  $region1: #{vit_forward.8} parent=0
    #allocation2 [shape = 'u8[24576]{0}', space=vmem, size = 0x6000, scoped, tag = 'input window, operand 0']
    #allocation3 [shape = 's32[2]{0}', space=sflag, size = 0x8, scoped, tag = 'scoped memory for vit_forward.8']
    #allocation4 [shape = 's32[2]{0}', space=sflag, size = 0x8, scoped, tag = 'scoped memory for vit_forward.8']
    #allocation5 [shape = 'u8[512]{0}', space=vmem, size = 0x400, scoped, tag = 'input window, operand 1, single buffered']
    #allocation6 [shape = 's32[1]{0}', space=sflag, size = 0x4, scoped, tag = 'scoped memory for vit_forward.8']
    #allocation7 [shape = 'u8[512]{0}', space=vmem, size = 0x400, scoped, tag = 'input window, operand 2, single buffered']
    #allocation8 [shape = 'u8[65536]{0}', space=vmem, size = 0x10000, scoped, tag = 'input window, operand 3, single buffered']
    #allocation9 [shape = 's32[1]{0}', space=sflag, size = 0x4, scoped, tag = 'scoped memory for vit_forward.8']
    #allocation10 [shape = 'u8[1024]{0}', space=vmem, size = 0x400, scoped, tag = 'input window, operand 4, single buffered']
    #allocation11 [shape = 'u8[65536]{0}', space=vmem, size = 0x10000, scoped, tag = 'input window, operand 5, single buffered']
    #allocation12 [shape = 's32[1]{0}', space=sflag, size = 0x4, scoped, tag = 'scoped memory for vit_forward.8']
    #allocation13 [shape = 'u8[512]{0}', space=vmem, size = 0x400, scoped, tag = 'input window, operand 6, single buffered']
    #allocation14 [shape = 'u8[24576]{0}', space=vmem, size = 0x6000, scoped, tag = 'output window, operand 0']
    %12 = vsyncpa [#allocation3], 0
    %s13 = scalar_lea.sflag [#allocation3], 1
    %14 = vsyncpa %s13, 0
    %15 = vsyncpa [#allocation6], 0
    %16 = vsyncpa [#allocation9], 0
    %17 = vsyncpa [#allocation12], 0
    %18 = vsyncpa [#allocation4], 0
    %s19 = scalar_lea.sflag [#allocation4], 1
    %20 = vsyncpa %s19, 0
    loop: start=0, step=1, limit=4
    $region2: #{vit_forward.8} parent=1 // loop_pre_header
      _
    $region3: #{vit_forward.8} parent=1 // loop_header
      %s22 = sphi 0, %s26
      %p23 = scmp.ge.s32.totalorder %s22, 4
      %s32 = sphi 0, %s34
      %s35 = sphi 0, %s32
      %s36 = sphi 0, %s35
      %s52 = sphi 0, %s36
      %s56 = sphi 0, %s56
      %s58 = sphi 0, %s56
      %s59 = sphi 0, %s58
      %s73 = sphi 0, %s59
      %s77 = sphi 0, %s77
      %s79 = sphi 0, %s77
      %s80 = sphi 0, %s79
      %s94 = sphi 0, %s80
      %s98 = sphi 0, %s98
      %s100 = sphi 0, %s98
      %s101 = sphi 0, %s100
      %s115 = sphi 0, %s101
      %s119 = sphi 0, %s119
      %s121 = sphi 0, %s119
      %s122 = sphi 0, %s121
      %s136 = sphi 0, %s122
      %s140 = sphi 0, %s140
      %s142 = sphi 0, %s140
      %s143 = sphi 0, %s142
      %s157 = sphi 0, %s143
      %s161 = sphi 0, %s161
      %s163 = sphi 0, %s161
      %s164 = sphi 0, %s163
      %s178 = sphi 0, %s164
      %s184 = sphi 0, %s186
      %s187 = sphi 0, %s184
      %s188 = sphi 0, %s187
      %s204 = sphi 0, %s188
    $region4: #{vit_forward.8} parent=1 // loop_header_branch
      %25 = sbr.rel (%p23) target = $region8
    $region5: #{vit_forward.8} parent=1 // loop_body
      %s27 = ssub.s32 %s22, 1
      %s28 = ssub.s32 %s22, 2
      %s29 = sadd.s32 %s22, 1
      %s30 = ssub.s32 %s22, %s29
      %p31 = scmp.eq.s32.totalorder %s30, 0
      %s33 = sadd.s32 %s32, 1
      %s34 = scalar_select %p31, %s32, %s33
      %p37 = pneg %p31
      %p38 = scmp.eq.s32.totalorder %s22, 1
      %p39 = por %p37, %p38
      %p40 = scmp.ne.s32.totalorder %s32, %s35
      %p41 = scmp.eq.s32.totalorder %s22, 0
      %p42 = por %p40, %p41
      %p43 = scmp.ne.s32.totalorder %s32, %s35
      %p44 = scmp.eq.s32.totalorder %s27, 1
      %p45 = por %p43, %p44
      %p46 = scmp.ne.s32.totalorder %s35, %s36
      %p47 = scmp.eq.s32.totalorder %s27, 0
      %p48 = por %p46, %p47
      %p49 = scmp.ne.s32.totalorder %s35, %s36
      %p50 = scmp.eq.s32.totalorder %s28, 1
      %p51 = por %p49, %p50
      %p53 = scmp.ne.s32.totalorder %s36, %s52
      %p54 = scmp.eq.s32.totalorder %s28, 0
      %p55 = por %p53, %p54
      %s57 = sadd.s32 %s56, 1
      %p60 = scmp.eq.s32.totalorder %s22, 1
      %p61 = scmp.ne.s32.totalorder %s56, %s58
      %p62 = scmp.eq.s32.totalorder %s22, 0
      %p63 = por %p61, %p62
      %p64 = scmp.ne.s32.totalorder %s56, %s58
      %p65 = scmp.eq.s32.totalorder %s27, 1
      %p66 = por %p64, %p65
      %p67 = scmp.ne.s32.totalorder %s58, %s59
      %p68 = scmp.eq.s32.totalorder %s27, 0
      %p69 = por %p67, %p68
      %p70 = scmp.ne.s32.totalorder %s58, %s59
      %p71 = scmp.eq.s32.totalorder %s28, 1
      %p72 = por %p70, %p71
      %p74 = scmp.ne.s32.totalorder %s59, %s73
      %p75 = scmp.eq.s32.totalorder %s28, 0
      %p76 = por %p74, %p75
      %s78 = sadd.s32 %s77, 1
      %p81 = scmp.eq.s32.totalorder %s22, 1
      %p82 = scmp.ne.s32.totalorder %s77, %s79
      %p83 = scmp.eq.s32.totalorder %s22, 0
      %p84 = por %p82, %p83
      %p85 = scmp.ne.s32.totalorder %s77, %s79
      %p86 = scmp.eq.s32.totalorder %s27, 1
      %p87 = por %p85, %p86
      %p88 = scmp.ne.s32.totalorder %s79, %s80
      %p89 = scmp.eq.s32.totalorder %s27, 0
      %p90 = por %p88, %p89
      %p91 = scmp.ne.s32.totalorder %s79, %s80
      %p92 = scmp.eq.s32.totalorder %s28, 1
      %p93 = por %p91, %p92
      %p95 = scmp.ne.s32.totalorder %s80, %s94
      %p96 = scmp.eq.s32.totalorder %s28, 0
      %p97 = por %p95, %p96
      %s99 = sadd.s32 %s98, 1
      %p102 = scmp.eq.s32.totalorder %s22, 1
      %p103 = scmp.ne.s32.totalorder %s98, %s100
      %p104 = scmp.eq.s32.totalorder %s22, 0
      %p105 = por %p103, %p104
      %p106 = scmp.ne.s32.totalorder %s98, %s100
      %p107 = scmp.eq.s32.totalorder %s27, 1
      %p108 = por %p106, %p107
      %p109 = scmp.ne.s32.totalorder %s100, %s101
      %p110 = scmp.eq.s32.totalorder %s27, 0
      %p111 = por %p109, %p110
      %p112 = scmp.ne.s32.totalorder %s100, %s101
      %p113 = scmp.eq.s32.totalorder %s28, 1
      %p114 = por %p112, %p113
      %p116 = scmp.ne.s32.totalorder %s101, %s115
      %p117 = scmp.eq.s32.totalorder %s28, 0
      %p118 = por %p116, %p117
      %s120 = sadd.s32 %s119, 1
      %p123 = scmp.eq.s32.totalorder %s22, 1
      %p124 = scmp.ne.s32.totalorder %s119, %s121
      %p125 = scmp.eq.s32.totalorder %s22, 0
      %p126 = por %p124, %p125
      %p127 = scmp.ne.s32.totalorder %s119, %s121
      %p128 = scmp.eq.s32.totalorder %s27, 1
      %p129 = por %p127, %p128
      %p130 = scmp.ne.s32.totalorder %s121, %s122
      %p131 = scmp.eq.s32.totalorder %s27, 0
      %p132 = por %p130, %p131
      %p133 = scmp.ne.s32.totalorder %s121, %s122
      %p134 = scmp.eq.s32.totalorder %s28, 1
      %p135 = por %p133, %p134
      %p137 = scmp.ne.s32.totalorder %s122, %s136
      %p138 = scmp.eq.s32.totalorder %s28, 0
      %p139 = por %p137, %p138
      %s141 = sadd.s32 %s140, 1
      %p144 = scmp.eq.s32.totalorder %s22, 1
      %p145 = scmp.ne.s32.totalorder %s140, %s142
      %p146 = scmp.eq.s32.totalorder %s22, 0
      %p147 = por %p145, %p146
      %p148 = scmp.ne.s32.totalorder %s140, %s142
      %p149 = scmp.eq.s32.totalorder %s27, 1
      %p150 = por %p148, %p149
      %p151 = scmp.ne.s32.totalorder %s142, %s143
      %p152 = scmp.eq.s32.totalorder %s27, 0
      %p153 = por %p151, %p152
      %p154 = scmp.ne.s32.totalorder %s142, %s143
      %p155 = scmp.eq.s32.totalorder %s28, 1
      %p156 = por %p154, %p155
      %p158 = scmp.ne.s32.totalorder %s143, %s157
      %p159 = scmp.eq.s32.totalorder %s28, 0
      %p160 = por %p158, %p159
      %s162 = sadd.s32 %s161, 1
      %p165 = scmp.eq.s32.totalorder %s22, 1
      %p166 = scmp.ne.s32.totalorder %s161, %s163
      %p167 = scmp.eq.s32.totalorder %s22, 0
      %p168 = por %p166, %p167
      %p169 = scmp.ne.s32.totalorder %s161, %s163
      %p170 = scmp.eq.s32.totalorder %s27, 1
      %p171 = por %p169, %p170
      %p172 = scmp.ne.s32.totalorder %s163, %s164
      %p173 = scmp.eq.s32.totalorder %s27, 0
      %p174 = por %p172, %p173
      %p175 = scmp.ne.s32.totalorder %s163, %s164
      %p176 = scmp.eq.s32.totalorder %s28, 1
      %p177 = por %p175, %p176
      %p179 = scmp.ne.s32.totalorder %s164, %s178
      %p180 = scmp.eq.s32.totalorder %s28, 0
      %p181 = por %p179, %p180
      %s182 = ssub.s32 %s22, %s29
      %p183 = scmp.eq.s32.totalorder %s182, 0
      %s185 = sadd.s32 %s184, 1
      %s186 = scalar_select %p183, %s184, %s185
      %p189 = pneg %p183
      %p190 = scmp.eq.s32.totalorder %s22, 1
      %p191 = por %p189, %p190
      %p192 = scmp.ne.s32.totalorder %s184, %s187
      %p193 = scmp.eq.s32.totalorder %s22, 0
      %p194 = por %p192, %p193
      %p195 = scmp.ne.s32.totalorder %s184, %s187
      %p196 = scmp.eq.s32.totalorder %s27, 1
      %p197 = por %p195, %p196
      %p198 = scmp.ne.s32.totalorder %s187, %s188
      %p199 = scmp.eq.s32.totalorder %s27, 0
      %p200 = por %p198, %p199
      %p201 = scmp.ne.s32.totalorder %s187, %s188
      %p202 = scmp.eq.s32.totalorder %s28, 1
      %p203 = por %p201, %p202
      %p205 = scmp.ne.s32.totalorder %s188, %s204
      %p206 = scmp.eq.s32.totalorder %s28, 0
      %p207 = por %p205, %p206
      %p208 = scmp.le.s32.totalorder 1, %s22
      %p209 = scmp.lt.s32.totalorder %s22, 3
      %p210 = pnand %p208, %p209
      %p211 = pneg %p210
      // Predicated region
      $region9: #{vit_forward.8} parent=5 // pred_check
        _
      $region10: #{vit_forward.8} parent=5 // pred_check_branch
        %213 = sbr.rel (%p210) target = $region12
      $region11: #{vit_forward.8} parent=5 // pred_region
        %s214 = ssub.s32 %s22, 1
        // Predicated region
        $region13: #{vit_forward.8} parent=11 // pred_check
          %p215 = pneg %p69
        $region14: #{vit_forward.8} parent=11 // pred_check_branch
          %217 = sbr.rel (%p215) target = $region16
        $region15: #{vit_forward.8} parent=11 // pred_region
          %s219 = ssub.s32 16, 16
          %220 = vsyncadd [#allocation6], %s219
          %s222 = sshll.u32 [#allocation5], 4
          %s223 = int_to_ptr.vmem [resolvable:$true] %s222
          %225 = dma.hbm_to_vmem [thread:$0]  %s1, 16, %s223, [#allocation6]
        $region16: #{vit_forward.8} parent=11 // pred_fallthru
          _
        // Predicated region
        $region17: #{vit_forward.8} parent=11 // pred_check
          %p226 = pneg %p90
        $region18: #{vit_forward.8} parent=11 // pred_check_branch
          %228 = sbr.rel (%p226) target = $region20
        $region19: #{vit_forward.8} parent=11 // pred_region
          %s230 = ssub.s32 16, 16
          %231 = vsyncadd [#allocation6], %s230
          %s233 = sshll.u32 [#allocation7], 4
          %s234 = int_to_ptr.vmem [resolvable:$true] %s233
          %236 = dma.hbm_to_vmem [thread:$0]  %s2, 16, %s234, [#allocation6]
        $region20: #{vit_forward.8} parent=11 // pred_fallthru
          _
        // Predicated region
        $region21: #{vit_forward.8} parent=11 // pred_check
          %p237 = pneg %p111
        $region22: #{vit_forward.8} parent=11 // pred_check_branch
          %239 = sbr.rel (%p237) target = $region24
        $region23: #{vit_forward.8} parent=11 // pred_region
          %s241 = ssub.s32 2048, 2048
          %242 = vsyncadd [#allocation9], %s241
          %s243 = sshll.u32 [#allocation8], 4
          %s244 = int_to_ptr.vmem [resolvable:$true] %s243
          %249 = dma.hbm_to_vmem [thread:$0]  %s3, 2048, %s244, [#allocation9], 128, 128, 8
        $region24: #{vit_forward.8} parent=11 // pred_fallthru
          _
        // Predicated region
        $region25: #{vit_forward.8} parent=11 // pred_check
          %p250 = pneg %p132
        $region26: #{vit_forward.8} parent=11 // pred_check_branch
          %252 = sbr.rel (%p250) target = $region28
        $region27: #{vit_forward.8} parent=11 // pred_region
          %s254 = ssub.s32 32, 32
          %255 = vsyncadd [#allocation9], %s254
          %s257 = sshll.u32 [#allocation10], 4
          %s258 = int_to_ptr.vmem [resolvable:$true] %s257
          %260 = dma.hbm_to_vmem [thread:$0]  %s4, 32, %s258, [#allocation9]
        $region28: #{vit_forward.8} parent=11 // pred_fallthru
          _
        // Predicated region
        $region29: #{vit_forward.8} parent=11 // pred_check
          %p261 = pneg %p153
        $region30: #{vit_forward.8} parent=11 // pred_check_branch
          %263 = sbr.rel (%p261) target = $region32
        $region31: #{vit_forward.8} parent=11 // pred_region
          %s265 = ssub.s32 2048, 2048
          %266 = vsyncadd [#allocation12], %s265
          %s267 = sshll.u32 [#allocation11], 4
          %s268 = int_to_ptr.vmem [resolvable:$true] %s267
          %273 = dma.hbm_to_vmem [thread:$0]  %s5, 2048, %s268, [#allocation12], 64, 64, 4
        $region32: #{vit_forward.8} parent=11 // pred_fallthru
          _
        // Predicated region
        $region33: #{vit_forward.8} parent=11 // pred_check
          %p274 = pneg %p174
        $region34: #{vit_forward.8} parent=11 // pred_check_branch
          %276 = sbr.rel (%p274) target = $region36
        $region35: #{vit_forward.8} parent=11 // pred_region
          %s278 = ssub.s32 16, 16
          %279 = vsyncadd [#allocation12], %s278
          %s281 = sshll.u32 [#allocation13], 4
          %s282 = int_to_ptr.vmem [resolvable:$true] %s281
          %284 = dma.hbm_to_vmem [thread:$0]  %s6, 16, %s282, [#allocation12]
        $region36: #{vit_forward.8} parent=11 // pred_fallthru
          _
      $region12: #{vit_forward.8} parent=5 // pred_fallthru
        _
      %p285 = scmp.lt.s32.totalorder %s22, 2
      // Predicated region
      $region37: #{vit_forward.8} parent=5 // pred_check
        %p286 = pneg %p285
      $region38: #{vit_forward.8} parent=5 // pred_check_branch
        %288 = sbr.rel (%p286) target = $region40
      $region39: #{vit_forward.8} parent=5 // pred_region
        // Predicated region
        $region41: #{vit_forward.8} parent=39 // pred_check
          %p289 = pneg %p42
        $region42: #{vit_forward.8} parent=39 // pred_check_branch
          %291 = sbr.rel (%p289) target = $region44
        $region43: #{vit_forward.8} parent=39 // pred_region
          %s292 = sand.u32 %s32, 1
          %s293 = scalar_lea.sflag [#allocation3], %s292
          %s294 = sand.u32 %s32, 1
          %s295 = smul.addr %s294, 24
          %s296 = scalar_lea.vmem [#allocation2], %s295
          %s297 = smul.u32 3, %s22
          %s299 = ssub.s32 384, 384
          %300 = vsyncadd %s293, %s299
          %s301 = smul.addr %s297, 128
          %s302 = scalar_lea.hbm %s0, %s301
          %s303 = sshll.u32 %s296, 4
          %s304 = int_to_ptr.vmem [resolvable:$true] %s303
          %309 = dma.hbm_to_vmem [thread:$0]  %s302, 384, %s304, %s293, 128, 128, 8
        $region44: #{vit_forward.8} parent=39 // pred_fallthru
          _
      $region40: #{vit_forward.8} parent=5 // pred_fallthru
        _
      %p310 = scmp.le.s32.totalorder 1, %s22
      %p311 = scmp.lt.s32.totalorder %s22, 3
      %p312 = pnand %p310, %p311
      %p313 = pneg %p312
      // Predicated region
      $region45: #{vit_forward.8} parent=5 // pred_check
        _
      $region46: #{vit_forward.8} parent=5 // pred_check_branch
        %315 = sbr.rel (%p312) target = $region48
      $region47: #{vit_forward.8} parent=5 // pred_region
        %s316 = ssub.s32 %s22, 1
        %s317 = sand.u32 %s35, 1
        %s318 = scalar_lea.sflag [#allocation3], %s317
        %s319 = sand.u32 %s35, 1
        %s320 = smul.addr %s319, 24
        %s321 = scalar_lea.vmem [#allocation2], %s320
        // Predicated region
        $region49: #{vit_forward.8} parent=47 // pred_check
          %p322 = pneg %p48
        $region50: #{vit_forward.8} parent=47 // pred_check_branch
          %324 = sbr.rel (%p322) target = $region52
        $region51: #{vit_forward.8} parent=47 // pred_region
          %325 = dma.done %s318, 384
        $region52: #{vit_forward.8} parent=47 // pred_fallthru
          _
        // Predicated region
        $region53: #{vit_forward.8} parent=47 // pred_check
          %p326 = pneg %p69
        $region54: #{vit_forward.8} parent=47 // pred_check_branch
          %328 = sbr.rel (%p326) target = $region56
        $region55: #{vit_forward.8} parent=47 // pred_region
          %329 = dma.done [#allocation6], 16
        $region56: #{vit_forward.8} parent=47 // pred_fallthru
          _
        // Predicated region
        $region57: #{vit_forward.8} parent=47 // pred_check
          %p330 = pneg %p90
        $region58: #{vit_forward.8} parent=47 // pred_check_branch
          %332 = sbr.rel (%p330) target = $region60
        $region59: #{vit_forward.8} parent=47 // pred_region
          %333 = dma.done [#allocation6], 16
        $region60: #{vit_forward.8} parent=47 // pred_fallthru
          _
        // Predicated region
        $region61: #{vit_forward.8} parent=47 // pred_check
          %p334 = pneg %p111
        $region62: #{vit_forward.8} parent=47 // pred_check_branch
          %336 = sbr.rel (%p334) target = $region64
        $region63: #{vit_forward.8} parent=47 // pred_region
          %337 = dma.done [#allocation9], 2048
        $region64: #{vit_forward.8} parent=47 // pred_fallthru
          _
        // Predicated region
        $region65: #{vit_forward.8} parent=47 // pred_check
          %p338 = pneg %p132
        $region66: #{vit_forward.8} parent=47 // pred_check_branch
          %340 = sbr.rel (%p338) target = $region68
        $region67: #{vit_forward.8} parent=47 // pred_region
          %341 = dma.done [#allocation9], 32
        $region68: #{vit_forward.8} parent=47 // pred_fallthru
          _
        // Predicated region
        $region69: #{vit_forward.8} parent=47 // pred_check
          %p342 = pneg %p153
        $region70: #{vit_forward.8} parent=47 // pred_check_branch
          %344 = sbr.rel (%p342) target = $region72
        $region71: #{vit_forward.8} parent=47 // pred_region
          %345 = dma.done [#allocation12], 2048
        $region72: #{vit_forward.8} parent=47 // pred_fallthru
          _
        // Predicated region
        $region73: #{vit_forward.8} parent=47 // pred_check
          %p346 = pneg %p174
        $region74: #{vit_forward.8} parent=47 // pred_check_branch
          %348 = sbr.rel (%p346) target = $region76
        $region75: #{vit_forward.8} parent=47 // pred_region
          %349 = dma.done [#allocation12], 16
        $region76: #{vit_forward.8} parent=47 // pred_fallthru
          _
        %s350 = sand.u32 %s35, 1
        %s351 = scalar_lea.sflag [#allocation3], %s350
        %s352 = sand.u32 %s35, 1
        %s353 = smul.addr %s352, 24
        %s354 = scalar_lea.vmem [#allocation2], %s353
        %p355 = pneg %p48
        %p356 = pneg %p45
        %p357 = pneg %p69
        %p358 = pneg %p66
        %p359 = pneg %p90
        %p360 = pneg %p87
        %p361 = pneg %p111
        %p362 = pneg %p108
        %p363 = pneg %p132
        %p364 = pneg %p129
        %p365 = pneg %p153
        %p366 = pneg %p150
        %p367 = pneg %p174
        %p368 = pneg %p171
        %p369 = pneg %p200
        %p370 = pneg %p197
        %s371 = sand.u32 %s187, 1
        %s372 = scalar_lea.sflag [#allocation4], %s371
        %s373 = sand.u32 %s187, 1
        %s374 = smul.addr %s373, 24
        %s375 = scalar_lea.vmem [#allocation14], %s374
        %s376 = smul.u32 3, %s27
        %s377 = smul.u32 3, %s27
        %v379 = vld [vmem:[%s321] sm:$0xff]
        %v380 = vld [vmem:[%s321 + $0x8] sm:$0xff]
        %v381 = vld [vmem:[%s321 + $0x10] sm:$0xff]
        %v382 = vld [vmem:[#allocation5] sm:$0x1]
        %v383 = vld [vmem:[#allocation7] sm:$0x1]
        %384 = vadd.xlane.f32.xlu0 %v379
        %v385 = vpop.xlane.xlu0 %384
        %386 = vadd.xlane.f32.xlu0 %v380
        %v387 = vpop.xlane.xlu0 %386
        %388 = vadd.xlane.f32.xlu0 %v381
        %v389 = vpop.xlane.xlu0 %388
        %v390 = vrcp.pop 128.0
        %v391 = vmul.f32 %v385, %v390
        %v392 = vmul.f32 %v387, %v390
        %v393 = vmul.f32 %v389, %v390
        %v394 = vsub.f32 %v379, %v391
        %v395 = vsub.f32 %v380, %v392
        %v396 = vsub.f32 %v381, %v393
        %v397 = vmul.f32 %v394, %v394
        %v398 = vmul.f32 %v395, %v395
        %v399 = vmul.f32 %v396, %v396
        %400 = vadd.xlane.f32.xlu0 %v397
        %v401 = vpop.xlane.xlu0 %400
        %402 = vadd.xlane.f32.xlu0 %v398
        %v403 = vpop.xlane.xlu0 %402
        %404 = vadd.xlane.f32.xlu0 %v399
        %v405 = vpop.xlane.xlu0 %404
        %v406 = vmul.f32 %v401, %v390
        %v407 = vmul.f32 %v403, %v390
        %v408 = vmul.f32 %v405, %v390
        %v409 = vadd.f32 %v406, 1e-05
        %v410 = vadd.f32 %v407, 1e-05
        %v411 = vadd.f32 %v408, 1e-05
        %v412 = vrsqrt.pop %v409
        %v413 = vrsqrt.pop %v410
        %v414 = vrsqrt.pop %v411
        %v415 = vmul.f32 %v394, %v412
        %v416 = vmul.f32 %v395, %v413
        %v417 = vmul.f32 %v396, %v414
        %v419 = vlaneseq
        %v420 = vshrl.u32 %v419, 7
        %v421 = vsub.s32 0, %v420
        %v422 = vrot.slane %v382, %v421
        %v424 = vmul.f32 %v415, %v422
        %v425 = vmul.f32 %v416, %v422
        %v426 = vmul.f32 %v417, %v422
        %v428 = vlaneseq
        %v429 = vshrl.u32 %v428, 7
        %v430 = vsub.s32 0, %v429
        %v431 = vrot.slane %v383, %v430
        %v433 = vadd.f32 %v424, %v431
        %v434 = vadd.f32 %v425, %v431
        %v435 = vadd.f32 %v426, %v431
        %v436 = vpack.c.bf16 %v434, %v433
        %v437 = vpack.c.bf16 %v435, %v435
        %v438 = vld [vmem:[#allocation8] sm:$0xff]
        %v439 = vld [vmem:[#allocation8 + $0x8] sm:$0xff]
        %v440 = vld [vmem:[#allocation8 + $0x10] sm:$0xff]
        %v441 = vld [vmem:[#allocation8 + $0x18] sm:$0xff]
        %v442 = vld [vmem:[#allocation8 + $0x20] sm:$0xff]
        %v443 = vld [vmem:[#allocation8 + $0x28] sm:$0xff]
        %v444 = vld [vmem:[#allocation8 + $0x30] sm:$0xff]
        %v445 = vld [vmem:[#allocation8 + $0x38] sm:$0xff]
        %v446 = vld [vmem:[#allocation8 + $0x40] sm:$0xff]
        %v447 = vld [vmem:[#allocation8 + $0x48] sm:$0xff]
        %v448 = vld [vmem:[#allocation8 + $0x50] sm:$0xff]
        %v449 = vld [vmem:[#allocation8 + $0x58] sm:$0xff]
        %v450 = vld [vmem:[#allocation8 + $0x60] sm:$0xff]
        %v451 = vld [vmem:[#allocation8 + $0x68] sm:$0xff]
        %v452 = vld [vmem:[#allocation8 + $0x70] sm:$0xff]
        %v453 = vld [vmem:[#allocation8 + $0x78] sm:$0xff]
        %v454 = vld [vmem:[#allocation10] sm:$0x3]
        %v456 = vlaneseq
        %v457 = vshrl.u32 %v456, 7
        %v458 = vsub.s32 0, %v457
        %v459 = vrot.slane %v454, %v458
        %v460 = vlaneseq
        %v461 = vshrl.u32 %v460, 7
        %v462 = vsub.s32 1, %v461
        %v463 = vrot.slane %v454, %v462
        %v482 = vunpack.c.l.b16 %v438
        %v483 = vunpack.c.h.b16 %v438
        %v484 = vunpack.c.l.b16 %v439
        %v485 = vunpack.c.h.b16 %v439
        %v486 = vunpack.c.l.b16 %v440
        %v487 = vunpack.c.h.b16 %v440
        %v488 = vunpack.c.l.b16 %v441
        %v489 = vunpack.c.h.b16 %v441
        %v490 = vunpack.c.l.b16 %v442
        %v491 = vunpack.c.h.b16 %v442
        %v492 = vunpack.c.l.b16 %v443
        %v493 = vunpack.c.h.b16 %v443
        %v494 = vunpack.c.l.b16 %v444
        %v495 = vunpack.c.h.b16 %v444
        %v496 = vunpack.c.l.b16 %v445
        %v497 = vunpack.c.h.b16 %v445
        %v498 = vunpack.c.l.b16 %v446
        %v499 = vunpack.c.h.b16 %v446
        %v500 = vunpack.c.l.b16 %v447
        %v501 = vunpack.c.h.b16 %v447
        %v502 = vunpack.c.l.b16 %v448
        %v503 = vunpack.c.h.b16 %v448
        %v504 = vunpack.c.l.b16 %v449
        %v505 = vunpack.c.h.b16 %v449
        %v506 = vunpack.c.l.b16 %v450
        %v507 = vunpack.c.h.b16 %v450
        %v508 = vunpack.c.l.b16 %v451
        %v509 = vunpack.c.h.b16 %v451
        %v510 = vunpack.c.l.b16 %v452
        %v511 = vunpack.c.h.b16 %v452
        %v512 = vunpack.c.l.b16 %v453
        %v513 = vunpack.c.h.b16 %v453
        %v514 = vpack.c.b16 %v484, %v482
        %v515 = vpack.c.b16 %v485, %v483
        %v516 = vpack.c.b16 %v488, %v486
        %v517 = vpack.c.b16 %v489, %v487
        %v518 = vpack.c.b16 %v492, %v490
        %v519 = vpack.c.b16 %v493, %v491
        %v520 = vpack.c.b16 %v496, %v494
        %v521 = vpack.c.b16 %v497, %v495
        %v522 = vpack.c.b16 %v500, %v498
        %v523 = vpack.c.b16 %v501, %v499
        %v524 = vpack.c.b16 %v504, %v502
        %v525 = vpack.c.b16 %v505, %v503
        %v526 = vpack.c.b16 %v508, %v506
        %v527 = vpack.c.b16 %v509, %v507
        %v528 = vpack.c.b16 %v512, %v510
        %v529 = vpack.c.b16 %v513, %v511
        %546 = vmatprep.subr.bf16.mxu0 %v515
        %547 = vmatpush1.bf16.msra.mxu0 %v514
        %548 = vmatprep.subr.bf16.mxu0 %v517
        %549 = vmatpush1.bf16.msra.mxu0 %v516
        %550 = vmatprep.subr.bf16.mxu0 %v519
        %551 = vmatpush1.bf16.msra.mxu0 %v518
        %552 = vmatprep.subr.bf16.mxu0 %v521
        %553 = vmatpush1.bf16.msra.mxu0 %v520
        %554 = vmatprep.subr.bf16.mxu0 %v523
        %555 = vmatpush1.bf16.msra.mxu0 %v522
        %556 = vmatprep.subr.bf16.mxu0 %v525
        %557 = vmatpush1.bf16.msra.mxu0 %v524
        %558 = vmatprep.subr.bf16.mxu0 %v527
        %559 = vmatpush1.bf16.msra.mxu0 %v526
        %560 = vmatprep.subr.bf16.mxu0 %v529
        %561 = vmatpush1.bf16.msra.mxu0 %v528
        %562 = vmatprep.subr.bf16.mxu0 0
        %563 = vmatpush1.bf16.msra.mxu0 0
        %564 = vmatprep.subr.bf16.mxu0 0
        %565 = vmatpush1.bf16.msra.mxu0 0
        %566 = vmatprep.subr.bf16.mxu0 0
        %567 = vmatpush1.bf16.msra.mxu0 0
        %568 = vmatprep.subr.bf16.mxu0 0
        %569 = vmatpush1.bf16.msra.mxu0 0
        %570 = vmatprep.subr.bf16.mxu0 0
        %571 = vmatpush1.bf16.msra.mxu0 0
        %572 = vmatprep.subr.bf16.mxu0 0
        %573 = vmatpush1.bf16.msra.mxu0 0
        %574 = vmatprep.subr.bf16.mxu0 0
        %575 = vmatpush1.bf16.msra.mxu0 0
        %576 = vmatprep.subr.bf16.mxu0 0
        %577 = vmatpush1.bf16.msra.mxu0 0
        %578 = vmatprep.mubr.bf16.mxu0 0
        %579 = vmatmul.mubr.bf16.gmra.mrb[0].mxu0 %v436
        %v580 = vpop.f32.mrb[0].mxu0
        %v581 = vadd.f32 %v459, %v580
        %v582 = vpop.f32.mrb[0].mxu0
        %v583 = vadd.f32 %v463, %v582
        %v584 = vpop.f32.mrb[0].mxu0
        %v585 = vadd.f32 %v459, %v584
        %v586 = vpop.f32.mrb[0].mxu0
        %v587 = vadd.f32 %v463, %v586
        %588 = vmatprep.mubr.bf16.mxu0 0
        %589 = vmatmul.mubr.bf16.gmra.mrb[0].mxu0 %v437
        %v590 = vpop.f32.mrb[0].mxu0
        %v591 = vadd.f32 %v459, %v590
        %v592 = vpop.f32.mrb[0].mxu0
        %v593 = vadd.f32 %v463, %v592
        %v594 = vpop.f32.mrb[0].mxu0
        %v595 = vpop.f32.mrb[0].mxu0
        %596 = vdwg.mxu0
        %v597 = vmul.f32 %v581, 0.5
        %v598 = vmul.f32 %v583, 0.5
        %v599 = vmul.f32 %v585, 0.5
        %v600 = vmul.f32 %v587, 0.5
        %v601 = vmul.f32 %v591, 0.5
        %v602 = vmul.f32 %v593, 0.5
        %v603 = vmul.f32 %v581, 0.044715
        %v604 = vmul.f32 %v583, 0.044715
        %v605 = vmul.f32 %v585, 0.044715
        %v606 = vmul.f32 %v587, 0.044715
        %v607 = vmul.f32 %v591, 0.044715
        %v608 = vmul.f32 %v593, 0.044715
        %v609 = vmul.f32 %v603, %v581
        %v610 = vmul.f32 %v604, %v583
        %v611 = vmul.f32 %v605, %v585
        %v612 = vmul.f32 %v606, %v587
        %v613 = vmul.f32 %v607, %v591
        %v614 = vmul.f32 %v608, %v593
        %v615 = vmul.f32 %v609, %v581
        %v616 = vmul.f32 %v610, %v583
        %v617 = vmul.f32 %v611, %v585
        %v618 = vmul.f32 %v612, %v587
        %v619 = vmul.f32 %v613, %v591
        %v620 = vmul.f32 %v614, %v593
        %v621 = vadd.f32 %v581, %v615
        %v622 = vadd.f32 %v583, %v616
        %v623 = vadd.f32 %v585, %v617
        %v624 = vadd.f32 %v587, %v618
        %v625 = vadd.f32 %v591, %v619
        %v626 = vadd.f32 %v593, %v620
        %v627 = vmul.f32 %v621, 0.7978846
        %v628 = vmul.f32 %v622, 0.7978846
        %v629 = vmul.f32 %v623, 0.7978846
        %v630 = vmul.f32 %v624, 0.7978846
        %v631 = vmul.f32 %v625, 0.7978846
        %v632 = vmul.f32 %v626, 0.7978846
        %v633 = vtanh.pop %v627
        %v634 = vtanh.pop %v628
        %v635 = vtanh.pop %v629
        %v636 = vtanh.pop %v630
        %v637 = vtanh.pop %v631
        %v638 = vtanh.pop %v632
        %v639 = vadd.f32 %v633, 1.0
        %v640 = vadd.f32 %v634, 1.0
        %v641 = vadd.f32 %v635, 1.0
        %v642 = vadd.f32 %v636, 1.0
        %v643 = vadd.f32 %v637, 1.0
        %v644 = vadd.f32 %v638, 1.0
        %v645 = vmul.f32 %v597, %v639
        %v646 = vmul.f32 %v598, %v640
        %v647 = vmul.f32 %v599, %v641
        %v648 = vmul.f32 %v600, %v642
        %v649 = vmul.f32 %v601, %v643
        %v650 = vmul.f32 %v602, %v644
        %v651 = vpack.c.bf16 %v647, %v645
        %v652 = vpack.c.bf16 %v648, %v646
        %v653 = vpack.c.bf16 %v649, %v649
        %v654 = vpack.c.bf16 %v650, %v650
        %v655 = vld [vmem:[#allocation11] sm:$0xf]
        %v656 = vld [vmem:[#allocation11 + $0x4] sm:$0xf]
        %v657 = vld [vmem:[#allocation11 + $0x8] sm:$0xf]
        %v658 = vld [vmem:[#allocation11 + $0xc] sm:$0xf]
        %v659 = vld [vmem:[#allocation11 + $0x10] sm:$0xf]
        %v660 = vld [vmem:[#allocation11 + $0x14] sm:$0xf]
        %v661 = vld [vmem:[#allocation11 + $0x18] sm:$0xf]
        %v662 = vld [vmem:[#allocation11 + $0x1c] sm:$0xf]
        %v663 = vld [vmem:[#allocation11 + $0x20] sm:$0xf]
        %v664 = vld [vmem:[#allocation11 + $0x24] sm:$0xf]
        %v665 = vld [vmem:[#allocation11 + $0x28] sm:$0xf]
        %v666 = vld [vmem:[#allocation11 + $0x2c] sm:$0xf]
        %v667 = vld [vmem:[#allocation11 + $0x30] sm:$0xf]
        %v668 = vld [vmem:[#allocation11 + $0x34] sm:$0xf]
        %v669 = vld [vmem:[#allocation11 + $0x38] sm:$0xf]
        %v670 = vld [vmem:[#allocation11 + $0x3c] sm:$0xf]
        %v671 = vld [vmem:[#allocation11 + $0x40] sm:$0xf]
        %v672 = vld [vmem:[#allocation11 + $0x44] sm:$0xf]
        %v673 = vld [vmem:[#allocation11 + $0x48] sm:$0xf]
        %v674 = vld [vmem:[#allocation11 + $0x4c] sm:$0xf]
        %v675 = vld [vmem:[#allocation11 + $0x50] sm:$0xf]
        %v676 = vld [vmem:[#allocation11 + $0x54] sm:$0xf]
        %v677 = vld [vmem:[#allocation11 + $0x58] sm:$0xf]
        %v678 = vld [vmem:[#allocation11 + $0x5c] sm:$0xf]
        %v679 = vld [vmem:[#allocation11 + $0x60] sm:$0xf]
        %v680 = vld [vmem:[#allocation11 + $0x64] sm:$0xf]
        %v681 = vld [vmem:[#allocation11 + $0x68] sm:$0xf]
        %v682 = vld [vmem:[#allocation11 + $0x6c] sm:$0xf]
        %v683 = vld [vmem:[#allocation11 + $0x70] sm:$0xf]
        %v684 = vld [vmem:[#allocation11 + $0x74] sm:$0xf]
        %v685 = vld [vmem:[#allocation11 + $0x78] sm:$0xf]
        %v686 = vld [vmem:[#allocation11 + $0x7c] sm:$0xf]
        %v687 = vld [vmem:[#allocation13] sm:$0x1]
        %v689 = vlaneseq
        %v690 = vshrl.u32 %v689, 7
        %v691 = vsub.s32 0, %v690
        %v692 = vrot.slane %v687, %v691
        %v726 = vunpack.c.l.b16 %v655
        %v727 = vunpack.c.l.b16 %v656
        %v728 = vunpack.c.l.b16 %v657
        %v729 = vunpack.c.l.b16 %v658
        %v730 = vunpack.c.l.b16 %v659
        %v731 = vunpack.c.l.b16 %v660
        %v732 = vunpack.c.l.b16 %v661
        %v733 = vunpack.c.l.b16 %v662
        %v734 = vunpack.c.l.b16 %v663
        %v735 = vunpack.c.l.b16 %v664
        %v736 = vunpack.c.l.b16 %v665
        %v737 = vunpack.c.l.b16 %v666
        %v738 = vunpack.c.l.b16 %v667
        %v739 = vunpack.c.l.b16 %v668
        %v740 = vunpack.c.l.b16 %v669
        %v741 = vunpack.c.l.b16 %v670
        %v742 = vunpack.c.l.b16 %v671
        %v743 = vunpack.c.l.b16 %v672
        %v744 = vunpack.c.l.b16 %v673
        %v745 = vunpack.c.l.b16 %v674
        %v746 = vunpack.c.l.b16 %v675
        %v747 = vunpack.c.l.b16 %v676
        %v748 = vunpack.c.l.b16 %v677
        %v749 = vunpack.c.l.b16 %v678
        %v750 = vunpack.c.l.b16 %v679
        %v751 = vunpack.c.l.b16 %v680
        %v752 = vunpack.c.l.b16 %v681
        %v753 = vunpack.c.l.b16 %v682
        %v754 = vunpack.c.l.b16 %v683
        %v755 = vunpack.c.l.b16 %v684
        %v756 = vunpack.c.l.b16 %v685
        %v757 = vunpack.c.l.b16 %v686
        %v758 = vpack.c.b16 %v727, %v726
        %v759 = vpack.c.b16 %v729, %v728
        %v760 = vpack.c.b16 %v731, %v730
        %v761 = vpack.c.b16 %v733, %v732
        %v762 = vpack.c.b16 %v735, %v734
        %v763 = vpack.c.b16 %v737, %v736
        %v764 = vpack.c.b16 %v739, %v738
        %v765 = vpack.c.b16 %v741, %v740
        %v766 = vpack.c.b16 %v743, %v742
        %v767 = vpack.c.b16 %v745, %v744
        %v768 = vpack.c.b16 %v747, %v746
        %v769 = vpack.c.b16 %v749, %v748
        %v770 = vpack.c.b16 %v751, %v750
        %v771 = vpack.c.b16 %v753, %v752
        %v772 = vpack.c.b16 %v755, %v754
        %v773 = vpack.c.b16 %v757, %v756
        %790 = vmatprep.subr.bf16.mxu0 0
        %791 = vmatpush1.bf16.msra.mxu0 %v758
        %792 = vmatprep.subr.bf16.mxu0 0
        %793 = vmatpush1.bf16.msra.mxu0 %v759
        %794 = vmatprep.subr.bf16.mxu0 0
        %795 = vmatpush1.bf16.msra.mxu0 %v760
        %796 = vmatprep.subr.bf16.mxu0 0
        %797 = vmatpush1.bf16.msra.mxu0 %v761
        %798 = vmatprep.subr.bf16.mxu0 0
        %799 = vmatpush1.bf16.msra.mxu0 %v762
        %800 = vmatprep.subr.bf16.mxu0 0
        %801 = vmatpush1.bf16.msra.mxu0 %v763
        %802 = vmatprep.subr.bf16.mxu0 0
        %803 = vmatpush1.bf16.msra.mxu0 %v764
        %804 = vmatprep.subr.bf16.mxu0 0
        %805 = vmatpush1.bf16.msra.mxu0 %v765
        %806 = vmatprep.subr.bf16.mxu0 0
        %807 = vmatpush1.bf16.msra.mxu0 %v766
        %808 = vmatprep.subr.bf16.mxu0 0
        %809 = vmatpush1.bf16.msra.mxu0 %v767
        %810 = vmatprep.subr.bf16.mxu0 0
        %811 = vmatpush1.bf16.msra.mxu0 %v768
        %812 = vmatprep.subr.bf16.mxu0 0
        %813 = vmatpush1.bf16.msra.mxu0 %v769
        %814 = vmatprep.subr.bf16.mxu0 0
        %815 = vmatpush1.bf16.msra.mxu0 %v770
        %816 = vmatprep.subr.bf16.mxu0 0
        %817 = vmatpush1.bf16.msra.mxu0 %v771
        %818 = vmatprep.subr.bf16.mxu0 0
        %819 = vmatpush1.bf16.msra.mxu0 %v772
        %820 = vmatprep.subr.bf16.mxu0 0
        %821 = vmatpush1.bf16.msra.mxu0 %v773
        %822 = vmatprep.mubr.bf16.mxu0 %v652
        %823 = vmatmul.mubr.bf16.gmra.mrb[0].mxu0 %v651
        %v824 = vpop.f32.mrb[0].mxu0
        %v825 = vadd.f32 %v692, %v824
        %v826 = vpop.f32.mrb[0].mxu0
        %v827 = vpop.f32.mrb[0].mxu0
        %v828 = vadd.f32 %v692, %v827
        %v829 = vpop.f32.mrb[0].mxu0
        %830 = vmatprep.mubr.bf16.mxu0 %v654
        %831 = vmatmul.mubr.bf16.gmra.mrb[0].mxu0 %v653
        %v832 = vpop.f32.mrb[0].mxu0
        %v833 = vadd.f32 %v692, %v832
        %v834 = vpop.f32.mrb[0].mxu0
        %v835 = vpop.f32.mrb[0].mxu0
        %v836 = vpop.f32.mrb[0].mxu0
        %837 = vdwg.mxu0
        %v838 = vadd.f32 %v379, %v825
        %v839 = vadd.f32 %v380, %v828
        %v840 = vadd.f32 %v381, %v833
        %841 = vst [vmem:[%s375] sm:$0xff] %v838
        %842 = vst [vmem:[%s375 + $0x8] sm:$0xff] %v839
        %843 = vst [vmem:[%s375 + $0x10] sm:$0xff] %v840
        %s844 = sand.u32 %s187, 1
        %s845 = scalar_lea.sflag [#allocation4], %s844
        %s846 = sand.u32 %s187, 1
        %s847 = smul.addr %s846, 24
        %s848 = scalar_lea.vmem [#allocation14], %s847
        // Predicated region
        $region77: #{vit_forward.8} parent=47 // pred_check
          %p849 = pneg %p197
        $region78: #{vit_forward.8} parent=47 // pred_check_branch
          %851 = sbr.rel (%p849) target = $region80
        $region79: #{vit_forward.8} parent=47 // pred_region
          %s852 = smul.u32 3, %s27
          %s854 = ssub.s32 384, 384
          %855 = vsyncadd %s845, %s854
          %s856 = smul.addr %s852, 128
          %s857 = scalar_lea.hbm %s7, %s856
          %s858 = sshll.u32 %s848, 4
          %s859 = int_to_ptr.vmem [resolvable:$true] %s858
          %864 = dma.vmem_to_hbm [thread:$0]  %s859, 384, %s857, %s845, 128, 128, 8
        $region80: #{vit_forward.8} parent=47 // pred_fallthru
          _
      $region48: #{vit_forward.8} parent=5 // pred_fallthru
        _
      %p865 = scmp.le.s32.totalorder 2, %s22
      // Predicated region
      $region81: #{vit_forward.8} parent=5 // pred_check
        %p866 = pneg %p865
      $region82: #{vit_forward.8} parent=5 // pred_check_branch
        %868 = sbr.rel (%p866) target = $region84
      $region83: #{vit_forward.8} parent=5 // pred_region
        %s869 = ssub.s32 %s22, 2
        // Predicated region
        $region85: #{vit_forward.8} parent=83 // pred_check
          %p870 = pneg %p203
        $region86: #{vit_forward.8} parent=83 // pred_check_branch
          %872 = sbr.rel (%p870) target = $region88
        $region87: #{vit_forward.8} parent=83 // pred_region
          %s873 = sand.u32 %s188, 1
          %s874 = scalar_lea.sflag [#allocation4], %s873
          %s875 = sand.u32 %s188, 1
          %s876 = smul.addr %s875, 24
          %s877 = scalar_lea.vmem [#allocation14], %s876
          %878 = dma.done %s874, 384
        $region88: #{vit_forward.8} parent=83 // pred_fallthru
          _
      $region84: #{vit_forward.8} parent=5 // pred_fallthru
        _
    $region6: #{vit_forward.8} parent=1 // loop_footer
      %s26 = sadd.s32 1, %s22
    $region7: #{vit_forward.8} parent=1 // loop_footer_branch
      %21 = sbr.rel target = $region3
    $region8: #{vit_forward.8} parent=1 // loop_exit
      _
    %879 = vsyncpa [#allocation3], 1
    %s880 = scalar_lea.sflag [#allocation3], 1
    %881 = vsyncpa %s880, 1
    %882 = vsyncpa [#allocation6], 1
    %883 = vsyncpa [#allocation9], 1
    %884 = vsyncpa [#allocation12], 1
    %885 = vsyncpa [#allocation4], 1
    %s886 = scalar_lea.sflag [#allocation4], 1
    %887 = vsyncpa %s886, 1

// kernel: vit_forward.7
$region0: #{vit_forward.7}
  #allocation0 [shape = 'u32[]', space=smem, size = 0x4, offset = 0x4, fixed_abs, tag = 'smem constant byte address 0x4 - core index']
  #allocation1 [shape = 'u32[144,128]{1,0:T(1,128)}', space=vmem, size = 0x12000, scoped, tag = 'internal scratch']
  %s0 = inlined_call_operand.hbm [shape: f32[2,24,128], index: 0, kind: input, shape index: {}]
  %s1 = inlined_call_operand.hbm [shape: f32[1,128], index: 1, kind: input, shape index: {}]
  %s2 = inlined_call_operand.hbm [shape: f32[1,128], index: 2, kind: input, shape index: {}]
  %s3 = inlined_call_operand.hbm [shape: bf16[128,384], index: 3, kind: input, shape index: {}]
  %s4 = inlined_call_operand.hbm [shape: bf16[128,128], index: 4, kind: input, shape index: {}]
  %s5 = inlined_call_operand.hbm [shape: f32[1,128], index: 5, kind: input, shape index: {}]
  %s6 = inlined_call_operand.hbm [shape: f32[2,24,128], index: 6, kind: output, shape index: {}]
  %s7 = sld [smem:[#allocation0]]
  $region81: #{vit_forward.7} parent=0
    _
  %s9 = ssub.s32 1, %s7
  %s10 = scalar_select 0, %s9, %s7
  $region1: #{vit_forward.7} parent=0
    #allocation2 [shape = 'u8[24576]{0}', space=vmem, size = 0x6000, scoped, tag = 'input window, operand 0']
    #allocation3 [shape = 's32[2]{0}', space=sflag, size = 0x8, scoped, tag = 'scoped memory for vit_forward.7']
    #allocation4 [shape = 's32[2]{0}', space=sflag, size = 0x8, scoped, tag = 'scoped memory for vit_forward.7']
    #allocation5 [shape = 'u8[512]{0}', space=vmem, size = 0x400, scoped, tag = 'input window, operand 1, single buffered']
    #allocation6 [shape = 's32[1]{0}', space=sflag, size = 0x4, scoped, tag = 'scoped memory for vit_forward.7']
    #allocation7 [shape = 'u8[512]{0}', space=vmem, size = 0x400, scoped, tag = 'input window, operand 2, single buffered']
    #allocation8 [shape = 'u8[98304]{0}', space=vmem, size = 0x18000, scoped, tag = 'input window, operand 3, single buffered']
    #allocation9 [shape = 's32[1]{0}', space=sflag, size = 0x4, scoped, tag = 'scoped memory for vit_forward.7']
    #allocation10 [shape = 'u8[32768]{0}', space=vmem, size = 0x8000, scoped, tag = 'input window, operand 4, single buffered']
    #allocation11 [shape = 'u8[512]{0}', space=vmem, size = 0x400, scoped, tag = 'input window, operand 5, single buffered']
    #allocation12 [shape = 's32[1]{0}', space=sflag, size = 0x4, scoped, tag = 'scoped memory for vit_forward.7']
    #allocation13 [shape = 'u8[24576]{0}', space=vmem, size = 0x6000, scoped, tag = 'output window, operand 0']
    %11 = vsyncpa [#allocation3], 0
    %s12 = scalar_lea.sflag [#allocation3], 1
    %13 = vsyncpa %s12, 0
    %14 = vsyncpa [#allocation6], 0
    %15 = vsyncpa [#allocation9], 0
    %16 = vsyncpa [#allocation12], 0
    %17 = vsyncpa [#allocation4], 0
    %s18 = scalar_lea.sflag [#allocation4], 1
    %19 = vsyncpa %s18, 0
    loop: start=0, step=1, limit=4
    $region2: #{vit_forward.7} parent=1 // loop_pre_header
      _
    $region3: #{vit_forward.7} parent=1 // loop_header
      %s21 = sphi 0, %s25
      %p22 = scmp.ge.s32.totalorder %s21, 4
      %s31 = sphi 0, %s33
      %s34 = sphi 0, %s31
      %s35 = sphi 0, %s34
      %s51 = sphi 0, %s35
      %s55 = sphi 0, %s55
      %s57 = sphi 0, %s55
      %s58 = sphi 0, %s57
      %s72 = sphi 0, %s58
      %s76 = sphi 0, %s76
      %s78 = sphi 0, %s76
      %s79 = sphi 0, %s78
      %s93 = sphi 0, %s79
      %s97 = sphi 0, %s97
      %s99 = sphi 0, %s97
      %s100 = sphi 0, %s99
      %s114 = sphi 0, %s100
      %s118 = sphi 0, %s118
      %s120 = sphi 0, %s118
      %s121 = sphi 0, %s120
      %s135 = sphi 0, %s121
      %s139 = sphi 0, %s139
      %s141 = sphi 0, %s139
      %s142 = sphi 0, %s141
      %s156 = sphi 0, %s142
      %s162 = sphi 0, %s164
      %s165 = sphi 0, %s162
      %s166 = sphi 0, %s165
      %s182 = sphi 0, %s166
    $region4: #{vit_forward.7} parent=1 // loop_header_branch
      %24 = sbr.rel (%p22) target = $region8
    $region5: #{vit_forward.7} parent=1 // loop_body
      %s26 = ssub.s32 %s21, 1
      %s27 = ssub.s32 %s21, 2
      %s28 = sadd.s32 %s21, 1
      %s29 = ssub.s32 %s21, %s28
      %p30 = scmp.eq.s32.totalorder %s29, 0
      %s32 = sadd.s32 %s31, 1
      %s33 = scalar_select %p30, %s31, %s32
      %p36 = pneg %p30
      %p37 = scmp.eq.s32.totalorder %s21, 1
      %p38 = por %p36, %p37
      %p39 = scmp.ne.s32.totalorder %s31, %s34
      %p40 = scmp.eq.s32.totalorder %s21, 0
      %p41 = por %p39, %p40
      %p42 = scmp.ne.s32.totalorder %s31, %s34
      %p43 = scmp.eq.s32.totalorder %s26, 1
      %p44 = por %p42, %p43
      %p45 = scmp.ne.s32.totalorder %s34, %s35
      %p46 = scmp.eq.s32.totalorder %s26, 0
      %p47 = por %p45, %p46
      %p48 = scmp.ne.s32.totalorder %s34, %s35
      %p49 = scmp.eq.s32.totalorder %s27, 1
      %p50 = por %p48, %p49
      %p52 = scmp.ne.s32.totalorder %s35, %s51
      %p53 = scmp.eq.s32.totalorder %s27, 0
      %p54 = por %p52, %p53
      %s56 = sadd.s32 %s55, 1
      %p59 = scmp.eq.s32.totalorder %s21, 1
      %p60 = scmp.ne.s32.totalorder %s55, %s57
      %p61 = scmp.eq.s32.totalorder %s21, 0
      %p62 = por %p60, %p61
      %p63 = scmp.ne.s32.totalorder %s55, %s57
      %p64 = scmp.eq.s32.totalorder %s26, 1
      %p65 = por %p63, %p64
      %p66 = scmp.ne.s32.totalorder %s57, %s58
      %p67 = scmp.eq.s32.totalorder %s26, 0
      %p68 = por %p66, %p67
      %p69 = scmp.ne.s32.totalorder %s57, %s58
      %p70 = scmp.eq.s32.totalorder %s27, 1
      %p71 = por %p69, %p70
      %p73 = scmp.ne.s32.totalorder %s58, %s72
      %p74 = scmp.eq.s32.totalorder %s27, 0
      %p75 = por %p73, %p74
      %s77 = sadd.s32 %s76, 1
      %p80 = scmp.eq.s32.totalorder %s21, 1
      %p81 = scmp.ne.s32.totalorder %s76, %s78
      %p82 = scmp.eq.s32.totalorder %s21, 0
      %p83 = por %p81, %p82
      %p84 = scmp.ne.s32.totalorder %s76, %s78
      %p85 = scmp.eq.s32.totalorder %s26, 1
      %p86 = por %p84, %p85
      %p87 = scmp.ne.s32.totalorder %s78, %s79
      %p88 = scmp.eq.s32.totalorder %s26, 0
      %p89 = por %p87, %p88
      %p90 = scmp.ne.s32.totalorder %s78, %s79
      %p91 = scmp.eq.s32.totalorder %s27, 1
      %p92 = por %p90, %p91
      %p94 = scmp.ne.s32.totalorder %s79, %s93
      %p95 = scmp.eq.s32.totalorder %s27, 0
      %p96 = por %p94, %p95
      %s98 = sadd.s32 %s97, 1
      %p101 = scmp.eq.s32.totalorder %s21, 1
      %p102 = scmp.ne.s32.totalorder %s97, %s99
      %p103 = scmp.eq.s32.totalorder %s21, 0
      %p104 = por %p102, %p103
      %p105 = scmp.ne.s32.totalorder %s97, %s99
      %p106 = scmp.eq.s32.totalorder %s26, 1
      %p107 = por %p105, %p106
      %p108 = scmp.ne.s32.totalorder %s99, %s100
      %p109 = scmp.eq.s32.totalorder %s26, 0
      %p110 = por %p108, %p109
      %p111 = scmp.ne.s32.totalorder %s99, %s100
      %p112 = scmp.eq.s32.totalorder %s27, 1
      %p113 = por %p111, %p112
      %p115 = scmp.ne.s32.totalorder %s100, %s114
      %p116 = scmp.eq.s32.totalorder %s27, 0
      %p117 = por %p115, %p116
      %s119 = sadd.s32 %s118, 1
      %p122 = scmp.eq.s32.totalorder %s21, 1
      %p123 = scmp.ne.s32.totalorder %s118, %s120
      %p124 = scmp.eq.s32.totalorder %s21, 0
      %p125 = por %p123, %p124
      %p126 = scmp.ne.s32.totalorder %s118, %s120
      %p127 = scmp.eq.s32.totalorder %s26, 1
      %p128 = por %p126, %p127
      %p129 = scmp.ne.s32.totalorder %s120, %s121
      %p130 = scmp.eq.s32.totalorder %s26, 0
      %p131 = por %p129, %p130
      %p132 = scmp.ne.s32.totalorder %s120, %s121
      %p133 = scmp.eq.s32.totalorder %s27, 1
      %p134 = por %p132, %p133
      %p136 = scmp.ne.s32.totalorder %s121, %s135
      %p137 = scmp.eq.s32.totalorder %s27, 0
      %p138 = por %p136, %p137
      %s140 = sadd.s32 %s139, 1
      %p143 = scmp.eq.s32.totalorder %s21, 1
      %p144 = scmp.ne.s32.totalorder %s139, %s141
      %p145 = scmp.eq.s32.totalorder %s21, 0
      %p146 = por %p144, %p145
      %p147 = scmp.ne.s32.totalorder %s139, %s141
      %p148 = scmp.eq.s32.totalorder %s26, 1
      %p149 = por %p147, %p148
      %p150 = scmp.ne.s32.totalorder %s141, %s142
      %p151 = scmp.eq.s32.totalorder %s26, 0
      %p152 = por %p150, %p151
      %p153 = scmp.ne.s32.totalorder %s141, %s142
      %p154 = scmp.eq.s32.totalorder %s27, 1
      %p155 = por %p153, %p154
      %p157 = scmp.ne.s32.totalorder %s142, %s156
      %p158 = scmp.eq.s32.totalorder %s27, 0
      %p159 = por %p157, %p158
      %s160 = ssub.s32 %s21, %s28
      %p161 = scmp.eq.s32.totalorder %s160, 0
      %s163 = sadd.s32 %s162, 1
      %s164 = scalar_select %p161, %s162, %s163
      %p167 = pneg %p161
      %p168 = scmp.eq.s32.totalorder %s21, 1
      %p169 = por %p167, %p168
      %p170 = scmp.ne.s32.totalorder %s162, %s165
      %p171 = scmp.eq.s32.totalorder %s21, 0
      %p172 = por %p170, %p171
      %p173 = scmp.ne.s32.totalorder %s162, %s165
      %p174 = scmp.eq.s32.totalorder %s26, 1
      %p175 = por %p173, %p174
      %p176 = scmp.ne.s32.totalorder %s165, %s166
      %p177 = scmp.eq.s32.totalorder %s26, 0
      %p178 = por %p176, %p177
      %p179 = scmp.ne.s32.totalorder %s165, %s166
      %p180 = scmp.eq.s32.totalorder %s27, 1
      %p181 = por %p179, %p180
      %p183 = scmp.ne.s32.totalorder %s166, %s182
      %p184 = scmp.eq.s32.totalorder %s27, 0
      %p185 = por %p183, %p184
      %p186 = scmp.le.s32.totalorder 1, %s21
      %p187 = scmp.lt.s32.totalorder %s21, 3
      %p188 = pnand %p186, %p187
      %p189 = pneg %p188
      // Predicated region
      $region9: #{vit_forward.7} parent=5 // pred_check
        _
      $region10: #{vit_forward.7} parent=5 // pred_check_branch
        %191 = sbr.rel (%p188) target = $region12
      $region11: #{vit_forward.7} parent=5 // pred_region
        %s192 = ssub.s32 %s21, 1
        // Predicated region
        $region13: #{vit_forward.7} parent=11 // pred_check
          %p193 = pneg %p68
        $region14: #{vit_forward.7} parent=11 // pred_check_branch
          %195 = sbr.rel (%p193) target = $region16
        $region15: #{vit_forward.7} parent=11 // pred_region
          %s197 = ssub.s32 16, 16
          %198 = vsyncadd [#allocation6], %s197
          %s200 = sshll.u32 [#allocation5], 4
          %s201 = int_to_ptr.vmem [resolvable:$true] %s200
          %203 = dma.hbm_to_vmem [thread:$0]  %s1, 16, %s201, [#allocation6]
        $region16: #{vit_forward.7} parent=11 // pred_fallthru
          _
        // Predicated region
        $region17: #{vit_forward.7} parent=11 // pred_check
          %p204 = pneg %p89
        $region18: #{vit_forward.7} parent=11 // pred_check_branch
          %206 = sbr.rel (%p204) target = $region20
        $region19: #{vit_forward.7} parent=11 // pred_region
          %s208 = ssub.s32 16, 16
          %209 = vsyncadd [#allocation6], %s208
          %s211 = sshll.u32 [#allocation7], 4
          %s212 = int_to_ptr.vmem [resolvable:$true] %s211
          %214 = dma.hbm_to_vmem [thread:$0]  %s2, 16, %s212, [#allocation6]
        $region20: #{vit_forward.7} parent=11 // pred_fallthru
          _
        // Predicated region
        $region21: #{vit_forward.7} parent=11 // pred_check
          %p215 = pneg %p110
        $region22: #{vit_forward.7} parent=11 // pred_check_branch
          %217 = sbr.rel (%p215) target = $region24
        $region23: #{vit_forward.7} parent=11 // pred_region
          %s219 = ssub.s32 3072, 3072
          %220 = vsyncadd [#allocation9], %s219
          %s221 = sshll.u32 [#allocation8], 4
          %s222 = int_to_ptr.vmem [resolvable:$true] %s221
          %227 = dma.hbm_to_vmem [thread:$0]  %s3, 3072, %s222, [#allocation9], 192, 192, 12
        $region24: #{vit_forward.7} parent=11 // pred_fallthru
          _
        // Predicated region
        $region25: #{vit_forward.7} parent=11 // pred_check
          %p228 = pneg %p131
        $region26: #{vit_forward.7} parent=11 // pred_check_branch
          %230 = sbr.rel (%p228) target = $region28
        $region27: #{vit_forward.7} parent=11 // pred_region
          %s232 = ssub.s32 1024, 1024
          %233 = vsyncadd [#allocation9], %s232
          %s234 = sshll.u32 [#allocation10], 4
          %s235 = int_to_ptr.vmem [resolvable:$true] %s234
          %240 = dma.hbm_to_vmem [thread:$0]  %s4, 1024, %s235, [#allocation9], 64, 64, 4
        $region28: #{vit_forward.7} parent=11 // pred_fallthru
          _
        // Predicated region
        $region29: #{vit_forward.7} parent=11 // pred_check
          %p241 = pneg %p152
        $region30: #{vit_forward.7} parent=11 // pred_check_branch
          %243 = sbr.rel (%p241) target = $region32
        $region31: #{vit_forward.7} parent=11 // pred_region
          %s245 = ssub.s32 16, 16
          %246 = vsyncadd [#allocation12], %s245
          %s248 = sshll.u32 [#allocation11], 4
          %s249 = int_to_ptr.vmem [resolvable:$true] %s248
          %251 = dma.hbm_to_vmem [thread:$0]  %s5, 16, %s249, [#allocation12]
        $region32: #{vit_forward.7} parent=11 // pred_fallthru
          _
      $region12: #{vit_forward.7} parent=5 // pred_fallthru
        _
      %p252 = scmp.lt.s32.totalorder %s21, 2
      // Predicated region
      $region33: #{vit_forward.7} parent=5 // pred_check
        %p253 = pneg %p252
      $region34: #{vit_forward.7} parent=5 // pred_check_branch
        %255 = sbr.rel (%p253) target = $region36
      $region35: #{vit_forward.7} parent=5 // pred_region
        // Predicated region
        $region37: #{vit_forward.7} parent=35 // pred_check
          %p256 = pneg %p41
        $region38: #{vit_forward.7} parent=35 // pred_check_branch
          %258 = sbr.rel (%p256) target = $region40
        $region39: #{vit_forward.7} parent=35 // pred_region
          %s259 = sand.u32 %s31, 1
          %s260 = scalar_lea.sflag [#allocation3], %s259
          %s261 = sand.u32 %s31, 1
          %s262 = smul.addr %s261, 24
          %s263 = scalar_lea.vmem [#allocation2], %s262
          %s265 = ssub.s32 384, 384
          %266 = vsyncadd %s260, %s265
          %s267 = smul.addr %s21, 3
          %s268 = smul.addr %s267, 128
          %s269 = scalar_lea.hbm %s0, %s268
          %s270 = sshll.u32 %s263, 4
          %s271 = int_to_ptr.vmem [resolvable:$true] %s270
          %276 = dma.hbm_to_vmem [thread:$0]  %s269, 384, %s271, %s260, 128, 128, 8
        $region40: #{vit_forward.7} parent=35 // pred_fallthru
          _
      $region36: #{vit_forward.7} parent=5 // pred_fallthru
        _
      %p277 = scmp.le.s32.totalorder 1, %s21
      %p278 = scmp.lt.s32.totalorder %s21, 3
      %p279 = pnand %p277, %p278
      %p280 = pneg %p279
      // Predicated region
      $region41: #{vit_forward.7} parent=5 // pred_check
        _
      $region42: #{vit_forward.7} parent=5 // pred_check_branch
        %282 = sbr.rel (%p279) target = $region44
      $region43: #{vit_forward.7} parent=5 // pred_region
        %s283 = ssub.s32 %s21, 1
        %s284 = sand.u32 %s34, 1
        %s285 = scalar_lea.sflag [#allocation3], %s284
        %s286 = sand.u32 %s34, 1
        %s287 = smul.addr %s286, 24
        %s288 = scalar_lea.vmem [#allocation2], %s287
        // Predicated region
        $region45: #{vit_forward.7} parent=43 // pred_check
          %p289 = pneg %p47
        $region46: #{vit_forward.7} parent=43 // pred_check_branch
          %291 = sbr.rel (%p289) target = $region48
        $region47: #{vit_forward.7} parent=43 // pred_region
          %292 = dma.done %s285, 384
        $region48: #{vit_forward.7} parent=43 // pred_fallthru
          _
        // Predicated region
        $region49: #{vit_forward.7} parent=43 // pred_check
          %p293 = pneg %p68
        $region50: #{vit_forward.7} parent=43 // pred_check_branch
          %295 = sbr.rel (%p293) target = $region52
        $region51: #{vit_forward.7} parent=43 // pred_region
          %296 = dma.done [#allocation6], 16
        $region52: #{vit_forward.7} parent=43 // pred_fallthru
          _
        // Predicated region
        $region53: #{vit_forward.7} parent=43 // pred_check
          %p297 = pneg %p89
        $region54: #{vit_forward.7} parent=43 // pred_check_branch
          %299 = sbr.rel (%p297) target = $region56
        $region55: #{vit_forward.7} parent=43 // pred_region
          %300 = dma.done [#allocation6], 16
        $region56: #{vit_forward.7} parent=43 // pred_fallthru
          _
        // Predicated region
        $region57: #{vit_forward.7} parent=43 // pred_check
          %p301 = pneg %p110
        $region58: #{vit_forward.7} parent=43 // pred_check_branch
          %303 = sbr.rel (%p301) target = $region60
        $region59: #{vit_forward.7} parent=43 // pred_region
          %304 = dma.done [#allocation9], 3072
        $region60: #{vit_forward.7} parent=43 // pred_fallthru
          _
        // Predicated region
        $region61: #{vit_forward.7} parent=43 // pred_check
          %p305 = pneg %p131
        $region62: #{vit_forward.7} parent=43 // pred_check_branch
          %307 = sbr.rel (%p305) target = $region64
        $region63: #{vit_forward.7} parent=43 // pred_region
          %308 = dma.done [#allocation9], 1024
        $region64: #{vit_forward.7} parent=43 // pred_fallthru
          _
        // Predicated region
        $region65: #{vit_forward.7} parent=43 // pred_check
          %p309 = pneg %p152
        $region66: #{vit_forward.7} parent=43 // pred_check_branch
          %311 = sbr.rel (%p309) target = $region68
        $region67: #{vit_forward.7} parent=43 // pred_region
          %312 = dma.done [#allocation12], 16
        $region68: #{vit_forward.7} parent=43 // pred_fallthru
          _
        %s313 = sand.u32 %s34, 1
        %s314 = scalar_lea.sflag [#allocation3], %s313
        %s315 = sand.u32 %s34, 1
        %s316 = smul.addr %s315, 24
        %s317 = scalar_lea.vmem [#allocation2], %s316
        %p318 = pneg %p47
        %p319 = pneg %p44
        %p320 = pneg %p68
        %p321 = pneg %p65
        %p322 = pneg %p89
        %p323 = pneg %p86
        %p324 = pneg %p110
        %p325 = pneg %p107
        %p326 = pneg %p131
        %p327 = pneg %p128
        %p328 = pneg %p152
        %p329 = pneg %p149
        %p330 = pneg %p178
        %p331 = pneg %p175
        %s332 = sand.u32 %s165, 1
        %s333 = scalar_lea.sflag [#allocation4], %s332
        %s334 = sand.u32 %s165, 1
        %s335 = smul.addr %s334, 24
        %s336 = scalar_lea.vmem [#allocation13], %s335
        %v338 = vld [vmem:[%s288] sm:$0xff]
        %v339 = vld [vmem:[%s288 + $0x8] sm:$0xff]
        %v340 = vld [vmem:[%s288 + $0x10] sm:$0xff]
        %v341 = vld [vmem:[#allocation5] sm:$0x1]
        %v342 = vld [vmem:[#allocation7] sm:$0x1]
        %343 = vadd.xlane.f32.xlu0 %v338
        %v344 = vpop.xlane.xlu0 %343
        %345 = vadd.xlane.f32.xlu0 %v339
        %v346 = vpop.xlane.xlu0 %345
        %347 = vadd.xlane.f32.xlu0 %v340
        %v348 = vpop.xlane.xlu0 %347
        %v349 = vrcp.pop 128.0
        %v350 = vmul.f32 %v344, %v349
        %v351 = vmul.f32 %v346, %v349
        %v352 = vmul.f32 %v348, %v349
        %v353 = vsub.f32 %v338, %v350
        %v354 = vsub.f32 %v339, %v351
        %v355 = vsub.f32 %v340, %v352
        %v356 = vmul.f32 %v353, %v353
        %v357 = vmul.f32 %v354, %v354
        %v358 = vmul.f32 %v355, %v355
        %359 = vadd.xlane.f32.xlu0 %v356
        %v360 = vpop.xlane.xlu0 %359
        %361 = vadd.xlane.f32.xlu0 %v357
        %v362 = vpop.xlane.xlu0 %361
        %363 = vadd.xlane.f32.xlu0 %v358
        %v364 = vpop.xlane.xlu0 %363
        %v365 = vmul.f32 %v360, %v349
        %v366 = vmul.f32 %v362, %v349
        %v367 = vmul.f32 %v364, %v349
        %v368 = vadd.f32 %v365, 1e-05
        %v369 = vadd.f32 %v366, 1e-05
        %v370 = vadd.f32 %v367, 1e-05
        %v371 = vrsqrt.pop %v368
        %v372 = vrsqrt.pop %v369
        %v373 = vrsqrt.pop %v370
        %v374 = vmul.f32 %v353, %v371
        %v375 = vmul.f32 %v354, %v372
        %v376 = vmul.f32 %v355, %v373
        %v378 = vlaneseq
        %v379 = vshrl.u32 %v378, 7
        %v380 = vsub.s32 0, %v379
        %v381 = vrot.slane %v341, %v380
        %v383 = vmul.f32 %v374, %v381
        %v384 = vmul.f32 %v375, %v381
        %v385 = vmul.f32 %v376, %v381
        %v387 = vlaneseq
        %v388 = vshrl.u32 %v387, 7
        %v389 = vsub.s32 0, %v388
        %v390 = vrot.slane %v342, %v389
        %v392 = vadd.f32 %v383, %v390
        %v393 = vadd.f32 %v384, %v390
        %v394 = vadd.f32 %v385, %v390
        %v395 = vpack.c.bf16 %v393, %v392
        %v396 = vpack.c.bf16 %v394, %v394
        %v397 = vld [vmem:[#allocation8] sm:$0xff]
        %v398 = vld [vmem:[#allocation8 + $0x8] sm:$0xf]
        %v399 = vld [vmem:[#allocation8 + $0xc] sm:$0xff]
        %v400 = vld [vmem:[#allocation8 + $0x14] sm:$0xf]
        %v401 = vld [vmem:[#allocation8 + $0x18] sm:$0xff]
        %v402 = vld [vmem:[#allocation8 + $0x20] sm:$0xf]
        %v403 = vld [vmem:[#allocation8 + $0x24] sm:$0xff]
        %v404 = vld [vmem:[#allocation8 + $0x2c] sm:$0xf]
        %v405 = vld [vmem:[#allocation8 + $0x30] sm:$0xff]
        %v406 = vld [vmem:[#allocation8 + $0x38] sm:$0xf]
        %v407 = vld [vmem:[#allocation8 + $0x3c] sm:$0xff]
        %v408 = vld [vmem:[#allocation8 + $0x44] sm:$0xf]
        %v409 = vld [vmem:[#allocation8 + $0x48] sm:$0xff]
        %v410 = vld [vmem:[#allocation8 + $0x50] sm:$0xf]
        %v411 = vld [vmem:[#allocation8 + $0x54] sm:$0xff]
        %v412 = vld [vmem:[#allocation8 + $0x5c] sm:$0xf]
        %v413 = vld [vmem:[#allocation8 + $0x60] sm:$0xff]
        %v414 = vld [vmem:[#allocation8 + $0x68] sm:$0xf]
        %v415 = vld [vmem:[#allocation8 + $0x6c] sm:$0xff]
        %v416 = vld [vmem:[#allocation8 + $0x74] sm:$0xf]
        %v417 = vld [vmem:[#allocation8 + $0x78] sm:$0xff]
        %v418 = vld [vmem:[#allocation8 + $0x80] sm:$0xf]
        %v419 = vld [vmem:[#allocation8 + $0x84] sm:$0xff]
        %v420 = vld [vmem:[#allocation8 + $0x8c] sm:$0xf]
        %v421 = vld [vmem:[#allocation8 + $0x90] sm:$0xff]
        %v422 = vld [vmem:[#allocation8 + $0x98] sm:$0xf]
        %v423 = vld [vmem:[#allocation8 + $0x9c] sm:$0xff]
        %v424 = vld [vmem:[#allocation8 + $0xa4] sm:$0xf]
        %v425 = vld [vmem:[#allocation8 + $0xa8] sm:$0xff]
        %v426 = vld [vmem:[#allocation8 + $0xb0] sm:$0xf]
        %v427 = vld [vmem:[#allocation8 + $0xb4] sm:$0xff]
        %v428 = vld [vmem:[#allocation8 + $0xbc] sm:$0xf]
        %v461 = vunpack.c.l.b16 %v397
        %v462 = vunpack.c.h.b16 %v397
        %v463 = vunpack.c.l.b16 %v398
        %v464 = vunpack.c.l.b16 %v399
        %v465 = vunpack.c.h.b16 %v399
        %v466 = vunpack.c.l.b16 %v400
        %v467 = vunpack.c.l.b16 %v401
        %v468 = vunpack.c.h.b16 %v401
        %v469 = vunpack.c.l.b16 %v402
        %v470 = vunpack.c.l.b16 %v403
        %v471 = vunpack.c.h.b16 %v403
        %v472 = vunpack.c.l.b16 %v404
        %v473 = vunpack.c.l.b16 %v405
        %v474 = vunpack.c.h.b16 %v405
        %v475 = vunpack.c.l.b16 %v406
        %v476 = vunpack.c.l.b16 %v407
        %v477 = vunpack.c.h.b16 %v407
        %v478 = vunpack.c.l.b16 %v408
        %v479 = vunpack.c.l.b16 %v409
        %v480 = vunpack.c.h.b16 %v409
        %v481 = vunpack.c.l.b16 %v410
        %v482 = vunpack.c.l.b16 %v411
        %v483 = vunpack.c.h.b16 %v411
        %v484 = vunpack.c.l.b16 %v412
        %v485 = vunpack.c.l.b16 %v413
        %v486 = vunpack.c.h.b16 %v413
        %v487 = vunpack.c.l.b16 %v414
        %v488 = vunpack.c.l.b16 %v415
        %v489 = vunpack.c.h.b16 %v415
        %v490 = vunpack.c.l.b16 %v416
        %v491 = vunpack.c.l.b16 %v417
        %v492 = vunpack.c.h.b16 %v417
        %v493 = vunpack.c.l.b16 %v418
        %v494 = vunpack.c.l.b16 %v419
        %v495 = vunpack.c.h.b16 %v419
        %v496 = vunpack.c.l.b16 %v420
        %v497 = vunpack.c.l.b16 %v421
        %v498 = vunpack.c.h.b16 %v421
        %v499 = vunpack.c.l.b16 %v422
        %v500 = vunpack.c.l.b16 %v423
        %v501 = vunpack.c.h.b16 %v423
        %v502 = vunpack.c.l.b16 %v424
        %v503 = vunpack.c.l.b16 %v425
        %v504 = vunpack.c.h.b16 %v425
        %v505 = vunpack.c.l.b16 %v426
        %v506 = vunpack.c.l.b16 %v427
        %v507 = vunpack.c.h.b16 %v427
        %v508 = vunpack.c.l.b16 %v428
        %v509 = vpack.c.b16 %v464, %v461
        %v510 = vpack.c.b16 %v465, %v462
        %v511 = vpack.c.b16 %v466, %v463
        %v512 = vpack.c.b16 %v470, %v467
        %v513 = vpack.c.b16 %v471, %v468
        %v514 = vpack.c.b16 %v472, %v469
        %v515 = vpack.c.b16 %v476, %v473
        %v516 = vpack.c.b16 %v477, %v474
        %v517 = vpack.c.b16 %v478, %v475
        %v518 = vpack.c.b16 %v482, %v479
        %v519 = vpack.c.b16 %v483, %v480
        %v520 = vpack.c.b16 %v484, %v481
        %v521 = vpack.c.b16 %v488, %v485
        %v522 = vpack.c.b16 %v489, %v486
        %v523 = vpack.c.b16 %v490, %v487
        %v524 = vpack.c.b16 %v494, %v491
        %v525 = vpack.c.b16 %v495, %v492
        %v526 = vpack.c.b16 %v496, %v493
        %v527 = vpack.c.b16 %v500, %v497
        %v528 = vpack.c.b16 %v501, %v498
        %v529 = vpack.c.b16 %v502, %v499
        %v530 = vpack.c.b16 %v506, %v503
        %v531 = vpack.c.b16 %v507, %v504
        %v532 = vpack.c.b16 %v508, %v505
        %557 = vmatprep.subr.bf16.mxu0 %v510
        %558 = vmatpush1.bf16.msra.mxu0 %v509
        %559 = vmatprep.subr.bf16.mxu0 %v513
        %560 = vmatpush1.bf16.msra.mxu0 %v512
        %561 = vmatprep.subr.bf16.mxu0 %v516
        %562 = vmatpush1.bf16.msra.mxu0 %v515
        %563 = vmatprep.subr.bf16.mxu0 %v519
        %564 = vmatpush1.bf16.msra.mxu0 %v518
        %565 = vmatprep.subr.bf16.mxu0 %v522
        %566 = vmatpush1.bf16.msra.mxu0 %v521
        %567 = vmatprep.subr.bf16.mxu0 %v525
        %568 = vmatpush1.bf16.msra.mxu0 %v524
        %569 = vmatprep.subr.bf16.mxu0 %v528
        %570 = vmatpush1.bf16.msra.mxu0 %v527
        %571 = vmatprep.subr.bf16.mxu0 %v531
        %572 = vmatpush1.bf16.msra.mxu0 %v530
        %573 = vmatprep.subr.bf16.mxu0 0
        %574 = vmatpush1.bf16.msra.mxu0 0
        %575 = vmatprep.subr.bf16.mxu0 0
        %576 = vmatpush1.bf16.msra.mxu0 0
        %577 = vmatprep.subr.bf16.mxu0 0
        %578 = vmatpush1.bf16.msra.mxu0 0
        %579 = vmatprep.subr.bf16.mxu0 0
        %580 = vmatpush1.bf16.msra.mxu0 0
        %581 = vmatprep.subr.bf16.mxu0 0
        %582 = vmatpush1.bf16.msra.mxu0 0
        %583 = vmatprep.subr.bf16.mxu0 0
        %584 = vmatpush1.bf16.msra.mxu0 0
        %585 = vmatprep.subr.bf16.mxu0 0
        %586 = vmatpush1.bf16.msra.mxu0 0
        %587 = vmatprep.subr.bf16.mxu0 0
        %588 = vmatpush1.bf16.msra.mxu0 0
        %589 = vmatprep.mubr.bf16.mxu0 0
        %590 = vmatmul.mubr.bf16.gmra.mrb[0].mxu0 %v395
        %v591 = vpop.f32.mrb[0].mxu0
        %v592 = vadd.f32 0.0, %v591
        %v593 = vpop.f32.mrb[0].mxu0
        %v594 = vadd.f32 0.0, %v593
        %v595 = vpop.f32.mrb[0].mxu0
        %v596 = vadd.f32 0.0, %v595
        %v597 = vpop.f32.mrb[0].mxu0
        %v598 = vadd.f32 0.0, %v597
        %599 = vmatprep.mubr.bf16.mxu0 0
        %600 = vmatmul.mubr.bf16.gmra.mrb[0].mxu0 %v396
        %v601 = vpop.f32.mrb[0].mxu0
        %v602 = vadd.f32 0.0, %v601
        %v603 = vpop.f32.mrb[0].mxu0
        %v604 = vadd.f32 0.0, %v603
        %v605 = vpop.f32.mrb[0].mxu0
        %v606 = vpop.f32.mrb[0].mxu0
        %607 = vdwg.mxu0
        %608 = vmatprep.subr.bf16.mxu0 0
        %609 = vmatpush1.bf16.msra.mxu0 %v511
        %610 = vmatprep.subr.bf16.mxu0 0
        %611 = vmatpush1.bf16.msra.mxu0 %v514
        %612 = vmatprep.subr.bf16.mxu0 0
        %613 = vmatpush1.bf16.msra.mxu0 %v517
        %614 = vmatprep.subr.bf16.mxu0 0
        %615 = vmatpush1.bf16.msra.mxu0 %v520
        %616 = vmatprep.subr.bf16.mxu0 0
        %617 = vmatpush1.bf16.msra.mxu0 %v523
        %618 = vmatprep.subr.bf16.mxu0 0
        %619 = vmatpush1.bf16.msra.mxu0 %v526
        %620 = vmatprep.subr.bf16.mxu0 0
        %621 = vmatpush1.bf16.msra.mxu0 %v529
        %622 = vmatprep.subr.bf16.mxu0 0
        %623 = vmatpush1.bf16.msra.mxu0 %v532
        %624 = vmatprep.subr.bf16.mxu0 0
        %625 = vmatpush1.bf16.msra.mxu0 0
        %626 = vmatprep.subr.bf16.mxu0 0
        %627 = vmatpush1.bf16.msra.mxu0 0
        %628 = vmatprep.subr.bf16.mxu0 0
        %629 = vmatpush1.bf16.msra.mxu0 0
        %630 = vmatprep.subr.bf16.mxu0 0
        %631 = vmatpush1.bf16.msra.mxu0 0
        %632 = vmatprep.subr.bf16.mxu0 0
        %633 = vmatpush1.bf16.msra.mxu0 0
        %634 = vmatprep.subr.bf16.mxu0 0
        %635 = vmatpush1.bf16.msra.mxu0 0
        %636 = vmatprep.subr.bf16.mxu0 0
        %637 = vmatpush1.bf16.msra.mxu0 0
        %638 = vmatprep.subr.bf16.mxu0 0
        %639 = vmatpush1.bf16.msra.mxu0 0
        %640 = vmatprep.mubr.bf16.mxu0 0
        %641 = vmatmul.mubr.bf16.gmra.mrb[0].mxu0 %v395
        %v642 = vpop.f32.mrb[0].mxu0
        %v643 = vadd.f32 0.0, %v642
        %v644 = vpop.f32.mrb[0].mxu0
        %v645 = vpop.f32.mrb[0].mxu0
        %v646 = vadd.f32 0.0, %v645
        %v647 = vpop.f32.mrb[0].mxu0
        %648 = vmatprep.mubr.bf16.mxu0 0
        %649 = vmatmul.mubr.bf16.gmra.mrb[0].mxu0 %v396
        %v650 = vpop.f32.mrb[0].mxu0
        %v651 = vadd.f32 0.0, %v650
        %v652 = vpop.f32.mrb[0].mxu0
        %v653 = vpop.f32.mrb[0].mxu0
        %v654 = vpop.f32.mrb[0].mxu0
        %655 = vdwg.mxu0
        %v656 = vpack.c.bf16 %v596, %v592
        %v657 = vpack.c.bf16 %v602, %v602
        %v658 = vpack.c.bf16 %v598, %v594
        %v659 = vpack.c.bf16 %v604, %v604
        %v660 = vpack.c.bf16 %v646, %v643
        %v661 = vpack.c.bf16 %v651, %v651
        %v662 = vlaneseq
        %v663 = vand.u32 %v662, 127
        %vm664 = vcmp.lt.s32.totalorder %v663, 17
        %v665 = vsel %vm664, 0.0, -1e+30
        %vm666 = vcmask 261120
        %v668 = vsel %vm666, %v656, 0
        %v671 = vsel %vm666, %v657, 0
        %v674 = vsel %vm666, %v658, 0
        %v677 = vsel %vm666, %v659, 0
        %679 = vmatprep.subr.bf16.mxu0 0
        %680 = vmatpush1.bf16.xpose.msra.mxu0 %v674
        %681 = vmatprep.subr.bf16.mxu0 0
        %682 = vmatpush1.bf16.xpose.msra.mxu0 %v677
        %683 = vmatprep.subr.bf16.mxu0 0
        %684 = vmatpush1.bf16.xpose.msra.mxu0 0
        %685 = vmatprep.subr.bf16.mxu0 0
        %686 = vmatpush1.bf16.xpose.msra.mxu0 0
        %687 = vmatprep.subr.bf16.mxu0 0
        %688 = vmatpush1.bf16.xpose.msra.mxu0 0
        %689 = vmatprep.subr.bf16.mxu0 0
        %690 = vmatpush1.bf16.xpose.msra.mxu0 0
        %691 = vmatprep.subr.bf16.mxu0 0
        %692 = vmatpush1.bf16.xpose.msra.mxu0 0
        %693 = vmatprep.subr.bf16.mxu0 0
        %694 = vmatpush1.bf16.xpose.msra.mxu0 0
        %695 = vmatprep.subr.bf16.mxu0 0
        %696 = vmatpush1.bf16.xpose.msra.mxu0 0
        %697 = vmatprep.subr.bf16.mxu0 0
        %698 = vmatpush1.bf16.xpose.msra.mxu0 0
        %699 = vmatprep.subr.bf16.mxu0 0
        %700 = vmatpush1.bf16.xpose.msra.mxu0 0
        %701 = vmatprep.subr.bf16.mxu0 0
        %702 = vmatpush1.bf16.xpose.msra.mxu0 0
        %703 = vmatprep.subr.bf16.mxu0 0
        %704 = vmatpush1.bf16.xpose.msra.mxu0 0
        %705 = vmatprep.subr.bf16.mxu0 0
        %706 = vmatpush1.bf16.xpose.msra.mxu0 0
        %707 = vmatprep.subr.bf16.mxu0 0
        %708 = vmatpush1.bf16.xpose.msra.mxu0 0
        %709 = vmatprep.subr.bf16.mxu0 0
        %710 = vmatpush1.bf16.xpose.msra.mxu0 0
        %711 = vmatprep.mubr.bf16.mxu0 0
        %712 = vmatmul.mubr.bf16.gmra.mrb[0].mxu0 %v668
        %v713 = vpop.f32.mrb[0].mxu0
        %v714 = vadd.f32 %v665, %v713
        %v715 = vpop.f32.mrb[0].mxu0
        %v716 = vpop.f32.mrb[0].mxu0
        %v717 = vadd.f32 %v665, %v716
        %v718 = vpop.f32.mrb[0].mxu0
        %719 = vmatprep.mubr.bf16.mxu0 0
        %720 = vmatmul.mubr.bf16.gmra.mrb[0].mxu0 %v671
        %v721 = vpop.f32.mrb[0].mxu0
        %v722 = vadd.f32 %v665, %v721
        %v723 = vpop.f32.mrb[0].mxu0
        %v724 = vpop.f32.mrb[0].mxu0
        %v725 = vpop.f32.mrb[0].mxu0
        %726 = vdwg.mxu0
        %vm727 = vcmask 195584
        %v728 = vsel %vm727, %v714, -inf
        %729 = vmax.xlane.f32.xlu0 %v728
        %v730 = vpop.xlane.xlu0 %729
        %v731 = vsel %vm727, %v717, -inf
        %732 = vmax.xlane.f32.xlu0 %v731
        %v733 = vpop.xlane.xlu0 %732
        %v734 = vsel %vm727, %v722, -inf
        %735 = vmax.xlane.f32.xlu0 %v734
        %v736 = vpop.xlane.xlu0 %735
        %v737 = vsub.f32 %v714, %v730
        %v738 = vsub.f32 %v717, %v733
        %v739 = vsub.f32 %v722, %v736
        %v740 = vmul.f32 %v737, 1.442695
        %v741 = vpow.pop %v740
        %v742 = vmul.f32 %v738, 1.442695
        %v743 = vpow.pop %v742
        %v744 = vmul.f32 %v739, 1.442695
        %v745 = vpow.pop %v744
        %v746 = vsel %vm727, %v741, 0.0
        %747 = vadd.xlane.f32.xlu0 %v746
        %v748 = vpop.xlane.xlu0 %747
        %v749 = vsel %vm727, %v743, 0.0
        %750 = vadd.xlane.f32.xlu0 %v749
        %v751 = vpop.xlane.xlu0 %750
        %v752 = vsel %vm727, %v745, 0.0
        %753 = vadd.xlane.f32.xlu0 %v752
        %v754 = vpop.xlane.xlu0 %753
        %v755 = vrcp.pop %v748
        %v756 = vrcp.pop %v751
        %v757 = vrcp.pop %v754
        %v758 = vmul.f32 %v741, %v755
        %v759 = vmul.f32 %v743, %v756
        %v760 = vmul.f32 %v745, %v757
        %v761 = vpack.c.bf16 %v759, %v758
        %v762 = vpack.c.bf16 %v760, %v760
        %v764 = vsel %vm727, %v761, 0
        %v767 = vsel %vm727, %v762, 0
        %vm769 = vcmask 1043456
        %v771 = vsel %vm769, %v661, 0
        %773 = vmatprep.subr.bf16.mxu0 0
        %774 = vmatpush1.bf16.msra.mxu0 %v660
        %775 = vmatprep.subr.bf16.mxu0 0
        %776 = vmatpush1.bf16.msra.mxu0 %v771
        %777 = vmatprep.subr.bf16.mxu0 0
        %778 = vmatpush1.bf16.msra.mxu0 0
        %779 = vmatprep.subr.bf16.mxu0 0
        %780 = vmatpush1.bf16.msra.mxu0 0
        %781 = vmatprep.subr.bf16.mxu0 0
        %782 = vmatpush1.bf16.msra.mxu0 0
        %783 = vmatprep.subr.bf16.mxu0 0
        %784 = vmatpush1.bf16.msra.mxu0 0
        %785 = vmatprep.subr.bf16.mxu0 0
        %786 = vmatpush1.bf16.msra.mxu0 0
        %787 = vmatprep.subr.bf16.mxu0 0
        %788 = vmatpush1.bf16.msra.mxu0 0
        %789 = vmatprep.subr.bf16.mxu0 0
        %790 = vmatpush1.bf16.msra.mxu0 0
        %791 = vmatprep.subr.bf16.mxu0 0
        %792 = vmatpush1.bf16.msra.mxu0 0
        %793 = vmatprep.subr.bf16.mxu0 0
        %794 = vmatpush1.bf16.msra.mxu0 0
        %795 = vmatprep.subr.bf16.mxu0 0
        %796 = vmatpush1.bf16.msra.mxu0 0
        %797 = vmatprep.subr.bf16.mxu0 0
        %798 = vmatpush1.bf16.msra.mxu0 0
        %799 = vmatprep.subr.bf16.mxu0 0
        %800 = vmatpush1.bf16.msra.mxu0 0
        %801 = vmatprep.subr.bf16.mxu0 0
        %802 = vmatpush1.bf16.msra.mxu0 0
        %803 = vmatprep.subr.bf16.mxu0 0
        %804 = vmatpush1.bf16.msra.mxu0 0
        %805 = vmatprep.mubr.bf16.mxu0 0
        %806 = vmatmul.mubr.bf16.gmra.mrb[0].mxu0 %v764
        %v807 = vpop.f32.mrb[0].mxu0
        %v808 = vadd.f32 0.0, %v807
        %v809 = vpop.f32.mrb[0].mxu0
        %v810 = vpop.f32.mrb[0].mxu0
        %v811 = vadd.f32 0.0, %v810
        %v812 = vpop.f32.mrb[0].mxu0
        %813 = vmatprep.mubr.bf16.mxu0 0
        %814 = vmatmul.mubr.bf16.gmra.mrb[0].mxu0 %v767
        %v815 = vpop.f32.mrb[0].mxu0
        %v816 = vadd.f32 0.0, %v815
        %v817 = vpop.f32.mrb[0].mxu0
        %v818 = vpop.f32.mrb[0].mxu0
        %v819 = vpop.f32.mrb[0].mxu0
        %820 = vdwg.mxu0
        %823 = vrot.lane.b32.xlu0 %v656, 96
        %v824 = vpop.permute.xlu0 %823
        %825 = vrot.lane.b32.xlu0 %v657, 96
        %v826 = vpop.permute.xlu0 %825
        %829 = vrot.lane.b32.xlu0 %v658, 96
        %v830 = vpop.permute.xlu0 %829
        %831 = vrot.lane.b32.xlu0 %v659, 96
        %v832 = vpop.permute.xlu0 %831
        %v834 = vsel %vm666, %v824, 0
        %v837 = vsel %vm666, %v826, 0
        %v840 = vsel %vm666, %v830, 0
        %v843 = vsel %vm666, %v832, 0
        %845 = vmatprep.subr.bf16.mxu0 0
        %846 = vmatpush1.bf16.xpose.msra.mxu0 %v840
        %847 = vmatprep.subr.bf16.mxu0 0
        %848 = vmatpush1.bf16.xpose.msra.mxu0 %v843
        %849 = vmatprep.subr.bf16.mxu0 0
        %850 = vmatpush1.bf16.xpose.msra.mxu0 0
        %851 = vmatprep.subr.bf16.mxu0 0
        %852 = vmatpush1.bf16.xpose.msra.mxu0 0
        %853 = vmatprep.subr.bf16.mxu0 0
        %854 = vmatpush1.bf16.xpose.msra.mxu0 0
        %855 = vmatprep.subr.bf16.mxu0 0
        %856 = vmatpush1.bf16.xpose.msra.mxu0 0
        %857 = vmatprep.subr.bf16.mxu0 0
        %858 = vmatpush1.bf16.xpose.msra.mxu0 0
        %859 = vmatprep.subr.bf16.mxu0 0
        %860 = vmatpush1.bf16.xpose.msra.mxu0 0
        %861 = vmatprep.subr.bf16.mxu0 0
        %862 = vmatpush1.bf16.xpose.msra.mxu0 0
        %863 = vmatprep.subr.bf16.mxu0 0
        %864 = vmatpush1.bf16.xpose.msra.mxu0 0
        %865 = vmatprep.subr.bf16.mxu0 0
        %866 = vmatpush1.bf16.xpose.msra.mxu0 0
        %867 = vmatprep.subr.bf16.mxu0 0
        %868 = vmatpush1.bf16.xpose.msra.mxu0 0
        %869 = vmatprep.subr.bf16.mxu0 0
        %870 = vmatpush1.bf16.xpose.msra.mxu0 0
        %871 = vmatprep.subr.bf16.mxu0 0
        %872 = vmatpush1.bf16.xpose.msra.mxu0 0
        %873 = vmatprep.subr.bf16.mxu0 0
        %874 = vmatpush1.bf16.xpose.msra.mxu0 0
        %875 = vmatprep.subr.bf16.mxu0 0
        %876 = vmatpush1.bf16.xpose.msra.mxu0 0
        %877 = vmatprep.mubr.bf16.mxu0 0
        %878 = vmatmul.mubr.bf16.gmra.mrb[0].mxu0 %v834
        %v879 = vpop.f32.mrb[0].mxu0
        %v880 = vadd.f32 %v665, %v879
        %v881 = vpop.f32.mrb[0].mxu0
        %v882 = vpop.f32.mrb[0].mxu0
        %v883 = vadd.f32 %v665, %v882
        %v884 = vpop.f32.mrb[0].mxu0
        %885 = vmatprep.mubr.bf16.mxu0 0
        %886 = vmatmul.mubr.bf16.gmra.mrb[0].mxu0 %v837
        %v887 = vpop.f32.mrb[0].mxu0
        %v888 = vadd.f32 %v665, %v887
        %v889 = vpop.f32.mrb[0].mxu0
        %v890 = vpop.f32.mrb[0].mxu0
        %v891 = vpop.f32.mrb[0].mxu0
        %892 = vdwg.mxu0
        %v893 = vsel %vm727, %v880, -inf
        %894 = vmax.xlane.f32.xlu0 %v893
        %v895 = vpop.xlane.xlu0 %894
        %v896 = vsel %vm727, %v883, -inf
        %897 = vmax.xlane.f32.xlu0 %v896
        %v898 = vpop.xlane.xlu0 %897
        %v899 = vsel %vm727, %v888, -inf
        %900 = vmax.xlane.f32.xlu0 %v899
        %v901 = vpop.xlane.xlu0 %900
        %v902 = vsub.f32 %v880, %v895
        %v903 = vsub.f32 %v883, %v898
        %v904 = vsub.f32 %v888, %v901
        %v905 = vmul.f32 %v902, 1.442695
        %v906 = vpow.pop %v905
        %v907 = vmul.f32 %v903, 1.442695
        %v908 = vpow.pop %v907
        %v909 = vmul.f32 %v904, 1.442695
        %v910 = vpow.pop %v909
        %v911 = vsel %vm727, %v906, 0.0
        %912 = vadd.xlane.f32.xlu0 %v911
        %v913 = vpop.xlane.xlu0 %912
        %v914 = vsel %vm727, %v908, 0.0
        %915 = vadd.xlane.f32.xlu0 %v914
        %v916 = vpop.xlane.xlu0 %915
        %v917 = vsel %vm727, %v910, 0.0
        %918 = vadd.xlane.f32.xlu0 %v917
        %v919 = vpop.xlane.xlu0 %918
        %v920 = vrcp.pop %v913
        %v921 = vrcp.pop %v916
        %v922 = vrcp.pop %v919
        %v923 = vmul.f32 %v906, %v920
        %v924 = vmul.f32 %v908, %v921
        %v925 = vmul.f32 %v910, %v922
        %v926 = vpack.c.bf16 %v924, %v923
        %v927 = vpack.c.bf16 %v925, %v925
        %930 = vrot.lane.b32.xlu0 %v660, 96
        %v931 = vpop.permute.xlu0 %930
        %932 = vrot.lane.b32.xlu0 %v661, 96
        %v933 = vpop.permute.xlu0 %932
        %v936 = vsel %vm727, %v926, 0
        %v939 = vsel %vm727, %v927, 0
        %v942 = vsel %vm769, %v933, 0
        %944 = vmatprep.subr.bf16.mxu0 0
        %945 = vmatpush1.bf16.msra.mxu0 %v931
        %946 = vmatprep.subr.bf16.mxu0 0
        %947 = vmatpush1.bf16.msra.mxu0 %v942
        %948 = vmatprep.subr.bf16.mxu0 0
        %949 = vmatpush1.bf16.msra.mxu0 0
        %950 = vmatprep.subr.bf16.mxu0 0
        %951 = vmatpush1.bf16.msra.mxu0 0
        %952 = vmatprep.subr.bf16.mxu0 0
        %953 = vmatpush1.bf16.msra.mxu0 0
        %954 = vmatprep.subr.bf16.mxu0 0
        %955 = vmatpush1.bf16.msra.mxu0 0
        %956 = vmatprep.subr.bf16.mxu0 0
        %957 = vmatpush1.bf16.msra.mxu0 0
        %958 = vmatprep.subr.bf16.mxu0 0
        %959 = vmatpush1.bf16.msra.mxu0 0
        %960 = vmatprep.subr.bf16.mxu0 0
        %961 = vmatpush1.bf16.msra.mxu0 0
        %962 = vmatprep.subr.bf16.mxu0 0
        %963 = vmatpush1.bf16.msra.mxu0 0
        %964 = vmatprep.subr.bf16.mxu0 0
        %965 = vmatpush1.bf16.msra.mxu0 0
        %966 = vmatprep.subr.bf16.mxu0 0
        %967 = vmatpush1.bf16.msra.mxu0 0
        %968 = vmatprep.subr.bf16.mxu0 0
        %969 = vmatpush1.bf16.msra.mxu0 0
        %970 = vmatprep.subr.bf16.mxu0 0
        %971 = vmatpush1.bf16.msra.mxu0 0
        %972 = vmatprep.subr.bf16.mxu0 0
        %973 = vmatpush1.bf16.msra.mxu0 0
        %974 = vmatprep.subr.bf16.mxu0 0
        %975 = vmatpush1.bf16.msra.mxu0 0
        %976 = vmatprep.mubr.bf16.mxu0 0
        %977 = vmatmul.mubr.bf16.gmra.mrb[0].mxu0 %v936
        %v978 = vpop.f32.mrb[0].mxu0
        %v979 = vadd.f32 0.0, %v978
        %v980 = vpop.f32.mrb[0].mxu0
        %v981 = vpop.f32.mrb[0].mxu0
        %v982 = vadd.f32 0.0, %v981
        %v983 = vpop.f32.mrb[0].mxu0
        %984 = vmatprep.mubr.bf16.mxu0 0
        %985 = vmatmul.mubr.bf16.gmra.mrb[0].mxu0 %v939
        %v986 = vpop.f32.mrb[0].mxu0
        %v987 = vadd.f32 0.0, %v986
        %v988 = vpop.f32.mrb[0].mxu0
        %v989 = vpop.f32.mrb[0].mxu0
        %v990 = vpop.f32.mrb[0].mxu0
        %991 = vdwg.mxu0
        %992 = vrot.lane.b32.xlu0 %v656, 64
        %v993 = vpop.permute.xlu0 %992
        %994 = vrot.lane.b32.xlu0 %v657, 64
        %v995 = vpop.permute.xlu0 %994
        %996 = vrot.lane.b32.xlu0 %v658, 64
        %v997 = vpop.permute.xlu0 %996
        %998 = vrot.lane.b32.xlu0 %v659, 64
        %v999 = vpop.permute.xlu0 %998
        %v1001 = vsel %vm666, %v993, 0
        %v1004 = vsel %vm666, %v995, 0
        %v1007 = vsel %vm666, %v997, 0
        %v1010 = vsel %vm666, %v999, 0
        %1012 = vmatprep.subr.bf16.mxu0 0
        %1013 = vmatpush1.bf16.xpose.msra.mxu0 %v1007
        %1014 = vmatprep.subr.bf16.mxu0 0
        %1015 = vmatpush1.bf16.xpose.msra.mxu0 %v1010
        %1016 = vmatprep.subr.bf16.mxu0 0
        %1017 = vmatpush1.bf16.xpose.msra.mxu0 0
        %1018 = vmatprep.subr.bf16.mxu0 0
        %1019 = vmatpush1.bf16.xpose.msra.mxu0 0
        %1020 = vmatprep.subr.bf16.mxu0 0
        %1021 = vmatpush1.bf16.xpose.msra.mxu0 0
        %1022 = vmatprep.subr.bf16.mxu0 0
        %1023 = vmatpush1.bf16.xpose.msra.mxu0 0
        %1024 = vmatprep.subr.bf16.mxu0 0
        %1025 = vmatpush1.bf16.xpose.msra.mxu0 0
        %1026 = vmatprep.subr.bf16.mxu0 0
        %1027 = vmatpush1.bf16.xpose.msra.mxu0 0
        %1028 = vmatprep.subr.bf16.mxu0 0
        %1029 = vmatpush1.bf16.xpose.msra.mxu0 0
        %1030 = vmatprep.subr.bf16.mxu0 0
        %1031 = vmatpush1.bf16.xpose.msra.mxu0 0
        %1032 = vmatprep.subr.bf16.mxu0 0
        %1033 = vmatpush1.bf16.xpose.msra.mxu0 0
        %1034 = vmatprep.subr.bf16.mxu0 0
        %1035 = vmatpush1.bf16.xpose.msra.mxu0 0
        %1036 = vmatprep.subr.bf16.mxu0 0
        %1037 = vmatpush1.bf16.xpose.msra.mxu0 0
        %1038 = vmatprep.subr.bf16.mxu0 0
        %1039 = vmatpush1.bf16.xpose.msra.mxu0 0
        %1040 = vmatprep.subr.bf16.mxu0 0
        %1041 = vmatpush1.bf16.xpose.msra.mxu0 0
        %1042 = vmatprep.subr.bf16.mxu0 0
        %1043 = vmatpush1.bf16.xpose.msra.mxu0 0
        %1044 = vmatprep.mubr.bf16.mxu0 0
        %1045 = vmatmul.mubr.bf16.gmra.mrb[0].mxu0 %v1001
        %v1046 = vpop.f32.mrb[0].mxu0
        %v1047 = vadd.f32 %v665, %v1046
        %v1048 = vpop.f32.mrb[0].mxu0
        %v1049 = vpop.f32.mrb[0].mxu0
        %v1050 = vadd.f32 %v665, %v1049
        %v1051 = vpop.f32.mrb[0].mxu0
        %1052 = vmatprep.mubr.bf16.mxu0 0
        %1053 = vmatmul.mubr.bf16.gmra.mrb[0].mxu0 %v1004
        %v1054 = vpop.f32.mrb[0].mxu0
        %v1055 = vadd.f32 %v665, %v1054
        %v1056 = vpop.f32.mrb[0].mxu0
        %v1057 = vpop.f32.mrb[0].mxu0
        %v1058 = vpop.f32.mrb[0].mxu0
        %1059 = vdwg.mxu0
        %v1060 = vsel %vm727, %v1047, -inf
        %1061 = vmax.xlane.f32.xlu0 %v1060
        %v1062 = vpop.xlane.xlu0 %1061
        %v1063 = vsel %vm727, %v1050, -inf
        %1064 = vmax.xlane.f32.xlu0 %v1063
        %v1065 = vpop.xlane.xlu0 %1064
        %v1066 = vsel %vm727, %v1055, -inf
        %1067 = vmax.xlane.f32.xlu0 %v1066
        %v1068 = vpop.xlane.xlu0 %1067
        %v1069 = vsub.f32 %v1047, %v1062
        %v1070 = vsub.f32 %v1050, %v1065
        %v1071 = vsub.f32 %v1055, %v1068
        %v1072 = vmul.f32 %v1069, 1.442695
        %v1073 = vpow.pop %v1072
        %v1074 = vmul.f32 %v1070, 1.442695
        %v1075 = vpow.pop %v1074
        %v1076 = vmul.f32 %v1071, 1.442695
        %v1077 = vpow.pop %v1076
        %v1078 = vsel %vm727, %v1073, 0.0
        %1079 = vadd.xlane.f32.xlu0 %v1078
        %v1080 = vpop.xlane.xlu0 %1079
        %v1081 = vsel %vm727, %v1075, 0.0
        %1082 = vadd.xlane.f32.xlu0 %v1081
        %v1083 = vpop.xlane.xlu0 %1082
        %v1084 = vsel %vm727, %v1077, 0.0
        %1085 = vadd.xlane.f32.xlu0 %v1084
        %v1086 = vpop.xlane.xlu0 %1085
        %v1087 = vrcp.pop %v1080
        %v1088 = vrcp.pop %v1083
        %v1089 = vrcp.pop %v1086
        %v1090 = vmul.f32 %v1073, %v1087
        %v1091 = vmul.f32 %v1075, %v1088
        %v1092 = vmul.f32 %v1077, %v1089
        %v1093 = vpack.c.bf16 %v1091, %v1090
        %v1094 = vpack.c.bf16 %v1092, %v1092
        %1095 = vrot.lane.b32.xlu0 %v660, 64
        %v1096 = vpop.permute.xlu0 %1095
        %1097 = vrot.lane.b32.xlu0 %v661, 64
        %v1098 = vpop.permute.xlu0 %1097
        %v1101 = vsel %vm727, %v1093, 0
        %v1104 = vsel %vm727, %v1094, 0
        %v1107 = vsel %vm769, %v1098, 0
        %1109 = vmatprep.subr.bf16.mxu0 0
        %1110 = vmatpush1.bf16.msra.mxu0 %v1096
        %1111 = vmatprep.subr.bf16.mxu0 0
        %1112 = vmatpush1.bf16.msra.mxu0 %v1107
        %1113 = vmatprep.subr.bf16.mxu0 0
        %1114 = vmatpush1.bf16.msra.mxu0 0
        %1115 = vmatprep.subr.bf16.mxu0 0
        %1116 = vmatpush1.bf16.msra.mxu0 0
        %1117 = vmatprep.subr.bf16.mxu0 0
        %1118 = vmatpush1.bf16.msra.mxu0 0
        %1119 = vmatprep.subr.bf16.mxu0 0
        %1120 = vmatpush1.bf16.msra.mxu0 0
        %1121 = vmatprep.subr.bf16.mxu0 0
        %1122 = vmatpush1.bf16.msra.mxu0 0
        %1123 = vmatprep.subr.bf16.mxu0 0
        %1124 = vmatpush1.bf16.msra.mxu0 0
        %1125 = vmatprep.subr.bf16.mxu0 0
        %1126 = vmatpush1.bf16.msra.mxu0 0
        %1127 = vmatprep.subr.bf16.mxu0 0
        %1128 = vmatpush1.bf16.msra.mxu0 0
        %1129 = vmatprep.subr.bf16.mxu0 0
        %1130 = vmatpush1.bf16.msra.mxu0 0
        %1131 = vmatprep.subr.bf16.mxu0 0
        %1132 = vmatpush1.bf16.msra.mxu0 0
        %1133 = vmatprep.subr.bf16.mxu0 0
        %1134 = vmatpush1.bf16.msra.mxu0 0
        %1135 = vmatprep.subr.bf16.mxu0 0
        %1136 = vmatpush1.bf16.msra.mxu0 0
        %1137 = vmatprep.subr.bf16.mxu0 0
        %1138 = vmatpush1.bf16.msra.mxu0 0
        %1139 = vmatprep.subr.bf16.mxu0 0
        %1140 = vmatpush1.bf16.msra.mxu0 0
        %1141 = vmatprep.mubr.bf16.mxu0 0
        %1142 = vmatmul.mubr.bf16.gmra.mrb[0].mxu0 %v1101
        %v1143 = vpop.f32.mrb[0].mxu0
        %v1144 = vadd.f32 0.0, %v1143
        %v1145 = vpop.f32.mrb[0].mxu0
        %v1146 = vpop.f32.mrb[0].mxu0
        %v1147 = vadd.f32 0.0, %v1146
        %v1148 = vpop.f32.mrb[0].mxu0
        %1149 = vmatprep.mubr.bf16.mxu0 0
        %1150 = vmatmul.mubr.bf16.gmra.mrb[0].mxu0 %v1104
        %v1151 = vpop.f32.mrb[0].mxu0
        %v1152 = vadd.f32 0.0, %v1151
        %v1153 = vpop.f32.mrb[0].mxu0
        %v1154 = vpop.f32.mrb[0].mxu0
        %v1155 = vpop.f32.mrb[0].mxu0
        %1156 = vdwg.mxu0
        %1157 = vrot.lane.b32.xlu0 %v656, 32
        %v1158 = vpop.permute.xlu0 %1157
        %1159 = vrot.lane.b32.xlu0 %v657, 32
        %v1160 = vpop.permute.xlu0 %1159
        %1161 = vrot.lane.b32.xlu0 %v658, 32
        %v1162 = vpop.permute.xlu0 %1161
        %1163 = vrot.lane.b32.xlu0 %v659, 32
        %v1164 = vpop.permute.xlu0 %1163
        %v1166 = vsel %vm666, %v1158, 0
        %v1169 = vsel %vm666, %v1160, 0
        %v1172 = vsel %vm666, %v1162, 0
        %v1175 = vsel %vm666, %v1164, 0
        %1177 = vmatprep.subr.bf16.mxu0 0
        %1178 = vmatpush1.bf16.xpose.msra.mxu0 %v1172
        %1179 = vmatprep.subr.bf16.mxu0 0
        %1180 = vmatpush1.bf16.xpose.msra.mxu0 %v1175
        %1181 = vmatprep.subr.bf16.mxu0 0
        %1182 = vmatpush1.bf16.xpose.msra.mxu0 0
        %1183 = vmatprep.subr.bf16.mxu0 0
        %1184 = vmatpush1.bf16.xpose.msra.mxu0 0
        %1185 = vmatprep.subr.bf16.mxu0 0
        %1186 = vmatpush1.bf16.xpose.msra.mxu0 0
        %1187 = vmatprep.subr.bf16.mxu0 0
        %1188 = vmatpush1.bf16.xpose.msra.mxu0 0
        %1189 = vmatprep.subr.bf16.mxu0 0
        %1190 = vmatpush1.bf16.xpose.msra.mxu0 0
        %1191 = vmatprep.subr.bf16.mxu0 0
        %1192 = vmatpush1.bf16.xpose.msra.mxu0 0
        %1193 = vmatprep.subr.bf16.mxu0 0
        %1194 = vmatpush1.bf16.xpose.msra.mxu0 0
        %1195 = vmatprep.subr.bf16.mxu0 0
        %1196 = vmatpush1.bf16.xpose.msra.mxu0 0
        %1197 = vmatprep.subr.bf16.mxu0 0
        %1198 = vmatpush1.bf16.xpose.msra.mxu0 0
        %1199 = vmatprep.subr.bf16.mxu0 0
        %1200 = vmatpush1.bf16.xpose.msra.mxu0 0
        %1201 = vmatprep.subr.bf16.mxu0 0
        %1202 = vmatpush1.bf16.xpose.msra.mxu0 0
        %1203 = vmatprep.subr.bf16.mxu0 0
        %1204 = vmatpush1.bf16.xpose.msra.mxu0 0
        %1205 = vmatprep.subr.bf16.mxu0 0
        %1206 = vmatpush1.bf16.xpose.msra.mxu0 0
        %1207 = vmatprep.subr.bf16.mxu0 0
        %1208 = vmatpush1.bf16.xpose.msra.mxu0 0
        %1209 = vmatprep.mubr.bf16.mxu0 0
        %1210 = vmatmul.mubr.bf16.gmra.mrb[0].mxu0 %v1166
        %v1211 = vpop.f32.mrb[0].mxu0
        %v1212 = vadd.f32 %v665, %v1211
        %v1213 = vpop.f32.mrb[0].mxu0
        %v1214 = vpop.f32.mrb[0].mxu0
        %v1215 = vadd.f32 %v665, %v1214
        %v1216 = vpop.f32.mrb[0].mxu0
        %1217 = vmatprep.mubr.bf16.mxu0 0
        %1218 = vmatmul.mubr.bf16.gmra.mrb[0].mxu0 %v1169
        %v1219 = vpop.f32.mrb[0].mxu0
        %v1220 = vadd.f32 %v665, %v1219
        %v1221 = vpop.f32.mrb[0].mxu0
        %v1222 = vpop.f32.mrb[0].mxu0
        %v1223 = vpop.f32.mrb[0].mxu0
        %1224 = vdwg.mxu0
        %v1225 = vsel %vm727, %v1212, -inf
        %1226 = vmax.xlane.f32.xlu0 %v1225
        %v1227 = vpop.xlane.xlu0 %1226
        %v1228 = vsel %vm727, %v1215, -inf
        %1229 = vmax.xlane.f32.xlu0 %v1228
        %v1230 = vpop.xlane.xlu0 %1229
        %v1231 = vsel %vm727, %v1220, -inf
        %1232 = vmax.xlane.f32.xlu0 %v1231
        %v1233 = vpop.xlane.xlu0 %1232
        %v1234 = vsub.f32 %v1212, %v1227
        %v1235 = vsub.f32 %v1215, %v1230
        %v1236 = vsub.f32 %v1220, %v1233
        %v1237 = vmul.f32 %v1234, 1.442695
        %v1238 = vpow.pop %v1237
        %v1239 = vmul.f32 %v1235, 1.442695
        %v1240 = vpow.pop %v1239
        %v1241 = vmul.f32 %v1236, 1.442695
        %v1242 = vpow.pop %v1241
        %v1243 = vsel %vm727, %v1238, 0.0
        %1244 = vadd.xlane.f32.xlu0 %v1243
        %v1245 = vpop.xlane.xlu0 %1244
        %v1246 = vsel %vm727, %v1240, 0.0
        %1247 = vadd.xlane.f32.xlu0 %v1246
        %v1248 = vpop.xlane.xlu0 %1247
        %v1249 = vsel %vm727, %v1242, 0.0
        %1250 = vadd.xlane.f32.xlu0 %v1249
        %v1251 = vpop.xlane.xlu0 %1250
        %v1252 = vrcp.pop %v1245
        %v1253 = vrcp.pop %v1248
        %v1254 = vrcp.pop %v1251
        %v1255 = vmul.f32 %v1238, %v1252
        %v1256 = vmul.f32 %v1240, %v1253
        %v1257 = vmul.f32 %v1242, %v1254
        %v1258 = vpack.c.bf16 %v1256, %v1255
        %v1259 = vpack.c.bf16 %v1257, %v1257
        %1260 = vrot.lane.b32.xlu0 %v660, 32
        %v1261 = vpop.permute.xlu0 %1260
        %1262 = vrot.lane.b32.xlu0 %v661, 32
        %v1263 = vpop.permute.xlu0 %1262
        %v1266 = vsel %vm727, %v1258, 0
        %v1269 = vsel %vm727, %v1259, 0
        %v1272 = vsel %vm769, %v1263, 0
        %1274 = vmatprep.subr.bf16.mxu0 0
        %1275 = vmatpush1.bf16.msra.mxu0 %v1261
        %1276 = vmatprep.subr.bf16.mxu0 0
        %1277 = vmatpush1.bf16.msra.mxu0 %v1272
        %1278 = vmatprep.subr.bf16.mxu0 0
        %1279 = vmatpush1.bf16.msra.mxu0 0
        %1280 = vmatprep.subr.bf16.mxu0 0
        %1281 = vmatpush1.bf16.msra.mxu0 0
        %1282 = vmatprep.subr.bf16.mxu0 0
        %1283 = vmatpush1.bf16.msra.mxu0 0
        %1284 = vmatprep.subr.bf16.mxu0 0
        %1285 = vmatpush1.bf16.msra.mxu0 0
        %1286 = vmatprep.subr.bf16.mxu0 0
        %1287 = vmatpush1.bf16.msra.mxu0 0
        %1288 = vmatprep.subr.bf16.mxu0 0
        %1289 = vmatpush1.bf16.msra.mxu0 0
        %1290 = vmatprep.subr.bf16.mxu0 0
        %1291 = vmatpush1.bf16.msra.mxu0 0
        %1292 = vmatprep.subr.bf16.mxu0 0
        %1293 = vmatpush1.bf16.msra.mxu0 0
        %1294 = vmatprep.subr.bf16.mxu0 0
        %1295 = vmatpush1.bf16.msra.mxu0 0
        %1296 = vmatprep.subr.bf16.mxu0 0
        %1297 = vmatpush1.bf16.msra.mxu0 0
        %1298 = vmatprep.subr.bf16.mxu0 0
        %1299 = vmatpush1.bf16.msra.mxu0 0
        %1300 = vmatprep.subr.bf16.mxu0 0
        %1301 = vmatpush1.bf16.msra.mxu0 0
        %1302 = vmatprep.subr.bf16.mxu0 0
        %1303 = vmatpush1.bf16.msra.mxu0 0
        %1304 = vmatprep.subr.bf16.mxu0 0
        %1305 = vmatpush1.bf16.msra.mxu0 0
        %1306 = vmatprep.mubr.bf16.mxu0 0
        %1307 = vmatmul.mubr.bf16.gmra.mrb[0].mxu0 %v1266
        %v1308 = vpop.f32.mrb[0].mxu0
        %v1309 = vadd.f32 0.0, %v1308
        %v1310 = vpop.f32.mrb[0].mxu0
        %v1311 = vpop.f32.mrb[0].mxu0
        %v1312 = vadd.f32 0.0, %v1311
        %v1313 = vpop.f32.mrb[0].mxu0
        %1314 = vmatprep.mubr.bf16.mxu0 0
        %1315 = vmatmul.mubr.bf16.gmra.mrb[0].mxu0 %v1269
        %v1316 = vpop.f32.mrb[0].mxu0
        %v1317 = vadd.f32 0.0, %v1316
        %v1318 = vpop.f32.mrb[0].mxu0
        %v1319 = vpop.f32.mrb[0].mxu0
        %v1320 = vpop.f32.mrb[0].mxu0
        %1321 = vdwg.mxu0
        %1325 = vrot.lane.b32.xlu0 %v979, 32
        %v1326 = vpop.permute.xlu0 %1325
        %1327 = vrot.lane.b32.xlu0 %v982, 32
        %v1328 = vpop.permute.xlu0 %1327
        %1329 = vrot.lane.b32.xlu0 %v987, 32
        %v1330 = vpop.permute.xlu0 %1329
        %1337 = vrot.lane.b32.xlu0 %v1144, 64
        %v1338 = vpop.permute.xlu0 %1337
        %1339 = vrot.lane.b32.xlu0 %v1147, 64
        %v1340 = vpop.permute.xlu0 %1339
        %1341 = vrot.lane.b32.xlu0 %v1152, 64
        %v1342 = vpop.permute.xlu0 %1341
        %1349 = vrot.lane.b32.xlu0 %v1309, 96
        %v1350 = vpop.permute.xlu0 %1349
        %1351 = vrot.lane.b32.xlu0 %v1312, 96
        %v1352 = vpop.permute.xlu0 %1351
        %1353 = vrot.lane.b32.xlu0 %v1317, 96
        %v1354 = vpop.permute.xlu0 %1353
        %v1358 = vsel %vm666, %v808, %v1326
        %v1359 = vsel %vm666, %v811, %v1328
        %v1360 = vsel %vm666, %v816, %v1330
        %vm1361 = vcmask 523264
        %v1362 = vsel %vm1361, %v1358, %v1338
        %v1363 = vsel %vm1361, %v1359, %v1340
        %v1364 = vsel %vm1361, %v1360, %v1342
        %vm1365 = vcmask 785408
        %v1366 = vsel %vm1365, %v1362, %v1350
        %v1367 = vsel %vm1365, %v1363, %v1352
        %v1368 = vsel %vm1365, %v1364, %v1354
        %v1369 = vpack.c.bf16 %v1367, %v1366
        %v1370 = vpack.c.bf16 %v1368, %v1368
        %v1371 = vld [vmem:[#allocation10] sm:$0xf]
        %v1372 = vld [vmem:[#allocation10 + $0x4] sm:$0xf]
        %v1373 = vld [vmem:[#allocation10 + $0x8] sm:$0xf]
        %v1374 = vld [vmem:[#allocation10 + $0xc] sm:$0xf]
        %v1375 = vld [vmem:[#allocation10 + $0x10] sm:$0xf]
        %v1376 = vld [vmem:[#allocation10 + $0x14] sm:$0xf]
        %v1377 = vld [vmem:[#allocation10 + $0x18] sm:$0xf]
        %v1378 = vld [vmem:[#allocation10 + $0x1c] sm:$0xf]
        %v1379 = vld [vmem:[#allocation10 + $0x20] sm:$0xf]
        %v1380 = vld [vmem:[#allocation10 + $0x24] sm:$0xf]
        %v1381 = vld [vmem:[#allocation10 + $0x28] sm:$0xf]
        %v1382 = vld [vmem:[#allocation10 + $0x2c] sm:$0xf]
        %v1383 = vld [vmem:[#allocation10 + $0x30] sm:$0xf]
        %v1384 = vld [vmem:[#allocation10 + $0x34] sm:$0xf]
        %v1385 = vld [vmem:[#allocation10 + $0x38] sm:$0xf]
        %v1386 = vld [vmem:[#allocation10 + $0x3c] sm:$0xf]
        %v1403 = vunpack.c.l.b16 %v1371
        %v1404 = vunpack.c.l.b16 %v1372
        %v1405 = vunpack.c.l.b16 %v1373
        %v1406 = vunpack.c.l.b16 %v1374
        %v1407 = vunpack.c.l.b16 %v1375
        %v1408 = vunpack.c.l.b16 %v1376
        %v1409 = vunpack.c.l.b16 %v1377
        %v1410 = vunpack.c.l.b16 %v1378
        %v1411 = vunpack.c.l.b16 %v1379
        %v1412 = vunpack.c.l.b16 %v1380
        %v1413 = vunpack.c.l.b16 %v1381
        %v1414 = vunpack.c.l.b16 %v1382
        %v1415 = vunpack.c.l.b16 %v1383
        %v1416 = vunpack.c.l.b16 %v1384
        %v1417 = vunpack.c.l.b16 %v1385
        %v1418 = vunpack.c.l.b16 %v1386
        %v1419 = vpack.c.b16 %v1404, %v1403
        %v1420 = vpack.c.b16 %v1406, %v1405
        %v1421 = vpack.c.b16 %v1408, %v1407
        %v1422 = vpack.c.b16 %v1410, %v1409
        %v1423 = vpack.c.b16 %v1412, %v1411
        %v1424 = vpack.c.b16 %v1414, %v1413
        %v1425 = vpack.c.b16 %v1416, %v1415
        %v1426 = vpack.c.b16 %v1418, %v1417
        %1435 = vmatprep.subr.bf16.mxu0 0
        %1436 = vmatpush1.bf16.msra.mxu0 %v1419
        %1437 = vmatprep.subr.bf16.mxu0 0
        %1438 = vmatpush1.bf16.msra.mxu0 %v1420
        %1439 = vmatprep.subr.bf16.mxu0 0
        %1440 = vmatpush1.bf16.msra.mxu0 %v1421
        %1441 = vmatprep.subr.bf16.mxu0 0
        %1442 = vmatpush1.bf16.msra.mxu0 %v1422
        %1443 = vmatprep.subr.bf16.mxu0 0
        %1444 = vmatpush1.bf16.msra.mxu0 %v1423
        %1445 = vmatprep.subr.bf16.mxu0 0
        %1446 = vmatpush1.bf16.msra.mxu0 %v1424
        %1447 = vmatprep.subr.bf16.mxu0 0
        %1448 = vmatpush1.bf16.msra.mxu0 %v1425
        %1449 = vmatprep.subr.bf16.mxu0 0
        %1450 = vmatpush1.bf16.msra.mxu0 %v1426
        %1451 = vmatprep.subr.bf16.mxu0 0
        %1452 = vmatpush1.bf16.msra.mxu0 0
        %1453 = vmatprep.subr.bf16.mxu0 0
        %1454 = vmatpush1.bf16.msra.mxu0 0
        %1455 = vmatprep.subr.bf16.mxu0 0
        %1456 = vmatpush1.bf16.msra.mxu0 0
        %1457 = vmatprep.subr.bf16.mxu0 0
        %1458 = vmatpush1.bf16.msra.mxu0 0
        %1459 = vmatprep.subr.bf16.mxu0 0
        %1460 = vmatpush1.bf16.msra.mxu0 0
        %1461 = vmatprep.subr.bf16.mxu0 0
        %1462 = vmatpush1.bf16.msra.mxu0 0
        %1463 = vmatprep.subr.bf16.mxu0 0
        %1464 = vmatpush1.bf16.msra.mxu0 0
        %1465 = vmatprep.subr.bf16.mxu0 0
        %1466 = vmatpush1.bf16.msra.mxu0 0
        %1467 = vmatprep.mubr.bf16.mxu0 0
        %1468 = vmatmul.mubr.bf16.gmra.mrb[0].mxu0 %v1369
        %v1469 = vpop.f32.mrb[0].mxu0
        %v1470 = vadd.f32 0.0, %v1469
        %v1471 = vpop.f32.mrb[0].mxu0
        %v1472 = vpop.f32.mrb[0].mxu0
        %v1473 = vadd.f32 0.0, %v1472
        %v1474 = vpop.f32.mrb[0].mxu0
        %1475 = vmatprep.mubr.bf16.mxu0 0
        %1476 = vmatmul.mubr.bf16.gmra.mrb[0].mxu0 %v1370
        %v1477 = vpop.f32.mrb[0].mxu0
        %v1478 = vadd.f32 0.0, %v1477
        %v1479 = vpop.f32.mrb[0].mxu0
        %v1480 = vpop.f32.mrb[0].mxu0
        %v1481 = vpop.f32.mrb[0].mxu0
        %1482 = vdwg.mxu0
        %v1483 = vadd.f32 %v338, %v1470
        %v1484 = vadd.f32 %v339, %v1473
        %v1485 = vadd.f32 %v340, %v1478
        %v1486 = vld [vmem:[#allocation11] sm:$0x1]
        %v1488 = vlaneseq
        %v1489 = vshrl.u32 %v1488, 7
        %v1490 = vsub.s32 0, %v1489
        %v1491 = vrot.slane %v1486, %v1490
        %v1493 = vadd.f32 %v1483, %v1491
        %v1494 = vadd.f32 %v1484, %v1491
        %v1495 = vadd.f32 %v1485, %v1491
        %1496 = vst [vmem:[%s336] sm:$0xff] %v1493
        %1497 = vst [vmem:[%s336 + $0x8] sm:$0xff] %v1494
        %1498 = vst [vmem:[%s336 + $0x10] sm:$0xff] %v1495
        %s1499 = sand.u32 %s165, 1
        %s1500 = scalar_lea.sflag [#allocation4], %s1499
        %s1501 = sand.u32 %s165, 1
        %s1502 = smul.addr %s1501, 24
        %s1503 = scalar_lea.vmem [#allocation13], %s1502
        // Predicated region
        $region69: #{vit_forward.7} parent=43 // pred_check
          %p1504 = pneg %p175
        $region70: #{vit_forward.7} parent=43 // pred_check_branch
          %1506 = sbr.rel (%p1504) target = $region72
        $region71: #{vit_forward.7} parent=43 // pred_region
          %s1508 = ssub.s32 384, 384
          %1509 = vsyncadd %s1500, %s1508
          %s1510 = smul.addr %s26, 3
          %s1511 = smul.addr %s1510, 128
          %s1512 = scalar_lea.hbm %s6, %s1511
          %s1513 = sshll.u32 %s1503, 4
          %s1514 = int_to_ptr.vmem [resolvable:$true] %s1513
          %1519 = dma.vmem_to_hbm [thread:$0]  %s1514, 384, %s1512, %s1500, 128, 128, 8
        $region72: #{vit_forward.7} parent=43 // pred_fallthru
          _
      $region44: #{vit_forward.7} parent=5 // pred_fallthru
        _
      %p1520 = scmp.le.s32.totalorder 2, %s21
      // Predicated region
      $region73: #{vit_forward.7} parent=5 // pred_check
        %p1521 = pneg %p1520
      $region74: #{vit_forward.7} parent=5 // pred_check_branch
        %1523 = sbr.rel (%p1521) target = $region76
      $region75: #{vit_forward.7} parent=5 // pred_region
        %s1524 = ssub.s32 %s21, 2
        // Predicated region
        $region77: #{vit_forward.7} parent=75 // pred_check
          %p1525 = pneg %p181
        $region78: #{vit_forward.7} parent=75 // pred_check_branch
          %1527 = sbr.rel (%p1525) target = $region80
        $region79: #{vit_forward.7} parent=75 // pred_region
          %s1528 = sand.u32 %s166, 1
          %s1529 = scalar_lea.sflag [#allocation4], %s1528
          %s1530 = sand.u32 %s166, 1
          %s1531 = smul.addr %s1530, 24
          %s1532 = scalar_lea.vmem [#allocation13], %s1531
          %1533 = dma.done %s1529, 384
        $region80: #{vit_forward.7} parent=75 // pred_fallthru
          _
      $region76: #{vit_forward.7} parent=5 // pred_fallthru
        _
    $region6: #{vit_forward.7} parent=1 // loop_footer
      %s25 = sadd.s32 1, %s21
    $region7: #{vit_forward.7} parent=1 // loop_footer_branch
      %20 = sbr.rel target = $region3
    $region8: #{vit_forward.7} parent=1 // loop_exit
      _
    %1534 = vsyncpa [#allocation3], 1
    %s1535 = scalar_lea.sflag [#allocation3], 1
    %1536 = vsyncpa %s1535, 1
    %1537 = vsyncpa [#allocation6], 1
    %1538 = vsyncpa [#allocation9], 1
    %1539 = vsyncpa [#allocation12], 1
    %1540 = vsyncpa [#allocation4], 1
    %s1541 = scalar_lea.sflag [#allocation4], 1
    %1542 = vsyncpa %s1541, 1

</llo_original>
